<compile_context>
chip_gen: v7x
topology: tpu7x:2x2x1
jax: 0.10.0
libtpu: 0.0.40
codegen_flags: <defaults>
</compile_context>

<pallas_src>
import functools

import jax
import jax.numpy as jnp
from jax import lax
from jax.experimental import pallas as pl
from jax.experimental.pallas import tpu as pltpu


# ----------------------------- Pallas kernel -------------------------------- #

def _make_conv_bn_relu_kernel(tap_plan, n_shift, rows, cout):
    """Factory: fused conv (static per-tap row windows) + folded-BN bias + ReLU."""

    def kernel(*refs):
        shift_refs = refs[:n_shift]        # shifted stride phases (1, R_i, Cin) bf16
        w_ref = refs[n_shift]              # (KH*KW, Cin, Cout) bf16, BN scale folded
        b_ref = refs[n_shift + 1]          # (1, Cout) f32 folded BN bias
        o_ref = refs[n_shift + 2]          # (1, rows, Cout) f32
        acc_ref = refs[n_shift + 3]        # VMEM scratch (rows, Cout) f32

        for tap, (s_idx, r0) in enumerate(tap_plan):
            # Contiguous, statically-known row window of one shifted phase; rows
            # r0 .. r0+rows map 1:1 to the (oh, ow) output positions -> no repack.
            x2d = shift_refs[s_idx][0, r0:r0 + rows, :]            # (rows, Cin) bf16
            part = jnp.dot(x2d, w_ref[tap],
                           preferred_element_type=jnp.float32)     # MXU, f32 acc
            if tap == 0:
                acc_ref[...] = part
            else:
                acc_ref[...] += part

        y = acc_ref[...] + b_ref[...]                               # folded BN bias
        o_ref[0, :, :] = jnp.maximum(y, 0.0).astype(o_ref.dtype)    # ReLU

    return kernel


# ------------------------------ host wrapper -------------------------------- #

@functools.partial(jax.jit, static_argnames=("stride", "padding"))
def incept_conv(x_nchw, w, bn_gamma, bn_beta, bn_mean, bn_var, *, stride, padding):
    """InceptConv forward (inference-mode BN). (N,Cin,H,W) -> (N,Cout,Ho,Wo)."""
    n, cin, h, w_sp = x_nchw.shape
    cout, _, kh, kw = w.shape
    sh, sw = (stride, stride) if isinstance(stride, int) else tuple(stride)
    pad_h, pad_w = (padding, padding) if isinstance(padding, int) else tuple(padding)
    eps = 1e-3

    ho = (h + 2 * pad_h - kh) // sh + 1
    wo = (w_sp + 2 * pad_w - kw) // sw + 1
    rows = ho * wo

    # ---- host glue (layout only): NCHW -> NHWC, pad ------------------------
    # TODO(synk): when chaining InceptConv layers, keep the lane-dense
    # (N, Ho*Wo, Cout) output between layers and only transpose at the graph
    # boundary; the NCHW transposes here are PyTorch-API parity cost.
    x_nhwc = jnp.transpose(x_nchw, (0, 2, 3, 1))
    if pad_h or pad_w:
        x_nhwc = jnp.pad(x_nhwc, ((0, 0), (pad_h, pad_h), (pad_w, pad_w), (0, 0)))

    # ---- shifted stride phases: tap (ih, iw) == contiguous row window ------
    # S[ph, pw, ow0][b, hp, w, c] = x_pad[b, hp*sh + ph, (w + ow0)*sw + pw, c]
    # so tap (ih, iw) with ph=ih%sh, pw=iw%sw, oh0=ih//sh, ow0=iw//sw is exactly
    # rows [oh0*Wo, oh0*Wo + Ho*Wo) of S[ph, pw, ow0] flattened to (Hp*Wo, Cin).
    shift_arrays = []          # distinct shifted-phase tensors, bf16
    shift_index = {}           # (ph, pw, ow0) -> position in shift_arrays
    tap_plan = []              # per tap: (shift_array_index, static row start)
    for ih in range(kh):
        for iw in range(kw):
            ph, pw = ih % sh, iw % sw
            oh0, ow0 = ih // sh, iw // sw
            key = (ph, pw, ow0)
            if key not in shift_index:
                xs = x_nhwc[:, ph::sh, pw::sw, :][:, :, ow0:ow0 + wo, :]
                shift_index[key] = len(shift_arrays)
                shift_arrays.append(xs.reshape(n, -1, cin).astype(jnp.bfloat16))
            tap_plan.append((shift_index[key], oh0 * wo))
    n_shift = len(shift_arrays)

    # ---- fold inference-mode BN into the conv weights + a bias vector ------
    scale = bn_gamma / jnp.sqrt(bn_var + eps)                        # (Cout,)
    bias = (bn_beta - bn_mean * scale).reshape(1, cout).astype(jnp.float32)
    # (Cout, Cin, KH, KW) -> (KH*KW, Cin, Cout), scaled per output channel, bf16.
    w_taps = jnp.transpose(w, (2, 3, 1, 0)).reshape(kh * kw, cin, cout)
    w_taps = (w_taps * scale[None, None, :]).astype(jnp.bfloat16)

    kernel = _make_conv_bn_relu_kernel(tap_plan, n_shift, rows, cout)

    in_specs = []
    for s in shift_arrays:
        r_i = s.shape[1]
        in_specs.append(pl.BlockSpec((1, r_i, cin), lambda i: (i, 0, 0)))
    # Weights / bias: constant index map -> stay resident across grid steps.
    in_specs.append(pl.BlockSpec((kh * kw, cin, cout), lambda i: (0, 0, 0)))
    in_specs.append(pl.BlockSpec((1, cout), lambda i: (0, 0)))

    flops = 2 * n * rows * kh * kw * cin * cout
    bytes_accessed = (sum(int(s.size) for s in shift_arrays) * 2     # bf16 phases
                      + int(w_taps.size) * 2                          # bf16 weights
                      + int(bias.size) * 4
                      + n * rows * cout * 4)                          # f32 output

    # TODO(synk): for very large feature maps (147x147 stem layers) split Ho into a
    # second grid axis so the shifted-phase blocks stay within v7x's 64 MiB/TC VMEM;
    # not needed at InceptionV4 trunk sizes.
    out = pl.pallas_call(
        kernel,
        out_shape=jax.ShapeDtypeStruct((n, rows, cout), jnp.float32),
        grid_spec=pltpu.PrefetchScalarGridSpec(
            num_scalar_prefetch=0,
            grid=(n,),
            in_specs=in_specs,
            out_specs=pl.BlockSpec((1, rows, cout), lambda i: (i, 0, 0)),
            scratch_shapes=[pltpu.VMEM((rows, cout), jnp.float32)],
        ),
        compiler_params=pltpu.CompilerParams(
            dimension_semantics=("parallel",)),
        cost_estimate=pl.CostEstimate(
            flops=flops, transcendentals=0, bytes_accessed=bytes_accessed),
    )(*shift_arrays, w_taps, bias)

    # Lane-dense (N, Ho*Wo, Cout) -> NCHW only at the module boundary.
    return jnp.transpose(out.reshape(n, ho, wo, cout), (0, 3, 1, 2))


# -------------------------------- reference --------------------------------- #

def _reference(x_nchw, w, bn_gamma, bn_beta, bn_mean, bn_var, *, stride, padding):
    eps = 1e-3
    sh, sw = (stride, stride) if isinstance(stride, int) else tuple(stride)
    ph, pw = (padding, padding) if isinstance(padding, int) else tuple(padding)
    x_nhwc = jnp.transpose(x_nchw, (0, 2, 3, 1))
    w_hwio = jnp.transpose(w, (2, 3, 1, 0))
    conv = lax.conv_general_dilated(
        x_nhwc, w_hwio, window_strides=(sh, sw),
        padding=((ph, ph), (pw, pw)),
        dimension_numbers=("NHWC", "HWIO", "NHWC"))
    scale = bn_gamma / jnp.sqrt(bn_var + eps)
    bias = bn_beta - bn_mean * scale
    out = jnp.maximum(conv * scale + bias, 0.0)
    return jnp.transpose(out, (0, 3, 1, 2))


# ----------------------------------- main ------------------------------------ #

if __name__ == "__main__":
    key = jax.random.PRNGKey(0)
    k_x, k_w, k_g, k_b, k_m, k_v = jax.random.split(key, 6)

    # InceptionV4-style instantiation: InceptConv(192, 192, k=3, stride=2, padding=0)
    # on a small 17x17 feature map, batch 2.
    N, CIN, H, W = 2, 192, 17, 17
    COUT, KSZ, STRIDE, PAD = 192, 3, 2, 0

    x = jax.random.normal(k_x, (N, CIN, H, W), dtype=jnp.float32)
    conv_w = 0.1 * jax.random.normal(k_w, (COUT, CIN, KSZ, KSZ), dtype=jnp.float32)
    bn_gamma = jax.random.uniform(k_g, (COUT,), minval=0.5, maxval=1.5,
                                  dtype=jnp.float32)
    bn_beta = 0.1 * jax.random.normal(k_b, (COUT,), dtype=jnp.float32)
    bn_mean = 0.05 * jax.random.normal(k_m, (COUT,), dtype=jnp.float32)
    bn_var = jax.random.uniform(k_v, (COUT,), minval=0.5, maxval=1.5,
                                dtype=jnp.float32)

    out = incept_conv(x, conv_w, bn_gamma, bn_beta, bn_mean, bn_var,
                      stride=STRIDE, padding=PAD)
    out = jax.block_until_ready(out)

    ref = jax.block_until_ready(
        _reference(x, conv_w, bn_gamma, bn_beta, bn_mean, bn_var,
                   stride=STRIDE, padding=PAD))

    HO = (H + 2 * PAD - KSZ) // STRIDE + 1
    WO = (W + 2 * PAD - KSZ) // STRIDE + 1
    assert out.shape == (N, COUT, HO, WO), out.shape
    # bf16 MXU inputs (f32 accumulate): ~1e-2-relative rounding vs the f32 reference.
    max_err = float(jnp.max(jnp.abs(out - ref)))
    assert jnp.allclose(out, ref, atol=8e-2, rtol=5e-2), max_err

    print("KERNEL_OK")
</pallas_src>

<mosaic_0001>
module attributes {stable_mosaic.version = 11 : i64} {
  func.func @kernel(%arg0: i32, %arg1: memref<1x72x192xbf16, #tpu.memory_space<vmem>>, %arg2: memref<1x72x192xbf16, #tpu.memory_space<vmem>>, %arg3: memref<1x72x192xbf16, #tpu.memory_space<vmem>>, %arg4: memref<1x64x192xbf16, #tpu.memory_space<vmem>>, %arg5: memref<1x64x192xbf16, #tpu.memory_space<vmem>>, %arg6: memref<1x64x192xbf16, #tpu.memory_space<vmem>>, %arg7: memref<9x192x192xbf16, #tpu.memory_space<vmem>>, %arg8: memref<1x192xf32, #tpu.memory_space<vmem>>, %arg9: memref<1x64x192xf32, #tpu.memory_space<vmem>>, %arg10: memref<64x192xf32, #tpu.memory_space<vmem>>) attributes {dimension_semantics = [#tpu.dimension_semantics<parallel>], iteration_bounds = array<i64: 2>, scalar_prefetch = 0 : i64, scratch_operands = 1 : i64, tpu.core_type = #tpu.core_type<tc>, window_params = [{transform_indices = @transform_0, window_bounds = array<i64: 1, 72, 192>}, {transform_indices = @transform_1, window_bounds = array<i64: 1, 72, 192>}, {transform_indices = @transform_2, window_bounds = array<i64: 1, 72, 192>}, {transform_indices = @transform_3, window_bounds = array<i64: 1, 64, 192>}, {transform_indices = @transform_4, window_bounds = array<i64: 1, 64, 192>}, {transform_indices = @transform_5, window_bounds = array<i64: 1, 64, 192>}, {pipeline_mode = #tpu.pipeline_mode<synchronous>, transform_indices = @transform_6, window_bounds = array<i64: 9, 192, 192>}, {pipeline_mode = #tpu.pipeline_mode<synchronous>, transform_indices = @transform_7, window_bounds = array<i64: 1, 192>}, {transform_indices = @transform_8, window_bounds = array<i64: 1, 64, 192>}]} {
    %c0 = arith.constant 0 : index
    %c0_0 = arith.constant 0 : index
    %c0_1 = arith.constant 0 : index
    %0 = vector.load %arg1[%c0, %c0_0, %c0_1] : memref<1x72x192xbf16, #tpu.memory_space<vmem>>, vector<1x64x192xbf16>
    %1 = vector.shape_cast %0 : vector<1x64x192xbf16> to vector<64x192xbf16>
    %c0_2 = arith.constant 0 : index
    %c0_3 = arith.constant 0 : index
    %c0_4 = arith.constant 0 : index
    %2 = vector.load %arg7[%c0_2, %c0_3, %c0_4] : memref<9x192x192xbf16, #tpu.memory_space<vmem>>, vector<1x192x192xbf16>
    %3 = vector.shape_cast %2 : vector<1x192x192xbf16> to vector<192x192xbf16>
    %cst = arith.constant dense<0.000000e+00> : vector<64x192xf32>
    %4 = tpu.matmul %1, %3, %cst {dimension_numbers = #tpu.dot_dimension_numbers<[1], [0], [0], [1], [0, 0, 1, 1], [], []>} : vector<64x192xbf16>, vector<192x192xbf16>, vector<64x192xf32> -> vector<64x192xf32>
    %c0_5 = arith.constant 0 : index
    %c0_6 = arith.constant 0 : index
    %5 = vector.load %arg10[%c0_5, %c0_6] : memref<64x192xf32, #tpu.memory_space<vmem>>, vector<64x192xf32>
    tpu.vector_store %arg10[%c0_5, %c0_6], %4 {strides = array<i32>} : memref<64x192xf32, #tpu.memory_space<vmem>>, vector<64x192xf32>,
    %c0_7 = arith.constant 0 : index
    %c0_8 = arith.constant 0 : index
    %c0_9 = arith.constant 0 : index
    %6 = vector.load %arg2[%c0_7, %c0_8, %c0_9] : memref<1x72x192xbf16, #tpu.memory_space<vmem>>, vector<1x64x192xbf16>
    %7 = vector.shape_cast %6 : vector<1x64x192xbf16> to vector<64x192xbf16>
    %c1 = arith.constant 1 : index
    %c0_10 = arith.constant 0 : index
    %c0_11 = arith.constant 0 : index
    %8 = vector.load %arg7[%c1, %c0_10, %c0_11] : memref<9x192x192xbf16, #tpu.memory_space<vmem>>, vector<1x192x192xbf16>
    %9 = vector.shape_cast %8 : vector<1x192x192xbf16> to vector<192x192xbf16>
    %cst_12 = arith.constant dense<0.000000e+00> : vector<64x192xf32>
    %10 = tpu.matmul %7, %9, %cst_12 {dimension_numbers = #tpu.dot_dimension_numbers<[1], [0], [0], [1], [0, 0, 1, 1], [], []>} : vector<64x192xbf16>, vector<192x192xbf16>, vector<64x192xf32> -> vector<64x192xf32>
    %c0_13 = arith.constant 0 : index
    %c0_14 = arith.constant 0 : index
    %11 = vector.load %arg10[%c0_13, %c0_14] : memref<64x192xf32, #tpu.memory_space<vmem>>, vector<64x192xf32>
    %12 = arith.addf %11, %10 : vector<64x192xf32>
    %c0_15 = arith.constant 0 : index
    %c0_16 = arith.constant 0 : index
    %13 = vector.load %arg10[%c0_15, %c0_16] : memref<64x192xf32, #tpu.memory_space<vmem>>, vector<64x192xf32>
    tpu.vector_store %arg10[%c0_15, %c0_16], %12 {strides = array<i32>} : memref<64x192xf32, #tpu.memory_space<vmem>>, vector<64x192xf32>,
    %c0_17 = arith.constant 0 : index
    %c0_18 = arith.constant 0 : index
    %c0_19 = arith.constant 0 : index
    %14 = vector.load %arg3[%c0_17, %c0_18, %c0_19] : memref<1x72x192xbf16, #tpu.memory_space<vmem>>, vector<1x64x192xbf16>
    %15 = vector.shape_cast %14 : vector<1x64x192xbf16> to vector<64x192xbf16>
    %c2 = arith.constant 2 : index
    %c0_20 = arith.constant 0 : index
    %c0_21 = arith.constant 0 : index
    %16 = vector.load %arg7[%c2, %c0_20, %c0_21] : memref<9x192x192xbf16, #tpu.memory_space<vmem>>, vector<1x192x192xbf16>
    %17 = vector.shape_cast %16 : vector<1x192x192xbf16> to vector<192x192xbf16>
    %cst_22 = arith.constant dense<0.000000e+00> : vector<64x192xf32>
    %18 = tpu.matmul %15, %17, %cst_22 {dimension_numbers = #tpu.dot_dimension_numbers<[1], [0], [0], [1], [0, 0, 1, 1], [], []>} : vector<64x192xbf16>, vector<192x192xbf16>, vector<64x192xf32> -> vector<64x192xf32>
    %c0_23 = arith.constant 0 : index
    %c0_24 = arith.constant 0 : index
    %19 = vector.load %arg10[%c0_23, %c0_24] : memref<64x192xf32, #tpu.memory_space<vmem>>, vector<64x192xf32>
    %20 = arith.addf %19, %18 : vector<64x192xf32>
    %c0_25 = arith.constant 0 : index
    %c0_26 = arith.constant 0 : index
    %21 = vector.load %arg10[%c0_25, %c0_26] : memref<64x192xf32, #tpu.memory_space<vmem>>, vector<64x192xf32>
    tpu.vector_store %arg10[%c0_25, %c0_26], %20 {strides = array<i32>} : memref<64x192xf32, #tpu.memory_space<vmem>>, vector<64x192xf32>,
    %c0_27 = arith.constant 0 : index
    %c0_28 = arith.constant 0 : index
    %c0_29 = arith.constant 0 : index
    %22 = vector.load %arg4[%c0_27, %c0_28, %c0_29] : memref<1x64x192xbf16, #tpu.memory_space<vmem>>, vector<1x64x192xbf16>
    %23 = vector.shape_cast %22 : vector<1x64x192xbf16> to vector<64x192xbf16>
    %c3 = arith.constant 3 : index
    %c0_30 = arith.constant 0 : index
    %c0_31 = arith.constant 0 : index
    %24 = vector.load %arg7[%c3, %c0_30, %c0_31] : memref<9x192x192xbf16, #tpu.memory_space<vmem>>, vector<1x192x192xbf16>
    %25 = vector.shape_cast %24 : vector<1x192x192xbf16> to vector<192x192xbf16>
    %cst_32 = arith.constant dense<0.000000e+00> : vector<64x192xf32>
    %26 = tpu.matmul %23, %25, %cst_32 {dimension_numbers = #tpu.dot_dimension_numbers<[1], [0], [0], [1], [0, 0, 1, 1], [], []>} : vector<64x192xbf16>, vector<192x192xbf16>, vector<64x192xf32> -> vector<64x192xf32>
    %c0_33 = arith.constant 0 : index
    %c0_34 = arith.constant 0 : index
    %27 = vector.load %arg10[%c0_33, %c0_34] : memref<64x192xf32, #tpu.memory_space<vmem>>, vector<64x192xf32>
    %28 = arith.addf %27, %26 : vector<64x192xf32>
    %c0_35 = arith.constant 0 : index
    %c0_36 = arith.constant 0 : index
    %29 = vector.load %arg10[%c0_35, %c0_36] : memref<64x192xf32, #tpu.memory_space<vmem>>, vector<64x192xf32>
    tpu.vector_store %arg10[%c0_35, %c0_36], %28 {strides = array<i32>} : memref<64x192xf32, #tpu.memory_space<vmem>>, vector<64x192xf32>,
    %c0_37 = arith.constant 0 : index
    %c0_38 = arith.constant 0 : index
    %c0_39 = arith.constant 0 : index
    %30 = vector.load %arg5[%c0_37, %c0_38, %c0_39] : memref<1x64x192xbf16, #tpu.memory_space<vmem>>, vector<1x64x192xbf16>
    %31 = vector.shape_cast %30 : vector<1x64x192xbf16> to vector<64x192xbf16>
    %c4 = arith.constant 4 : index
    %c0_40 = arith.constant 0 : index
    %c0_41 = arith.constant 0 : index
    %32 = vector.load %arg7[%c4, %c0_40, %c0_41] : memref<9x192x192xbf16, #tpu.memory_space<vmem>>, vector<1x192x192xbf16>
    %33 = vector.shape_cast %32 : vector<1x192x192xbf16> to vector<192x192xbf16>
    %cst_42 = arith.constant dense<0.000000e+00> : vector<64x192xf32>
    %34 = tpu.matmul %31, %33, %cst_42 {dimension_numbers = #tpu.dot_dimension_numbers<[1], [0], [0], [1], [0, 0, 1, 1], [], []>} : vector<64x192xbf16>, vector<192x192xbf16>, vector<64x192xf32> -> vector<64x192xf32>
    %c0_43 = arith.constant 0 : index
    %c0_44 = arith.constant 0 : index
    %35 = vector.load %arg10[%c0_43, %c0_44] : memref<64x192xf32, #tpu.memory_space<vmem>>, vector<64x192xf32>
    %36 = arith.addf %35, %34 : vector<64x192xf32>
    %c0_45 = arith.constant 0 : index
    %c0_46 = arith.constant 0 : index
    %37 = vector.load %arg10[%c0_45, %c0_46] : memref<64x192xf32, #tpu.memory_space<vmem>>, vector<64x192xf32>
    tpu.vector_store %arg10[%c0_45, %c0_46], %36 {strides = array<i32>} : memref<64x192xf32, #tpu.memory_space<vmem>>, vector<64x192xf32>,
    %c0_47 = arith.constant 0 : index
    %c0_48 = arith.constant 0 : index
    %c0_49 = arith.constant 0 : index
    %38 = vector.load %arg6[%c0_47, %c0_48, %c0_49] : memref<1x64x192xbf16, #tpu.memory_space<vmem>>, vector<1x64x192xbf16>
    %39 = vector.shape_cast %38 : vector<1x64x192xbf16> to vector<64x192xbf16>
    %c5 = arith.constant 5 : index
    %c0_50 = arith.constant 0 : index
    %c0_51 = arith.constant 0 : index
    %40 = vector.load %arg7[%c5, %c0_50, %c0_51] : memref<9x192x192xbf16, #tpu.memory_space<vmem>>, vector<1x192x192xbf16>
    %41 = vector.shape_cast %40 : vector<1x192x192xbf16> to vector<192x192xbf16>
    %cst_52 = arith.constant dense<0.000000e+00> : vector<64x192xf32>
    %42 = tpu.matmul %39, %41, %cst_52 {dimension_numbers = #tpu.dot_dimension_numbers<[1], [0], [0], [1], [0, 0, 1, 1], [], []>} : vector<64x192xbf16>, vector<192x192xbf16>, vector<64x192xf32> -> vector<64x192xf32>
    %c0_53 = arith.constant 0 : index
    %c0_54 = arith.constant 0 : index
    %43 = vector.load %arg10[%c0_53, %c0_54] : memref<64x192xf32, #tpu.memory_space<vmem>>, vector<64x192xf32>
    %44 = arith.addf %43, %42 : vector<64x192xf32>
    %c0_55 = arith.constant 0 : index
    %c0_56 = arith.constant 0 : index
    %45 = vector.load %arg10[%c0_55, %c0_56] : memref<64x192xf32, #tpu.memory_space<vmem>>, vector<64x192xf32>
    tpu.vector_store %arg10[%c0_55, %c0_56], %44 {strides = array<i32>} : memref<64x192xf32, #tpu.memory_space<vmem>>, vector<64x192xf32>,
    %c0_57 = arith.constant 0 : index
    %c8 = arith.constant 8 : index
    %c0_58 = arith.constant 0 : index
    %46 = vector.load %arg1[%c0_57, %c8, %c0_58] : memref<1x72x192xbf16, #tpu.memory_space<vmem>>, vector<1x64x192xbf16>
    %47 = vector.shape_cast %46 : vector<1x64x192xbf16> to vector<64x192xbf16>
    %c6 = arith.constant 6 : index
    %c0_59 = arith.constant 0 : index
    %c0_60 = arith.constant 0 : index
    %48 = vector.load %arg7[%c6, %c0_59, %c0_60] : memref<9x192x192xbf16, #tpu.memory_space<vmem>>, vector<1x192x192xbf16>
    %49 = vector.shape_cast %48 : vector<1x192x192xbf16> to vector<192x192xbf16>
    %cst_61 = arith.constant dense<0.000000e+00> : vector<64x192xf32>
    %50 = tpu.matmul %47, %49, %cst_61 {dimension_numbers = #tpu.dot_dimension_numbers<[1], [0], [0], [1], [0, 0, 1, 1], [], []>} : vector<64x192xbf16>, vector<192x192xbf16>, vector<64x192xf32> -> vector<64x192xf32>
    %c0_62 = arith.constant 0 : index
    %c0_63 = arith.constant 0 : index
    %51 = vector.load %arg10[%c0_62, %c0_63] : memref<64x192xf32, #tpu.memory_space<vmem>>, vector<64x192xf32>
    %52 = arith.addf %51, %50 : vector<64x192xf32>
    %c0_64 = arith.constant 0 : index
    %c0_65 = arith.constant 0 : index
    %53 = vector.load %arg10[%c0_64, %c0_65] : memref<64x192xf32, #tpu.memory_space<vmem>>, vector<64x192xf32>
    tpu.vector_store %arg10[%c0_64, %c0_65], %52 {strides = array<i32>} : memref<64x192xf32, #tpu.memory_space<vmem>>, vector<64x192xf32>,
    %c0_66 = arith.constant 0 : index
    %c8_67 = arith.constant 8 : index
    %c0_68 = arith.constant 0 : index
    %54 = vector.load %arg2[%c0_66, %c8_67, %c0_68] : memref<1x72x192xbf16, #tpu.memory_space<vmem>>, vector<1x64x192xbf16>
    %55 = vector.shape_cast %54 : vector<1x64x192xbf16> to vector<64x192xbf16>
    %c7 = arith.constant 7 : index
    %c0_69 = arith.constant 0 : index
    %c0_70 = arith.constant 0 : index
    %56 = vector.load %arg7[%c7, %c0_69, %c0_70] : memref<9x192x192xbf16, #tpu.memory_space<vmem>>, vector<1x192x192xbf16>
    %57 = vector.shape_cast %56 : vector<1x192x192xbf16> to vector<192x192xbf16>
    %cst_71 = arith.constant dense<0.000000e+00> : vector<64x192xf32>
    %58 = tpu.matmul %55, %57, %cst_71 {dimension_numbers = #tpu.dot_dimension_numbers<[1], [0], [0], [1], [0, 0, 1, 1], [], []>} : vector<64x192xbf16>, vector<192x192xbf16>, vector<64x192xf32> -> vector<64x192xf32>
    %c0_72 = arith.constant 0 : index
    %c0_73 = arith.constant 0 : index
    %59 = vector.load %arg10[%c0_72, %c0_73] : memref<64x192xf32, #tpu.memory_space<vmem>>, vector<64x192xf32>
    %60 = arith.addf %59, %58 : vector<64x192xf32>
    %c0_74 = arith.constant 0 : index
    %c0_75 = arith.constant 0 : index
    %61 = vector.load %arg10[%c0_74, %c0_75] : memref<64x192xf32, #tpu.memory_space<vmem>>, vector<64x192xf32>
    tpu.vector_store %arg10[%c0_74, %c0_75], %60 {strides = array<i32>} : memref<64x192xf32, #tpu.memory_space<vmem>>, vector<64x192xf32>,
    %c0_76 = arith.constant 0 : index
    %c8_77 = arith.constant 8 : index
    %c0_78 = arith.constant 0 : index
    %62 = vector.load %arg3[%c0_76, %c8_77, %c0_78] : memref<1x72x192xbf16, #tpu.memory_space<vmem>>, vector<1x64x192xbf16>
    %63 = vector.shape_cast %62 : vector<1x64x192xbf16> to vector<64x192xbf16>
    %c8_79 = arith.constant 8 : index
    %c0_80 = arith.constant 0 : index
    %c0_81 = arith.constant 0 : index
    %64 = vector.load %arg7[%c8_79, %c0_80, %c0_81] : memref<9x192x192xbf16, #tpu.memory_space<vmem>>, vector<1x192x192xbf16>
    %65 = vector.shape_cast %64 : vector<1x192x192xbf16> to vector<192x192xbf16>
    %cst_82 = arith.constant dense<0.000000e+00> : vector<64x192xf32>
    %66 = tpu.matmul %63, %65, %cst_82 {dimension_numbers = #tpu.dot_dimension_numbers<[1], [0], [0], [1], [0, 0, 1, 1], [], []>} : vector<64x192xbf16>, vector<192x192xbf16>, vector<64x192xf32> -> vector<64x192xf32>
    %c0_83 = arith.constant 0 : index
    %c0_84 = arith.constant 0 : index
    %67 = vector.load %arg10[%c0_83, %c0_84] : memref<64x192xf32, #tpu.memory_space<vmem>>, vector<64x192xf32>
    %68 = arith.addf %67, %66 : vector<64x192xf32>
    %c0_85 = arith.constant 0 : index
    %c0_86 = arith.constant 0 : index
    %69 = vector.load %arg10[%c0_85, %c0_86] : memref<64x192xf32, #tpu.memory_space<vmem>>, vector<64x192xf32>
    tpu.vector_store %arg10[%c0_85, %c0_86], %68 {strides = array<i32>} : memref<64x192xf32, #tpu.memory_space<vmem>>, vector<64x192xf32>,
    %c0_87 = arith.constant 0 : index
    %c0_88 = arith.constant 0 : index
    %70 = vector.load %arg10[%c0_87, %c0_88] : memref<64x192xf32, #tpu.memory_space<vmem>>, vector<64x192xf32>
    %c0_89 = arith.constant 0 : index
    %c0_90 = arith.constant 0 : index
    %71 = vector.load %arg8[%c0_89, %c0_90] : memref<1x192xf32, #tpu.memory_space<vmem>>, vector<1x192xf32>
    %72 = vector.broadcast %71 : vector<1x192xf32> to vector<64x192xf32>
    %73 = arith.addf %70, %72 : vector<64x192xf32>
    %cst_91 = arith.constant 0.000000e+00 : f32
    %74 = vector.broadcast %cst_91 : f32 to vector<64x192xf32>
    %75 = arith.maximumf %73, %74 : vector<64x192xf32>
    %c0_92 = arith.constant 0 : index
    %c0_93 = arith.constant 0 : index
    %c0_94 = arith.constant 0 : index
    %76 = vector.load %arg9[%c0_92, %c0_93, %c0_94] : memref<1x64x192xf32, #tpu.memory_space<vmem>>, vector<1x64x192xf32>
    %77 = vector.shape_cast %76 : vector<1x64x192xf32> to vector<64x192xf32>
    %78 = vector.shape_cast %75 : vector<64x192xf32> to vector<1x64x192xf32>
    tpu.vector_store %arg9[%c0_92, %c0_93, %c0_94], %78 {strides = array<i32>} : memref<1x64x192xf32, #tpu.memory_space<vmem>>, vector<1x64x192xf32>,
    return
  }
  func.func @transform_0(%arg0: i32) -> (i32, i32, i32) {
    %c0_i32 = arith.constant 0 : i32
    %c0_i32_0 = arith.constant 0 : i32
    %c0_i32_1 = arith.constant 0 : i32
    return %arg0, %c0_i32, %c0_i32_0 : i32, i32, i32
  }
  func.func @transform_1(%arg0: i32) -> (i32, i32, i32) {
    %c0_i32 = arith.constant 0 : i32
    %c0_i32_0 = arith.constant 0 : i32
    %c0_i32_1 = arith.constant 0 : i32
    return %arg0, %c0_i32, %c0_i32_0 : i32, i32, i32
  }
  func.func @transform_2(%arg0: i32) -> (i32, i32, i32) {
    %c0_i32 = arith.constant 0 : i32
    %c0_i32_0 = arith.constant 0 : i32
    %c0_i32_1 = arith.constant 0 : i32
    return %arg0, %c0_i32, %c0_i32_0 : i32, i32, i32
  }
  func.func @transform_3(%arg0: i32) -> (i32, i32, i32) {
    %c0_i32 = arith.constant 0 : i32
    %c0_i32_0 = arith.constant 0 : i32
    %c0_i32_1 = arith.constant 0 : i32
    return %arg0, %c0_i32, %c0_i32_0 : i32, i32, i32
  }
  func.func @transform_4(%arg0: i32) -> (i32, i32, i32) {
    %c0_i32 = arith.constant 0 : i32
    %c0_i32_0 = arith.constant 0 : i32
    %c0_i32_1 = arith.constant 0 : i32
    return %arg0, %c0_i32, %c0_i32_0 : i32, i32, i32
  }
  func.func @transform_5(%arg0: i32) -> (i32, i32, i32) {
    %c0_i32 = arith.constant 0 : i32
    %c0_i32_0 = arith.constant 0 : i32
    %c0_i32_1 = arith.constant 0 : i32
    return %arg0, %c0_i32, %c0_i32_0 : i32, i32, i32
  }
  func.func @transform_6(%arg0: i32) -> (i32, i32, i32) {
    %c0_i32 = arith.constant 0 : i32
    %c0_i32_0 = arith.constant 0 : i32
    %c0_i32_1 = arith.constant 0 : i32
    %c0_i32_2 = arith.constant 0 : i32
    return %c0_i32, %c0_i32_0, %c0_i32_1 : i32, i32, i32
  }
  func.func @transform_7(%arg0: i32) -> (i32, i32) {
    %c0_i32 = arith.constant 0 : i32
    %c0_i32_0 = arith.constant 0 : i32
    %c0_i32_1 = arith.constant 0 : i32
    return %c0_i32, %c0_i32_0 : i32, i32
  }
  func.func @transform_8(%arg0: i32) -> (i32, i32, i32) {
    %c0_i32 = arith.constant 0 : i32
    %c0_i32_0 = arith.constant 0 : i32
    %c0_i32_1 = arith.constant 0 : i32
    return %arg0, %c0_i32, %c0_i32_0 : i32, i32, i32
  }
}

</mosaic_0001>

<llo_original>
// kernel: incept_conv.1
$region0: #{incept_conv.1}
  #allocation0 [shape = 'u32[]', space=smem, size = 0x4, offset = 0x4, fixed_abs, tag = 'smem constant byte address 0x4 - core index']
  #allocation1 [shape = 'u32[144,128]{1,0:T(1,128)}', space=vmem, size = 0x12000, scoped, tag = 'internal scratch']
  #allocation2 [shape = 'f32[64,192]{1,0:T(8,128)}', space=vmem, size = 0x10000, scoped, tag = 'scratch operand']
  %s0 = inlined_call_operand.vmem [shape: bf16[2,72,192], index: 0, kind: input, shape index: {}]
  %s1 = inlined_call_operand.vmem [shape: bf16[2,72,192], index: 1, kind: input, shape index: {}]
  %s2 = inlined_call_operand.vmem [shape: bf16[2,72,192], index: 2, kind: input, shape index: {}]
  %s3 = inlined_call_operand.vmem [shape: bf16[2,64,192], index: 3, kind: input, shape index: {}]
  %s4 = inlined_call_operand.vmem [shape: bf16[2,64,192], index: 4, kind: input, shape index: {}]
  %s5 = inlined_call_operand.vmem [shape: bf16[2,64,192], index: 5, kind: input, shape index: {}]
  %s6 = inlined_call_operand.vmem [shape: bf16[9,192,192], index: 6, kind: input, shape index: {}]
  %s7 = inlined_call_operand.vmem [shape: f32[1,192], index: 7, kind: input, shape index: {}]
  %s8 = inlined_call_operand.hbm [shape: f32[2,64,192], index: 8, kind: output, shape index: {}]
  %s9 = sld [smem:[#allocation0]]
  $region65: #{incept_conv.1} parent=0
    _
  %s11 = ssub.s32 1, %s9
  %s12 = scalar_select 0, %s11, %s9
  $region1: #{incept_conv.1} parent=0
    #allocation3 [shape = 'u8[131072]{0}', space=vmem, size = 0x20000, scoped, tag = 'output window, operand 0']
    #allocation4 [shape = 's32[2]{0}', space=sflag, size = 0x8, scoped, tag = 'scoped memory for incept_conv.1']
    %13 = vsyncpa [#allocation4], 0
    %s14 = scalar_lea.sflag [#allocation4], 1
    %15 = vsyncpa %s14, 0
    loop: start=0, step=1, limit=4
    $region2: #{incept_conv.1} parent=1 // loop_pre_header
      _
    $region3: #{incept_conv.1} parent=1 // loop_header
      %s17 = sphi 0, %s21
      %p18 = scmp.ge.s32.totalorder %s17, 4
      %s27 = sphi 0, %s29
      %s30 = sphi 0, %s27
      %s31 = sphi 0, %s30
      %s47 = sphi 0, %s31
      %s53 = sphi 0, %s55
      %s56 = sphi 0, %s53
      %s57 = sphi 0, %s56
      %s73 = sphi 0, %s57
      %s79 = sphi 0, %s81
      %s82 = sphi 0, %s79
      %s83 = sphi 0, %s82
      %s99 = sphi 0, %s83
      %s105 = sphi 0, %s107
      %s108 = sphi 0, %s105
      %s109 = sphi 0, %s108
      %s125 = sphi 0, %s109
      %s131 = sphi 0, %s133
      %s134 = sphi 0, %s131
      %s135 = sphi 0, %s134
      %s151 = sphi 0, %s135
      %s157 = sphi 0, %s159
      %s160 = sphi 0, %s157
      %s161 = sphi 0, %s160
      %s177 = sphi 0, %s161
      %s181 = sphi 0, %s181
      %s183 = sphi 0, %s181
      %s184 = sphi 0, %s183
      %s198 = sphi 0, %s184
      %s202 = sphi 0, %s202
      %s204 = sphi 0, %s202
      %s205 = sphi 0, %s204
      %s219 = sphi 0, %s205
      %s225 = sphi 0, %s227
      %s228 = sphi 0, %s225
      %s229 = sphi 0, %s228
      %s245 = sphi 0, %s229
    $region4: #{incept_conv.1} parent=1 // loop_header_branch
      %20 = sbr.rel (%p18) target = $region8
    $region5: #{incept_conv.1} parent=1 // loop_body
      %s22 = ssub.s32 %s17, 1
      %s23 = ssub.s32 %s17, 2
      %s24 = sadd.s32 %s17, 1
      %s25 = ssub.s32 %s17, %s24
      %p26 = scmp.eq.s32.totalorder %s25, 0
      %s28 = sadd.s32 %s27, 1
      %s29 = scalar_select %p26, %s27, %s28
      %p32 = pneg %p26
      %p33 = scmp.eq.s32.totalorder %s17, 1
      %p34 = por %p32, %p33
      %p35 = scmp.ne.s32.totalorder %s27, %s30
      %p36 = scmp.eq.s32.totalorder %s17, 0
      %p37 = por %p35, %p36
      %p38 = scmp.ne.s32.totalorder %s27, %s30
      %p39 = scmp.eq.s32.totalorder %s22, 1
      %p40 = por %p38, %p39
      %p41 = scmp.ne.s32.totalorder %s30, %s31
      %p42 = scmp.eq.s32.totalorder %s22, 0
      %p43 = por %p41, %p42
      %p44 = scmp.ne.s32.totalorder %s30, %s31
      %p45 = scmp.eq.s32.totalorder %s23, 1
      %p46 = por %p44, %p45
      %p48 = scmp.ne.s32.totalorder %s31, %s47
      %p49 = scmp.eq.s32.totalorder %s23, 0
      %p50 = por %p48, %p49
      %s51 = ssub.s32 %s17, %s24
      %p52 = scmp.eq.s32.totalorder %s51, 0
      %s54 = sadd.s32 %s53, 1
      %s55 = scalar_select %p52, %s53, %s54
      %p58 = pneg %p52
      %p59 = scmp.eq.s32.totalorder %s17, 1
      %p60 = por %p58, %p59
      %p61 = scmp.ne.s32.totalorder %s53, %s56
      %p62 = scmp.eq.s32.totalorder %s17, 0
      %p63 = por %p61, %p62
      %p64 = scmp.ne.s32.totalorder %s53, %s56
      %p65 = scmp.eq.s32.totalorder %s22, 1
      %p66 = por %p64, %p65
      %p67 = scmp.ne.s32.totalorder %s56, %s57
      %p68 = scmp.eq.s32.totalorder %s22, 0
      %p69 = por %p67, %p68
      %p70 = scmp.ne.s32.totalorder %s56, %s57
      %p71 = scmp.eq.s32.totalorder %s23, 1
      %p72 = por %p70, %p71
      %p74 = scmp.ne.s32.totalorder %s57, %s73
      %p75 = scmp.eq.s32.totalorder %s23, 0
      %p76 = por %p74, %p75
      %s77 = ssub.s32 %s17, %s24
      %p78 = scmp.eq.s32.totalorder %s77, 0
      %s80 = sadd.s32 %s79, 1
      %s81 = scalar_select %p78, %s79, %s80
      %p84 = pneg %p78
      %p85 = scmp.eq.s32.totalorder %s17, 1
      %p86 = por %p84, %p85
      %p87 = scmp.ne.s32.totalorder %s79, %s82
      %p88 = scmp.eq.s32.totalorder %s17, 0
      %p89 = por %p87, %p88
      %p90 = scmp.ne.s32.totalorder %s79, %s82
      %p91 = scmp.eq.s32.totalorder %s22, 1
      %p92 = por %p90, %p91
      %p93 = scmp.ne.s32.totalorder %s82, %s83
      %p94 = scmp.eq.s32.totalorder %s22, 0
      %p95 = por %p93, %p94
      %p96 = scmp.ne.s32.totalorder %s82, %s83
      %p97 = scmp.eq.s32.totalorder %s23, 1
      %p98 = por %p96, %p97
      %p100 = scmp.ne.s32.totalorder %s83, %s99
      %p101 = scmp.eq.s32.totalorder %s23, 0
      %p102 = por %p100, %p101
      %s103 = ssub.s32 %s17, %s24
      %p104 = scmp.eq.s32.totalorder %s103, 0
      %s106 = sadd.s32 %s105, 1
      %s107 = scalar_select %p104, %s105, %s106
      %p110 = pneg %p104
      %p111 = scmp.eq.s32.totalorder %s17, 1
      %p112 = por %p110, %p111
      %p113 = scmp.ne.s32.totalorder %s105, %s108
      %p114 = scmp.eq.s32.totalorder %s17, 0
      %p115 = por %p113, %p114
      %p116 = scmp.ne.s32.totalorder %s105, %s108
      %p117 = scmp.eq.s32.totalorder %s22, 1
      %p118 = por %p116, %p117
      %p119 = scmp.ne.s32.totalorder %s108, %s109
      %p120 = scmp.eq.s32.totalorder %s22, 0
      %p121 = por %p119, %p120
      %p122 = scmp.ne.s32.totalorder %s108, %s109
      %p123 = scmp.eq.s32.totalorder %s23, 1
      %p124 = por %p122, %p123
      %p126 = scmp.ne.s32.totalorder %s109, %s125
      %p127 = scmp.eq.s32.totalorder %s23, 0
      %p128 = por %p126, %p127
      %s129 = ssub.s32 %s17, %s24
      %p130 = scmp.eq.s32.totalorder %s129, 0
      %s132 = sadd.s32 %s131, 1
      %s133 = scalar_select %p130, %s131, %s132
      %p136 = pneg %p130
      %p137 = scmp.eq.s32.totalorder %s17, 1
      %p138 = por %p136, %p137
      %p139 = scmp.ne.s32.totalorder %s131, %s134
      %p140 = scmp.eq.s32.totalorder %s17, 0
      %p141 = por %p139, %p140
      %p142 = scmp.ne.s32.totalorder %s131, %s134
      %p143 = scmp.eq.s32.totalorder %s22, 1
      %p144 = por %p142, %p143
      %p145 = scmp.ne.s32.totalorder %s134, %s135
      %p146 = scmp.eq.s32.totalorder %s22, 0
      %p147 = por %p145, %p146
      %p148 = scmp.ne.s32.totalorder %s134, %s135
      %p149 = scmp.eq.s32.totalorder %s23, 1
      %p150 = por %p148, %p149
      %p152 = scmp.ne.s32.totalorder %s135, %s151
      %p153 = scmp.eq.s32.totalorder %s23, 0
      %p154 = por %p152, %p153
      %s155 = ssub.s32 %s17, %s24
      %p156 = scmp.eq.s32.totalorder %s155, 0
      %s158 = sadd.s32 %s157, 1
      %s159 = scalar_select %p156, %s157, %s158
      %p162 = pneg %p156
      %p163 = scmp.eq.s32.totalorder %s17, 1
      %p164 = por %p162, %p163
      %p165 = scmp.ne.s32.totalorder %s157, %s160
      %p166 = scmp.eq.s32.totalorder %s17, 0
      %p167 = por %p165, %p166
      %p168 = scmp.ne.s32.totalorder %s157, %s160
      %p169 = scmp.eq.s32.totalorder %s22, 1
      %p170 = por %p168, %p169
      %p171 = scmp.ne.s32.totalorder %s160, %s161
      %p172 = scmp.eq.s32.totalorder %s22, 0
      %p173 = por %p171, %p172
      %p174 = scmp.ne.s32.totalorder %s160, %s161
      %p175 = scmp.eq.s32.totalorder %s23, 1
      %p176 = por %p174, %p175
      %p178 = scmp.ne.s32.totalorder %s161, %s177
      %p179 = scmp.eq.s32.totalorder %s23, 0
      %p180 = por %p178, %p179
      %s182 = sadd.s32 %s181, 1
      %p185 = scmp.eq.s32.totalorder %s17, 1
      %p186 = scmp.ne.s32.totalorder %s181, %s183
      %p187 = scmp.eq.s32.totalorder %s17, 0
      %p188 = por %p186, %p187
      %p189 = scmp.ne.s32.totalorder %s181, %s183
      %p190 = scmp.eq.s32.totalorder %s22, 1
      %p191 = por %p189, %p190
      %p192 = scmp.ne.s32.totalorder %s183, %s184
      %p193 = scmp.eq.s32.totalorder %s22, 0
      %p194 = por %p192, %p193
      %p195 = scmp.ne.s32.totalorder %s183, %s184
      %p196 = scmp.eq.s32.totalorder %s23, 1
      %p197 = por %p195, %p196
      %p199 = scmp.ne.s32.totalorder %s184, %s198
      %p200 = scmp.eq.s32.totalorder %s23, 0
      %p201 = por %p199, %p200
      %s203 = sadd.s32 %s202, 1
      %p206 = scmp.eq.s32.totalorder %s17, 1
      %p207 = scmp.ne.s32.totalorder %s202, %s204
      %p208 = scmp.eq.s32.totalorder %s17, 0
      %p209 = por %p207, %p208
      %p210 = scmp.ne.s32.totalorder %s202, %s204
      %p211 = scmp.eq.s32.totalorder %s22, 1
      %p212 = por %p210, %p211
      %p213 = scmp.ne.s32.totalorder %s204, %s205
      %p214 = scmp.eq.s32.totalorder %s22, 0
      %p215 = por %p213, %p214
      %p216 = scmp.ne.s32.totalorder %s204, %s205
      %p217 = scmp.eq.s32.totalorder %s23, 1
      %p218 = por %p216, %p217
      %p220 = scmp.ne.s32.totalorder %s205, %s219
      %p221 = scmp.eq.s32.totalorder %s23, 0
      %p222 = por %p220, %p221
      %s223 = ssub.s32 %s17, %s24
      %p224 = scmp.eq.s32.totalorder %s223, 0
      %s226 = sadd.s32 %s225, 1
      %s227 = scalar_select %p224, %s225, %s226
      %p230 = pneg %p224
      %p231 = scmp.eq.s32.totalorder %s17, 1
      %p232 = por %p230, %p231
      %p233 = scmp.ne.s32.totalorder %s225, %s228
      %p234 = scmp.eq.s32.totalorder %s17, 0
      %p235 = por %p233, %p234
      %p236 = scmp.ne.s32.totalorder %s225, %s228
      %p237 = scmp.eq.s32.totalorder %s22, 1
      %p238 = por %p236, %p237
      %p239 = scmp.ne.s32.totalorder %s228, %s229
      %p240 = scmp.eq.s32.totalorder %s22, 0
      %p241 = por %p239, %p240
      %p242 = scmp.ne.s32.totalorder %s228, %s229
      %p243 = scmp.eq.s32.totalorder %s23, 1
      %p244 = por %p242, %p243
      %p246 = scmp.ne.s32.totalorder %s229, %s245
      %p247 = scmp.eq.s32.totalorder %s23, 0
      %p248 = por %p246, %p247
      %p249 = scmp.le.s32.totalorder 1, %s17
      %p250 = scmp.lt.s32.totalorder %s17, 3
      %p251 = pnand %p249, %p250
      %p252 = pneg %p251
      // Predicated region
      $region9: #{incept_conv.1} parent=5 // pred_check
        _
      $region10: #{incept_conv.1} parent=5 // pred_check_branch
        %254 = sbr.rel (%p251) target = $region12
      $region11: #{incept_conv.1} parent=5 // pred_region
        %s255 = ssub.s32 %s17, 1
        // Predicated region
        $region13: #{incept_conv.1} parent=11 // pred_check
          %p256 = pneg %p194
        $region14: #{incept_conv.1} parent=11 // pred_check_branch
          %258 = sbr.rel (%p256) target = $region16
        $region15: #{incept_conv.1} parent=11 // pred_region
          _
        $region16: #{incept_conv.1} parent=11 // pred_fallthru
          _
        // Predicated region
        $region17: #{incept_conv.1} parent=11 // pred_check
          %p259 = pneg %p215
        $region18: #{incept_conv.1} parent=11 // pred_check_branch
          %261 = sbr.rel (%p259) target = $region20
        $region19: #{incept_conv.1} parent=11 // pred_region
          _
        $region20: #{incept_conv.1} parent=11 // pred_fallthru
          _
      $region12: #{incept_conv.1} parent=5 // pred_fallthru
        _
      %p262 = scmp.lt.s32.totalorder %s17, 2
      // Predicated region
      $region21: #{incept_conv.1} parent=5 // pred_check
        %p263 = pneg %p262
      $region22: #{incept_conv.1} parent=5 // pred_check_branch
        %265 = sbr.rel (%p263) target = $region24
      $region23: #{incept_conv.1} parent=5 // pred_region
        // Predicated region
        $region25: #{incept_conv.1} parent=23 // pred_check
          %p266 = pneg %p37
        $region26: #{incept_conv.1} parent=23 // pred_check_branch
          %268 = sbr.rel (%p266) target = $region28
        $region27: #{incept_conv.1} parent=23 // pred_region
          %p269 = scmp.lt.s32.totalorder %s17, 1
          %s270 = scalar_select %p269, %s17, 1
          %s271 = smul.addr %s270, 18
          %s272 = smul.addr %s271, 4
          %s273 = scalar_lea.vmem %s0, %s272
        $region28: #{incept_conv.1} parent=23 // pred_fallthru
          _
        // Predicated region
        $region29: #{incept_conv.1} parent=23 // pred_check
          %p274 = pneg %p63
        $region30: #{incept_conv.1} parent=23 // pred_check_branch
          %276 = sbr.rel (%p274) target = $region32
        $region31: #{incept_conv.1} parent=23 // pred_region
          %p277 = scmp.lt.s32.totalorder %s17, 1
          %s278 = scalar_select %p277, %s17, 1
          %s279 = smul.addr %s278, 18
          %s280 = smul.addr %s279, 4
          %s281 = scalar_lea.vmem %s1, %s280
        $region32: #{incept_conv.1} parent=23 // pred_fallthru
          _
        // Predicated region
        $region33: #{incept_conv.1} parent=23 // pred_check
          %p282 = pneg %p89
        $region34: #{incept_conv.1} parent=23 // pred_check_branch
          %284 = sbr.rel (%p282) target = $region36
        $region35: #{incept_conv.1} parent=23 // pred_region
          %p285 = scmp.lt.s32.totalorder %s17, 1
          %s286 = scalar_select %p285, %s17, 1
          %s287 = smul.addr %s286, 18
          %s288 = smul.addr %s287, 4
          %s289 = scalar_lea.vmem %s2, %s288
        $region36: #{incept_conv.1} parent=23 // pred_fallthru
          _
        // Predicated region
        $region37: #{incept_conv.1} parent=23 // pred_check
          %p290 = pneg %p115
        $region38: #{incept_conv.1} parent=23 // pred_check_branch
          %292 = sbr.rel (%p290) target = $region40
        $region39: #{incept_conv.1} parent=23 // pred_region
          %p293 = scmp.lt.s32.totalorder %s17, 1
          %s294 = scalar_select %p293, %s17, 1
          %s295 = smul.addr %s294, 16
          %s296 = smul.addr %s295, 4
          %s297 = scalar_lea.vmem %s3, %s296
        $region40: #{incept_conv.1} parent=23 // pred_fallthru
          _
        // Predicated region
        $region41: #{incept_conv.1} parent=23 // pred_check
          %p298 = pneg %p141
        $region42: #{incept_conv.1} parent=23 // pred_check_branch
          %300 = sbr.rel (%p298) target = $region44
        $region43: #{incept_conv.1} parent=23 // pred_region
          %p301 = scmp.lt.s32.totalorder %s17, 1
          %s302 = scalar_select %p301, %s17, 1
          %s303 = smul.addr %s302, 16
          %s304 = smul.addr %s303, 4
          %s305 = scalar_lea.vmem %s4, %s304
        $region44: #{incept_conv.1} parent=23 // pred_fallthru
          _
        // Predicated region
        $region45: #{incept_conv.1} parent=23 // pred_check
          %p306 = pneg %p167
        $region46: #{incept_conv.1} parent=23 // pred_check_branch
          %308 = sbr.rel (%p306) target = $region48
        $region47: #{incept_conv.1} parent=23 // pred_region
          %p309 = scmp.lt.s32.totalorder %s17, 1
          %s310 = scalar_select %p309, %s17, 1
          %s311 = smul.addr %s310, 16
          %s312 = smul.addr %s311, 4
          %s313 = scalar_lea.vmem %s5, %s312
        $region48: #{incept_conv.1} parent=23 // pred_fallthru
          _
      $region24: #{incept_conv.1} parent=5 // pred_fallthru
        _
      %p314 = scmp.le.s32.totalorder 1, %s17
      %p315 = scmp.lt.s32.totalorder %s17, 3
      %p316 = pnand %p314, %p315
      %p317 = pneg %p316
      // Predicated region
      $region49: #{incept_conv.1} parent=5 // pred_check
        _
      $region50: #{incept_conv.1} parent=5 // pred_check_branch
        %319 = sbr.rel (%p316) target = $region52
      $region51: #{incept_conv.1} parent=5 // pred_region
        %s320 = ssub.s32 %s17, 1
        %p321 = scmp.lt.s32.totalorder %s22, 1
        %s322 = scalar_select %p321, %s22, 1
        %s323 = smul.addr %s322, 18
        %s324 = smul.addr %s323, 4
        %s325 = scalar_lea.vmem %s0, %s324
        %p326 = pneg %p43
        %p327 = pneg %p40
        %p328 = scmp.lt.s32.totalorder %s22, 1
        %s329 = scalar_select %p328, %s22, 1
        %s330 = smul.addr %s329, 18
        %s331 = smul.addr %s330, 4
        %s332 = scalar_lea.vmem %s1, %s331
        %p333 = pneg %p69
        %p334 = pneg %p66
        %p335 = scmp.lt.s32.totalorder %s22, 1
        %s336 = scalar_select %p335, %s22, 1
        %s337 = smul.addr %s336, 18
        %s338 = smul.addr %s337, 4
        %s339 = scalar_lea.vmem %s2, %s338
        %p340 = pneg %p95
        %p341 = pneg %p92
        %p342 = scmp.lt.s32.totalorder %s22, 1
        %s343 = scalar_select %p342, %s22, 1
        %s344 = smul.addr %s343, 16
        %s345 = smul.addr %s344, 4
        %s346 = scalar_lea.vmem %s3, %s345
        %p347 = pneg %p121
        %p348 = pneg %p118
        %p349 = scmp.lt.s32.totalorder %s22, 1
        %s350 = scalar_select %p349, %s22, 1
        %s351 = smul.addr %s350, 16
        %s352 = smul.addr %s351, 4
        %s353 = scalar_lea.vmem %s4, %s352
        %p354 = pneg %p147
        %p355 = pneg %p144
        %p356 = scmp.lt.s32.totalorder %s22, 1
        %s357 = scalar_select %p356, %s22, 1
        %s358 = smul.addr %s357, 16
        %s359 = smul.addr %s358, 4
        %s360 = scalar_lea.vmem %s5, %s359
        %p361 = pneg %p173
        %p362 = pneg %p170
        %p363 = pneg %p194
        %p364 = pneg %p191
        %p365 = pneg %p215
        %p366 = pneg %p212
        %p367 = pneg %p241
        %p368 = pneg %p238
        %s369 = sand.u32 %s228, 1
        %s370 = scalar_lea.sflag [#allocation4], %s369
        %s371 = sand.u32 %s228, 1
        %s372 = smul.addr %s371, 128
        %s373 = scalar_lea.vmem [#allocation3], %s372
        %p374 = scmp.lt.s32.totalorder %s22, 1
        %s375 = scalar_select %p374, %s22, 1
        %s376 = smul.addr %s375, 18
        %s377 = smul.addr %s376, 4
        %s378 = scalar_lea.vmem %s0, %s377
        %p379 = scmp.lt.s32.totalorder %s22, 1
        %s380 = scalar_select %p379, %s22, 1
        %s381 = smul.addr %s380, 18
        %s382 = smul.addr %s381, 4
        %s383 = scalar_lea.vmem %s1, %s382
        %p384 = scmp.lt.s32.totalorder %s22, 1
        %s385 = scalar_select %p384, %s22, 1
        %s386 = smul.addr %s385, 18
        %s387 = smul.addr %s386, 4
        %s388 = scalar_lea.vmem %s2, %s387
        %p389 = scmp.lt.s32.totalorder %s22, 1
        %s390 = scalar_select %p389, %s22, 1
        %s391 = smul.addr %s390, 16
        %s392 = smul.addr %s391, 4
        %s393 = scalar_lea.vmem %s3, %s392
        %p394 = scmp.lt.s32.totalorder %s22, 1
        %s395 = scalar_select %p394, %s22, 1
        %s396 = smul.addr %s395, 16
        %s397 = smul.addr %s396, 4
        %s398 = scalar_lea.vmem %s4, %s397
        %p399 = scmp.lt.s32.totalorder %s22, 1
        %s400 = scalar_select %p399, %s22, 1
        %s401 = smul.addr %s400, 16
        %s402 = smul.addr %s401, 4
        %s403 = scalar_lea.vmem %s5, %s402
        %v405 = vld [vmem:[%s378] sm:$0xff]
        %v406 = vld [vmem:[%s378 + $0x8] sm:$0xff]
        %v407 = vld [vmem:[%s378 + $0x10] sm:$0xff]
        %v408 = vld [vmem:[%s378 + $0x18] sm:$0xff]
        %v409 = vld [vmem:[%s378 + $0x20] sm:$0xff]
        %v410 = vld [vmem:[%s378 + $0x28] sm:$0xff]
        %v411 = vld [vmem:[%s378 + $0x30] sm:$0xff]
        %v412 = vld [vmem:[%s378 + $0x38] sm:$0xff]
        %v413 = vld [vmem:[%s6] sm:$0xff]
        %v414 = vld [vmem:[%s6 + $0x8] sm:$0xff]
        %v415 = vld [vmem:[%s6 + $0x10] sm:$0xff]
        %v416 = vld [vmem:[%s6 + $0x18] sm:$0xff]
        %v417 = vld [vmem:[%s6 + $0x20] sm:$0xff]
        %v418 = vld [vmem:[%s6 + $0x28] sm:$0xff]
        %v419 = vld [vmem:[%s6 + $0x30] sm:$0xff]
        %v420 = vld [vmem:[%s6 + $0x38] sm:$0xff]
        %v421 = vld [vmem:[%s6 + $0x40] sm:$0xff]
        %v422 = vld [vmem:[%s6 + $0x48] sm:$0xff]
        %v423 = vld [vmem:[%s6 + $0x50] sm:$0xff]
        %v424 = vld [vmem:[%s6 + $0x58] sm:$0xff]
        %v425 = vld [vmem:[%s6 + $0x60] sm:$0xff]
        %v426 = vld [vmem:[%s6 + $0x68] sm:$0xff]
        %v427 = vld [vmem:[%s6 + $0x70] sm:$0xff]
        %v428 = vld [vmem:[%s6 + $0x78] sm:$0xff]
        %v429 = vld [vmem:[%s6 + $0x80] sm:$0xff]
        %v430 = vld [vmem:[%s6 + $0x88] sm:$0xff]
        %v431 = vld [vmem:[%s6 + $0x90] sm:$0xff]
        %v432 = vld [vmem:[%s6 + $0x98] sm:$0xff]
        %v433 = vld [vmem:[%s6 + $0xa0] sm:$0xff]
        %v434 = vld [vmem:[%s6 + $0xa8] sm:$0xff]
        %v435 = vld [vmem:[%s6 + $0xb0] sm:$0xff]
        %v436 = vld [vmem:[%s6 + $0xb8] sm:$0xff]
        %v445 = vunpack.c.l.b16 %v405
        %v446 = vunpack.c.h.b16 %v405
        %v447 = vunpack.c.l.b16 %v406
        %v448 = vunpack.c.h.b16 %v406
        %v449 = vunpack.c.l.b16 %v407
        %v450 = vunpack.c.h.b16 %v407
        %v451 = vunpack.c.l.b16 %v408
        %v452 = vunpack.c.h.b16 %v408
        %v453 = vunpack.c.l.b16 %v409
        %v454 = vunpack.c.h.b16 %v409
        %v455 = vunpack.c.l.b16 %v410
        %v456 = vunpack.c.h.b16 %v410
        %v457 = vunpack.c.l.b16 %v411
        %v458 = vunpack.c.h.b16 %v411
        %v459 = vunpack.c.l.b16 %v412
        %v460 = vunpack.c.h.b16 %v412
        %v461 = vpack.c.b16 %v447, %v445
        %v462 = vpack.c.b16 %v448, %v446
        %v463 = vpack.c.b16 %v451, %v449
        %v464 = vpack.c.b16 %v452, %v450
        %v465 = vpack.c.b16 %v455, %v453
        %v466 = vpack.c.b16 %v456, %v454
        %v467 = vpack.c.b16 %v459, %v457
        %v468 = vpack.c.b16 %v460, %v458
        %v497 = vunpack.c.l.b16 %v413
        %v498 = vunpack.c.h.b16 %v413
        %v499 = vunpack.c.l.b16 %v414
        %v500 = vunpack.c.h.b16 %v414
        %v501 = vunpack.c.l.b16 %v415
        %v502 = vunpack.c.h.b16 %v415
        %v503 = vunpack.c.l.b16 %v416
        %v504 = vunpack.c.h.b16 %v416
        %v505 = vunpack.c.l.b16 %v417
        %v506 = vunpack.c.h.b16 %v417
        %v507 = vunpack.c.l.b16 %v418
        %v508 = vunpack.c.h.b16 %v418
        %v509 = vunpack.c.l.b16 %v419
        %v510 = vunpack.c.h.b16 %v419
        %v511 = vunpack.c.l.b16 %v420
        %v512 = vunpack.c.h.b16 %v420
        %v513 = vunpack.c.l.b16 %v421
        %v514 = vunpack.c.h.b16 %v421
        %v515 = vunpack.c.l.b16 %v422
        %v516 = vunpack.c.h.b16 %v422
        %v517 = vunpack.c.l.b16 %v423
        %v518 = vunpack.c.h.b16 %v423
        %v519 = vunpack.c.l.b16 %v424
        %v520 = vunpack.c.h.b16 %v424
        %v521 = vunpack.c.l.b16 %v425
        %v522 = vunpack.c.h.b16 %v425
        %v523 = vunpack.c.l.b16 %v426
        %v524 = vunpack.c.h.b16 %v426
        %v525 = vunpack.c.l.b16 %v427
        %v526 = vunpack.c.h.b16 %v427
        %v527 = vunpack.c.l.b16 %v428
        %v528 = vunpack.c.h.b16 %v428
        %v529 = vunpack.c.l.b16 %v429
        %v530 = vunpack.c.h.b16 %v429
        %v531 = vunpack.c.l.b16 %v430
        %v532 = vunpack.c.h.b16 %v430
        %v533 = vunpack.c.l.b16 %v431
        %v534 = vunpack.c.h.b16 %v431
        %v535 = vunpack.c.l.b16 %v432
        %v536 = vunpack.c.h.b16 %v432
        %v537 = vunpack.c.l.b16 %v433
        %v538 = vunpack.c.h.b16 %v433
        %v539 = vunpack.c.l.b16 %v434
        %v540 = vunpack.c.h.b16 %v434
        %v541 = vunpack.c.l.b16 %v435
        %v542 = vunpack.c.h.b16 %v435
        %v543 = vunpack.c.l.b16 %v436
        %v544 = vunpack.c.h.b16 %v436
        %v545 = vpack.c.b16 %v499, %v497
        %v546 = vpack.c.b16 %v500, %v498
        %v547 = vpack.c.b16 %v503, %v501
        %v548 = vpack.c.b16 %v504, %v502
        %v549 = vpack.c.b16 %v507, %v505
        %v550 = vpack.c.b16 %v508, %v506
        %v551 = vpack.c.b16 %v511, %v509
        %v552 = vpack.c.b16 %v512, %v510
        %v553 = vpack.c.b16 %v515, %v513
        %v554 = vpack.c.b16 %v516, %v514
        %v555 = vpack.c.b16 %v519, %v517
        %v556 = vpack.c.b16 %v520, %v518
        %v557 = vpack.c.b16 %v523, %v521
        %v558 = vpack.c.b16 %v524, %v522
        %v559 = vpack.c.b16 %v527, %v525
        %v560 = vpack.c.b16 %v528, %v526
        %v561 = vpack.c.b16 %v531, %v529
        %v562 = vpack.c.b16 %v532, %v530
        %v563 = vpack.c.b16 %v535, %v533
        %v564 = vpack.c.b16 %v536, %v534
        %v565 = vpack.c.b16 %v539, %v537
        %v566 = vpack.c.b16 %v540, %v538
        %v567 = vpack.c.b16 %v543, %v541
        %v568 = vpack.c.b16 %v544, %v542
        %vm593 = vcmask 523264
        %v595 = vsel %vm593, %v462, 0
        %v598 = vsel %vm593, %v464, 0
        %v601 = vsel %vm593, %v466, 0
        %v604 = vsel %vm593, %v468, 0
        %606 = vmatprep.subr.bf16.mxu0 %v546
        %607 = vmatpush1.bf16.msra.mxu0 %v545
        %608 = vmatprep.subr.bf16.mxu0 %v548
        %609 = vmatpush1.bf16.msra.mxu0 %v547
        %610 = vmatprep.subr.bf16.mxu0 %v550
        %611 = vmatpush1.bf16.msra.mxu0 %v549
        %612 = vmatprep.subr.bf16.mxu0 %v552
        %613 = vmatpush1.bf16.msra.mxu0 %v551
        %614 = vmatprep.subr.bf16.mxu0 %v554
        %615 = vmatpush1.bf16.msra.mxu0 %v553
        %616 = vmatprep.subr.bf16.mxu0 %v556
        %617 = vmatpush1.bf16.msra.mxu0 %v555
        %618 = vmatprep.subr.bf16.mxu0 %v558
        %619 = vmatpush1.bf16.msra.mxu0 %v557
        %620 = vmatprep.subr.bf16.mxu0 %v560
        %621 = vmatpush1.bf16.msra.mxu0 %v559
        %622 = vmatprep.subr.bf16.mxu0 %v562
        %623 = vmatpush1.bf16.msra.mxu0 %v561
        %624 = vmatprep.subr.bf16.mxu0 %v564
        %625 = vmatpush1.bf16.msra.mxu0 %v563
        %626 = vmatprep.subr.bf16.mxu0 %v566
        %627 = vmatpush1.bf16.msra.mxu0 %v565
        %628 = vmatprep.subr.bf16.mxu0 %v568
        %629 = vmatpush1.bf16.msra.mxu0 %v567
        %630 = vmatprep.subr.bf16.mxu0 0
        %631 = vmatpush1.bf16.msra.mxu0 0
        %632 = vmatprep.subr.bf16.mxu0 0
        %633 = vmatpush1.bf16.msra.mxu0 0
        %634 = vmatprep.subr.bf16.mxu0 0
        %635 = vmatpush1.bf16.msra.mxu0 0
        %636 = vmatprep.subr.bf16.mxu0 0
        %637 = vmatpush1.bf16.msra.mxu0 0
        %638 = vmatprep.mubr.bf16.mxu0 %v595
        %639 = vmatmul.mubr.bf16.gmra.mrb[0].mxu0 %v461
        %v640 = vpop.f32.mrb[0].mxu0
        %v641 = vadd.f32 0.0, %v640
        %v642 = vpop.f32.mrb[0].mxu0
        %v643 = vadd.f32 0.0, %v642
        %v644 = vpop.f32.mrb[0].mxu0
        %v645 = vadd.f32 0.0, %v644
        %v646 = vpop.f32.mrb[0].mxu0
        %v647 = vadd.f32 0.0, %v646
        %648 = vmatprep.mubr.bf16.mxu0 %v598
        %649 = vmatmul.mubr.bf16.gmra.mrb[0].mxu0 %v463
        %v650 = vpop.f32.mrb[0].mxu0
        %v651 = vadd.f32 0.0, %v650
        %v652 = vpop.f32.mrb[0].mxu0
        %v653 = vadd.f32 0.0, %v652
        %v654 = vpop.f32.mrb[0].mxu0
        %v655 = vadd.f32 0.0, %v654
        %v656 = vpop.f32.mrb[0].mxu0
        %v657 = vadd.f32 0.0, %v656
        %658 = vmatprep.mubr.bf16.mxu0 %v601
        %659 = vmatmul.mubr.bf16.gmra.mrb[0].mxu0 %v465
        %v660 = vpop.f32.mrb[0].mxu0
        %v661 = vadd.f32 0.0, %v660
        %v662 = vpop.f32.mrb[0].mxu0
        %v663 = vadd.f32 0.0, %v662
        %v664 = vpop.f32.mrb[0].mxu0
        %v665 = vadd.f32 0.0, %v664
        %v666 = vpop.f32.mrb[0].mxu0
        %v667 = vadd.f32 0.0, %v666
        %668 = vmatprep.mubr.bf16.mxu0 %v604
        %669 = vmatmul.mubr.bf16.gmra.mrb[0].mxu0 %v467
        %v670 = vpop.f32.mrb[0].mxu0
        %v671 = vadd.f32 0.0, %v670
        %v672 = vpop.f32.mrb[0].mxu0
        %v673 = vadd.f32 0.0, %v672
        %v674 = vpop.f32.mrb[0].mxu0
        %v675 = vadd.f32 0.0, %v674
        %v676 = vpop.f32.mrb[0].mxu0
        %v677 = vadd.f32 0.0, %v676
        %678 = vdwg.mxu0
        %679 = vst [vmem:[#allocation2] sm:$0xff] %v641
        %680 = vst.msk [vmem:[#allocation2 + $0x8] sm:$0xff] %vm593, %v643
        %681 = vst [vmem:[#allocation2 + $0x10] sm:$0xff] %v645
        %682 = vst.msk [vmem:[#allocation2 + $0x18] sm:$0xff] %vm593, %v647
        %683 = vst [vmem:[#allocation2 + $0x20] sm:$0xff] %v651
        %684 = vst.msk [vmem:[#allocation2 + $0x28] sm:$0xff] %vm593, %v653
        %685 = vst [vmem:[#allocation2 + $0x30] sm:$0xff] %v655
        %686 = vst.msk [vmem:[#allocation2 + $0x38] sm:$0xff] %vm593, %v657
        %687 = vst [vmem:[#allocation2 + $0x40] sm:$0xff] %v661
        %688 = vst.msk [vmem:[#allocation2 + $0x48] sm:$0xff] %vm593, %v663
        %689 = vst [vmem:[#allocation2 + $0x50] sm:$0xff] %v665
        %690 = vst.msk [vmem:[#allocation2 + $0x58] sm:$0xff] %vm593, %v667
        %691 = vst [vmem:[#allocation2 + $0x60] sm:$0xff] %v671
        %692 = vst.msk [vmem:[#allocation2 + $0x68] sm:$0xff] %vm593, %v673
        %693 = vst [vmem:[#allocation2 + $0x70] sm:$0xff] %v675
        %694 = vst.msk [vmem:[#allocation2 + $0x78] sm:$0xff] %vm593, %v677
        %v695 = vld [vmem:[%s383] sm:$0xff]
        %v696 = vld [vmem:[%s383 + $0x8] sm:$0xff]
        %v697 = vld [vmem:[%s383 + $0x10] sm:$0xff]
        %v698 = vld [vmem:[%s383 + $0x18] sm:$0xff]
        %v699 = vld [vmem:[%s383 + $0x20] sm:$0xff]
        %v700 = vld [vmem:[%s383 + $0x28] sm:$0xff]
        %v701 = vld [vmem:[%s383 + $0x30] sm:$0xff]
        %v702 = vld [vmem:[%s383 + $0x38] sm:$0xff]
        %s703 = scalar_lea.vmem %s6, 192
        %v704 = vld [vmem:[%s703] sm:$0xff]
        %v705 = vld [vmem:[%s703 + $0x8] sm:$0xff]
        %v706 = vld [vmem:[%s703 + $0x10] sm:$0xff]
        %v707 = vld [vmem:[%s703 + $0x18] sm:$0xff]
        %v708 = vld [vmem:[%s703 + $0x20] sm:$0xff]
        %v709 = vld [vmem:[%s703 + $0x28] sm:$0xff]
        %v710 = vld [vmem:[%s703 + $0x30] sm:$0xff]
        %v711 = vld [vmem:[%s703 + $0x38] sm:$0xff]
        %v712 = vld [vmem:[%s703 + $0x40] sm:$0xff]
        %v713 = vld [vmem:[%s703 + $0x48] sm:$0xff]
        %v714 = vld [vmem:[%s703 + $0x50] sm:$0xff]
        %v715 = vld [vmem:[%s703 + $0x58] sm:$0xff]
        %v716 = vld [vmem:[%s703 + $0x60] sm:$0xff]
        %v717 = vld [vmem:[%s703 + $0x68] sm:$0xff]
        %v718 = vld [vmem:[%s703 + $0x70] sm:$0xff]
        %v719 = vld [vmem:[%s703 + $0x78] sm:$0xff]
        %v720 = vld [vmem:[%s703 + $0x80] sm:$0xff]
        %v721 = vld [vmem:[%s703 + $0x88] sm:$0xff]
        %v722 = vld [vmem:[%s703 + $0x90] sm:$0xff]
        %v723 = vld [vmem:[%s703 + $0x98] sm:$0xff]
        %v724 = vld [vmem:[%s703 + $0xa0] sm:$0xff]
        %v725 = vld [vmem:[%s703 + $0xa8] sm:$0xff]
        %v726 = vld [vmem:[%s703 + $0xb0] sm:$0xff]
        %v727 = vld [vmem:[%s703 + $0xb8] sm:$0xff]
        %v736 = vunpack.c.l.b16 %v695
        %v737 = vunpack.c.h.b16 %v695
        %v738 = vunpack.c.l.b16 %v696
        %v739 = vunpack.c.h.b16 %v696
        %v740 = vunpack.c.l.b16 %v697
        %v741 = vunpack.c.h.b16 %v697
        %v742 = vunpack.c.l.b16 %v698
        %v743 = vunpack.c.h.b16 %v698
        %v744 = vunpack.c.l.b16 %v699
        %v745 = vunpack.c.h.b16 %v699
        %v746 = vunpack.c.l.b16 %v700
        %v747 = vunpack.c.h.b16 %v700
        %v748 = vunpack.c.l.b16 %v701
        %v749 = vunpack.c.h.b16 %v701
        %v750 = vunpack.c.l.b16 %v702
        %v751 = vunpack.c.h.b16 %v702
        %v752 = vpack.c.b16 %v738, %v736
        %v753 = vpack.c.b16 %v739, %v737
        %v754 = vpack.c.b16 %v742, %v740
        %v755 = vpack.c.b16 %v743, %v741
        %v756 = vpack.c.b16 %v746, %v744
        %v757 = vpack.c.b16 %v747, %v745
        %v758 = vpack.c.b16 %v750, %v748
        %v759 = vpack.c.b16 %v751, %v749
        %v788 = vunpack.c.l.b16 %v704
        %v789 = vunpack.c.h.b16 %v704
        %v790 = vunpack.c.l.b16 %v705
        %v791 = vunpack.c.h.b16 %v705
        %v792 = vunpack.c.l.b16 %v706
        %v793 = vunpack.c.h.b16 %v706
        %v794 = vunpack.c.l.b16 %v707
        %v795 = vunpack.c.h.b16 %v707
        %v796 = vunpack.c.l.b16 %v708
        %v797 = vunpack.c.h.b16 %v708
        %v798 = vunpack.c.l.b16 %v709
        %v799 = vunpack.c.h.b16 %v709
        %v800 = vunpack.c.l.b16 %v710
        %v801 = vunpack.c.h.b16 %v710
        %v802 = vunpack.c.l.b16 %v711
        %v803 = vunpack.c.h.b16 %v711
        %v804 = vunpack.c.l.b16 %v712
        %v805 = vunpack.c.h.b16 %v712
        %v806 = vunpack.c.l.b16 %v713
        %v807 = vunpack.c.h.b16 %v713
        %v808 = vunpack.c.l.b16 %v714
        %v809 = vunpack.c.h.b16 %v714
        %v810 = vunpack.c.l.b16 %v715
        %v811 = vunpack.c.h.b16 %v715
        %v812 = vunpack.c.l.b16 %v716
        %v813 = vunpack.c.h.b16 %v716
        %v814 = vunpack.c.l.b16 %v717
        %v815 = vunpack.c.h.b16 %v717
        %v816 = vunpack.c.l.b16 %v718
        %v817 = vunpack.c.h.b16 %v718
        %v818 = vunpack.c.l.b16 %v719
        %v819 = vunpack.c.h.b16 %v719
        %v820 = vunpack.c.l.b16 %v720
        %v821 = vunpack.c.h.b16 %v720
        %v822 = vunpack.c.l.b16 %v721
        %v823 = vunpack.c.h.b16 %v721
        %v824 = vunpack.c.l.b16 %v722
        %v825 = vunpack.c.h.b16 %v722
        %v826 = vunpack.c.l.b16 %v723
        %v827 = vunpack.c.h.b16 %v723
        %v828 = vunpack.c.l.b16 %v724
        %v829 = vunpack.c.h.b16 %v724
        %v830 = vunpack.c.l.b16 %v725
        %v831 = vunpack.c.h.b16 %v725
        %v832 = vunpack.c.l.b16 %v726
        %v833 = vunpack.c.h.b16 %v726
        %v834 = vunpack.c.l.b16 %v727
        %v835 = vunpack.c.h.b16 %v727
        %v836 = vpack.c.b16 %v790, %v788
        %v837 = vpack.c.b16 %v791, %v789
        %v838 = vpack.c.b16 %v794, %v792
        %v839 = vpack.c.b16 %v795, %v793
        %v840 = vpack.c.b16 %v798, %v796
        %v841 = vpack.c.b16 %v799, %v797
        %v842 = vpack.c.b16 %v802, %v800
        %v843 = vpack.c.b16 %v803, %v801
        %v844 = vpack.c.b16 %v806, %v804
        %v845 = vpack.c.b16 %v807, %v805
        %v846 = vpack.c.b16 %v810, %v808
        %v847 = vpack.c.b16 %v811, %v809
        %v848 = vpack.c.b16 %v814, %v812
        %v849 = vpack.c.b16 %v815, %v813
        %v850 = vpack.c.b16 %v818, %v816
        %v851 = vpack.c.b16 %v819, %v817
        %v852 = vpack.c.b16 %v822, %v820
        %v853 = vpack.c.b16 %v823, %v821
        %v854 = vpack.c.b16 %v826, %v824
        %v855 = vpack.c.b16 %v827, %v825
        %v856 = vpack.c.b16 %v830, %v828
        %v857 = vpack.c.b16 %v831, %v829
        %v858 = vpack.c.b16 %v834, %v832
        %v859 = vpack.c.b16 %v835, %v833
        %v885 = vsel %vm593, %v753, 0
        %v888 = vsel %vm593, %v755, 0
        %v891 = vsel %vm593, %v757, 0
        %v894 = vsel %vm593, %v759, 0
        %896 = vmatprep.subr.bf16.mxu0 %v837
        %897 = vmatpush1.bf16.msra.mxu0 %v836
        %898 = vmatprep.subr.bf16.mxu0 %v839
        %899 = vmatpush1.bf16.msra.mxu0 %v838
        %900 = vmatprep.subr.bf16.mxu0 %v841
        %901 = vmatpush1.bf16.msra.mxu0 %v840
        %902 = vmatprep.subr.bf16.mxu0 %v843
        %903 = vmatpush1.bf16.msra.mxu0 %v842
        %904 = vmatprep.subr.bf16.mxu0 %v845
        %905 = vmatpush1.bf16.msra.mxu0 %v844
        %906 = vmatprep.subr.bf16.mxu0 %v847
        %907 = vmatpush1.bf16.msra.mxu0 %v846
        %908 = vmatprep.subr.bf16.mxu0 %v849
        %909 = vmatpush1.bf16.msra.mxu0 %v848
        %910 = vmatprep.subr.bf16.mxu0 %v851
        %911 = vmatpush1.bf16.msra.mxu0 %v850
        %912 = vmatprep.subr.bf16.mxu0 %v853
        %913 = vmatpush1.bf16.msra.mxu0 %v852
        %914 = vmatprep.subr.bf16.mxu0 %v855
        %915 = vmatpush1.bf16.msra.mxu0 %v854
        %916 = vmatprep.subr.bf16.mxu0 %v857
        %917 = vmatpush1.bf16.msra.mxu0 %v856
        %918 = vmatprep.subr.bf16.mxu0 %v859
        %919 = vmatpush1.bf16.msra.mxu0 %v858
        %920 = vmatprep.subr.bf16.mxu0 0
        %921 = vmatpush1.bf16.msra.mxu0 0
        %922 = vmatprep.subr.bf16.mxu0 0
        %923 = vmatpush1.bf16.msra.mxu0 0
        %924 = vmatprep.subr.bf16.mxu0 0
        %925 = vmatpush1.bf16.msra.mxu0 0
        %926 = vmatprep.subr.bf16.mxu0 0
        %927 = vmatpush1.bf16.msra.mxu0 0
        %928 = vmatprep.mubr.bf16.mxu0 %v885
        %929 = vmatmul.mubr.bf16.gmra.mrb[0].mxu0 %v752
        %v930 = vpop.f32.mrb[0].mxu0
        %v931 = vadd.f32 0.0, %v930
        %v932 = vpop.f32.mrb[0].mxu0
        %v933 = vadd.f32 0.0, %v932
        %v934 = vpop.f32.mrb[0].mxu0
        %v935 = vadd.f32 0.0, %v934
        %v936 = vpop.f32.mrb[0].mxu0
        %v937 = vadd.f32 0.0, %v936
        %938 = vmatprep.mubr.bf16.mxu0 %v888
        %939 = vmatmul.mubr.bf16.gmra.mrb[0].mxu0 %v754
        %v940 = vpop.f32.mrb[0].mxu0
        %v941 = vadd.f32 0.0, %v940
        %v942 = vpop.f32.mrb[0].mxu0
        %v943 = vadd.f32 0.0, %v942
        %v944 = vpop.f32.mrb[0].mxu0
        %v945 = vadd.f32 0.0, %v944
        %v946 = vpop.f32.mrb[0].mxu0
        %v947 = vadd.f32 0.0, %v946
        %948 = vmatprep.mubr.bf16.mxu0 %v891
        %949 = vmatmul.mubr.bf16.gmra.mrb[0].mxu0 %v756
        %v950 = vpop.f32.mrb[0].mxu0
        %v951 = vadd.f32 0.0, %v950
        %v952 = vpop.f32.mrb[0].mxu0
        %v953 = vadd.f32 0.0, %v952
        %v954 = vpop.f32.mrb[0].mxu0
        %v955 = vadd.f32 0.0, %v954
        %v956 = vpop.f32.mrb[0].mxu0
        %v957 = vadd.f32 0.0, %v956
        %958 = vmatprep.mubr.bf16.mxu0 %v894
        %959 = vmatmul.mubr.bf16.gmra.mrb[0].mxu0 %v758
        %v960 = vpop.f32.mrb[0].mxu0
        %v961 = vadd.f32 0.0, %v960
        %v962 = vpop.f32.mrb[0].mxu0
        %v963 = vadd.f32 0.0, %v962
        %v964 = vpop.f32.mrb[0].mxu0
        %v965 = vadd.f32 0.0, %v964
        %v966 = vpop.f32.mrb[0].mxu0
        %v967 = vadd.f32 0.0, %v966
        %968 = vdwg.mxu0
        %v969 = vld [vmem:[#allocation2] sm:$0xff]
        %v970 = vld [vmem:[#allocation2 + $0x8] sm:$0xff]
        %v971 = vld [vmem:[#allocation2 + $0x10] sm:$0xff]
        %v972 = vld [vmem:[#allocation2 + $0x18] sm:$0xff]
        %v973 = vld [vmem:[#allocation2 + $0x20] sm:$0xff]
        %v974 = vld [vmem:[#allocation2 + $0x28] sm:$0xff]
        %v975 = vld [vmem:[#allocation2 + $0x30] sm:$0xff]
        %v976 = vld [vmem:[#allocation2 + $0x38] sm:$0xff]
        %v977 = vld [vmem:[#allocation2 + $0x40] sm:$0xff]
        %v978 = vld [vmem:[#allocation2 + $0x48] sm:$0xff]
        %v979 = vld [vmem:[#allocation2 + $0x50] sm:$0xff]
        %v980 = vld [vmem:[#allocation2 + $0x58] sm:$0xff]
        %v981 = vld [vmem:[#allocation2 + $0x60] sm:$0xff]
        %v982 = vld [vmem:[#allocation2 + $0x68] sm:$0xff]
        %v983 = vld [vmem:[#allocation2 + $0x70] sm:$0xff]
        %v984 = vld [vmem:[#allocation2 + $0x78] sm:$0xff]
        %v985 = vadd.f32 %v969, %v931
        %v986 = vadd.f32 %v970, %v933
        %v987 = vadd.f32 %v971, %v935
        %v988 = vadd.f32 %v972, %v937
        %v989 = vadd.f32 %v973, %v941
        %v990 = vadd.f32 %v974, %v943
        %v991 = vadd.f32 %v975, %v945
        %v992 = vadd.f32 %v976, %v947
        %v993 = vadd.f32 %v977, %v951
        %v994 = vadd.f32 %v978, %v953
        %v995 = vadd.f32 %v979, %v955
        %v996 = vadd.f32 %v980, %v957
        %v997 = vadd.f32 %v981, %v961
        %v998 = vadd.f32 %v982, %v963
        %v999 = vadd.f32 %v983, %v965
        %v1000 = vadd.f32 %v984, %v967
        %1001 = vst [vmem:[#allocation2] sm:$0xff] %v985
        %1002 = vst.msk [vmem:[#allocation2 + $0x8] sm:$0xff] %vm593, %v986
        %1003 = vst [vmem:[#allocation2 + $0x10] sm:$0xff] %v987
        %1004 = vst.msk [vmem:[#allocation2 + $0x18] sm:$0xff] %vm593, %v988
        %1005 = vst [vmem:[#allocation2 + $0x20] sm:$0xff] %v989
        %1006 = vst.msk [vmem:[#allocation2 + $0x28] sm:$0xff] %vm593, %v990
        %1007 = vst [vmem:[#allocation2 + $0x30] sm:$0xff] %v991
        %1008 = vst.msk [vmem:[#allocation2 + $0x38] sm:$0xff] %vm593, %v992
        %1009 = vst [vmem:[#allocation2 + $0x40] sm:$0xff] %v993
        %1010 = vst.msk [vmem:[#allocation2 + $0x48] sm:$0xff] %vm593, %v994
        %1011 = vst [vmem:[#allocation2 + $0x50] sm:$0xff] %v995
        %1012 = vst.msk [vmem:[#allocation2 + $0x58] sm:$0xff] %vm593, %v996
        %1013 = vst [vmem:[#allocation2 + $0x60] sm:$0xff] %v997
        %1014 = vst.msk [vmem:[#allocation2 + $0x68] sm:$0xff] %vm593, %v998
        %1015 = vst [vmem:[#allocation2 + $0x70] sm:$0xff] %v999
        %1016 = vst.msk [vmem:[#allocation2 + $0x78] sm:$0xff] %vm593, %v1000
        %v1017 = vld [vmem:[%s388] sm:$0xff]
        %v1018 = vld [vmem:[%s388 + $0x8] sm:$0xff]
        %v1019 = vld [vmem:[%s388 + $0x10] sm:$0xff]
        %v1020 = vld [vmem:[%s388 + $0x18] sm:$0xff]
        %v1021 = vld [vmem:[%s388 + $0x20] sm:$0xff]
        %v1022 = vld [vmem:[%s388 + $0x28] sm:$0xff]
        %v1023 = vld [vmem:[%s388 + $0x30] sm:$0xff]
        %v1024 = vld [vmem:[%s388 + $0x38] sm:$0xff]
        %s1025 = scalar_lea.vmem %s6, 384
        %v1026 = vld [vmem:[%s1025] sm:$0xff]
        %v1027 = vld [vmem:[%s1025 + $0x8] sm:$0xff]
        %v1028 = vld [vmem:[%s1025 + $0x10] sm:$0xff]
        %v1029 = vld [vmem:[%s1025 + $0x18] sm:$0xff]
        %v1030 = vld [vmem:[%s1025 + $0x20] sm:$0xff]
        %v1031 = vld [vmem:[%s1025 + $0x28] sm:$0xff]
        %v1032 = vld [vmem:[%s1025 + $0x30] sm:$0xff]
        %v1033 = vld [vmem:[%s1025 + $0x38] sm:$0xff]
        %v1034 = vld [vmem:[%s1025 + $0x40] sm:$0xff]
        %v1035 = vld [vmem:[%s1025 + $0x48] sm:$0xff]
        %v1036 = vld [vmem:[%s1025 + $0x50] sm:$0xff]
        %v1037 = vld [vmem:[%s1025 + $0x58] sm:$0xff]
        %v1038 = vld [vmem:[%s1025 + $0x60] sm:$0xff]
        %v1039 = vld [vmem:[%s1025 + $0x68] sm:$0xff]
        %v1040 = vld [vmem:[%s1025 + $0x70] sm:$0xff]
        %v1041 = vld [vmem:[%s1025 + $0x78] sm:$0xff]
        %v1042 = vld [vmem:[%s1025 + $0x80] sm:$0xff]
        %v1043 = vld [vmem:[%s1025 + $0x88] sm:$0xff]
        %v1044 = vld [vmem:[%s1025 + $0x90] sm:$0xff]
        %v1045 = vld [vmem:[%s1025 + $0x98] sm:$0xff]
        %v1046 = vld [vmem:[%s1025 + $0xa0] sm:$0xff]
        %v1047 = vld [vmem:[%s1025 + $0xa8] sm:$0xff]
        %v1048 = vld [vmem:[%s1025 + $0xb0] sm:$0xff]
        %v1049 = vld [vmem:[%s1025 + $0xb8] sm:$0xff]
        %v1058 = vunpack.c.l.b16 %v1017
        %v1059 = vunpack.c.h.b16 %v1017
        %v1060 = vunpack.c.l.b16 %v1018
        %v1061 = vunpack.c.h.b16 %v1018
        %v1062 = vunpack.c.l.b16 %v1019
        %v1063 = vunpack.c.h.b16 %v1019
        %v1064 = vunpack.c.l.b16 %v1020
        %v1065 = vunpack.c.h.b16 %v1020
        %v1066 = vunpack.c.l.b16 %v1021
        %v1067 = vunpack.c.h.b16 %v1021
        %v1068 = vunpack.c.l.b16 %v1022
        %v1069 = vunpack.c.h.b16 %v1022
        %v1070 = vunpack.c.l.b16 %v1023
        %v1071 = vunpack.c.h.b16 %v1023
        %v1072 = vunpack.c.l.b16 %v1024
        %v1073 = vunpack.c.h.b16 %v1024
        %v1074 = vpack.c.b16 %v1060, %v1058
        %v1075 = vpack.c.b16 %v1061, %v1059
        %v1076 = vpack.c.b16 %v1064, %v1062
        %v1077 = vpack.c.b16 %v1065, %v1063
        %v1078 = vpack.c.b16 %v1068, %v1066
        %v1079 = vpack.c.b16 %v1069, %v1067
        %v1080 = vpack.c.b16 %v1072, %v1070
        %v1081 = vpack.c.b16 %v1073, %v1071
        %v1110 = vunpack.c.l.b16 %v1026
        %v1111 = vunpack.c.h.b16 %v1026
        %v1112 = vunpack.c.l.b16 %v1027
        %v1113 = vunpack.c.h.b16 %v1027
        %v1114 = vunpack.c.l.b16 %v1028
        %v1115 = vunpack.c.h.b16 %v1028
        %v1116 = vunpack.c.l.b16 %v1029
        %v1117 = vunpack.c.h.b16 %v1029
        %v1118 = vunpack.c.l.b16 %v1030
        %v1119 = vunpack.c.h.b16 %v1030
        %v1120 = vunpack.c.l.b16 %v1031
        %v1121 = vunpack.c.h.b16 %v1031
        %v1122 = vunpack.c.l.b16 %v1032
        %v1123 = vunpack.c.h.b16 %v1032
        %v1124 = vunpack.c.l.b16 %v1033
        %v1125 = vunpack.c.h.b16 %v1033
        %v1126 = vunpack.c.l.b16 %v1034
        %v1127 = vunpack.c.h.b16 %v1034
        %v1128 = vunpack.c.l.b16 %v1035
        %v1129 = vunpack.c.h.b16 %v1035
        %v1130 = vunpack.c.l.b16 %v1036
        %v1131 = vunpack.c.h.b16 %v1036
        %v1132 = vunpack.c.l.b16 %v1037
        %v1133 = vunpack.c.h.b16 %v1037
        %v1134 = vunpack.c.l.b16 %v1038
        %v1135 = vunpack.c.h.b16 %v1038
        %v1136 = vunpack.c.l.b16 %v1039
        %v1137 = vunpack.c.h.b16 %v1039
        %v1138 = vunpack.c.l.b16 %v1040
        %v1139 = vunpack.c.h.b16 %v1040
        %v1140 = vunpack.c.l.b16 %v1041
        %v1141 = vunpack.c.h.b16 %v1041
        %v1142 = vunpack.c.l.b16 %v1042
        %v1143 = vunpack.c.h.b16 %v1042
        %v1144 = vunpack.c.l.b16 %v1043
        %v1145 = vunpack.c.h.b16 %v1043
        %v1146 = vunpack.c.l.b16 %v1044
        %v1147 = vunpack.c.h.b16 %v1044
        %v1148 = vunpack.c.l.b16 %v1045
        %v1149 = vunpack.c.h.b16 %v1045
        %v1150 = vunpack.c.l.b16 %v1046
        %v1151 = vunpack.c.h.b16 %v1046
        %v1152 = vunpack.c.l.b16 %v1047
        %v1153 = vunpack.c.h.b16 %v1047
        %v1154 = vunpack.c.l.b16 %v1048
        %v1155 = vunpack.c.h.b16 %v1048
        %v1156 = vunpack.c.l.b16 %v1049
        %v1157 = vunpack.c.h.b16 %v1049
        %v1158 = vpack.c.b16 %v1112, %v1110
        %v1159 = vpack.c.b16 %v1113, %v1111
        %v1160 = vpack.c.b16 %v1116, %v1114
        %v1161 = vpack.c.b16 %v1117, %v1115
        %v1162 = vpack.c.b16 %v1120, %v1118
        %v1163 = vpack.c.b16 %v1121, %v1119
        %v1164 = vpack.c.b16 %v1124, %v1122
        %v1165 = vpack.c.b16 %v1125, %v1123
        %v1166 = vpack.c.b16 %v1128, %v1126
        %v1167 = vpack.c.b16 %v1129, %v1127
        %v1168 = vpack.c.b16 %v1132, %v1130
        %v1169 = vpack.c.b16 %v1133, %v1131
        %v1170 = vpack.c.b16 %v1136, %v1134
        %v1171 = vpack.c.b16 %v1137, %v1135
        %v1172 = vpack.c.b16 %v1140, %v1138
        %v1173 = vpack.c.b16 %v1141, %v1139
        %v1174 = vpack.c.b16 %v1144, %v1142
        %v1175 = vpack.c.b16 %v1145, %v1143
        %v1176 = vpack.c.b16 %v1148, %v1146
        %v1177 = vpack.c.b16 %v1149, %v1147
        %v1178 = vpack.c.b16 %v1152, %v1150
        %v1179 = vpack.c.b16 %v1153, %v1151
        %v1180 = vpack.c.b16 %v1156, %v1154
        %v1181 = vpack.c.b16 %v1157, %v1155
        %v1207 = vsel %vm593, %v1075, 0
        %v1210 = vsel %vm593, %v1077, 0
        %v1213 = vsel %vm593, %v1079, 0
        %v1216 = vsel %vm593, %v1081, 0
        %1218 = vmatprep.subr.bf16.mxu0 %v1159
        %1219 = vmatpush1.bf16.msra.mxu0 %v1158
        %1220 = vmatprep.subr.bf16.mxu0 %v1161
        %1221 = vmatpush1.bf16.msra.mxu0 %v1160
        %1222 = vmatprep.subr.bf16.mxu0 %v1163
        %1223 = vmatpush1.bf16.msra.mxu0 %v1162
        %1224 = vmatprep.subr.bf16.mxu0 %v1165
        %1225 = vmatpush1.bf16.msra.mxu0 %v1164
        %1226 = vmatprep.subr.bf16.mxu0 %v1167
        %1227 = vmatpush1.bf16.msra.mxu0 %v1166
        %1228 = vmatprep.subr.bf16.mxu0 %v1169
        %1229 = vmatpush1.bf16.msra.mxu0 %v1168
        %1230 = vmatprep.subr.bf16.mxu0 %v1171
        %1231 = vmatpush1.bf16.msra.mxu0 %v1170
        %1232 = vmatprep.subr.bf16.mxu0 %v1173
        %1233 = vmatpush1.bf16.msra.mxu0 %v1172
        %1234 = vmatprep.subr.bf16.mxu0 %v1175
        %1235 = vmatpush1.bf16.msra.mxu0 %v1174
        %1236 = vmatprep.subr.bf16.mxu0 %v1177
        %1237 = vmatpush1.bf16.msra.mxu0 %v1176
        %1238 = vmatprep.subr.bf16.mxu0 %v1179
        %1239 = vmatpush1.bf16.msra.mxu0 %v1178
        %1240 = vmatprep.subr.bf16.mxu0 %v1181
        %1241 = vmatpush1.bf16.msra.mxu0 %v1180
        %1242 = vmatprep.subr.bf16.mxu0 0
        %1243 = vmatpush1.bf16.msra.mxu0 0
        %1244 = vmatprep.subr.bf16.mxu0 0
        %1245 = vmatpush1.bf16.msra.mxu0 0
        %1246 = vmatprep.subr.bf16.mxu0 0
        %1247 = vmatpush1.bf16.msra.mxu0 0
        %1248 = vmatprep.subr.bf16.mxu0 0
        %1249 = vmatpush1.bf16.msra.mxu0 0
        %1250 = vmatprep.mubr.bf16.mxu0 %v1207
        %1251 = vmatmul.mubr.bf16.gmra.mrb[0].mxu0 %v1074
        %v1252 = vpop.f32.mrb[0].mxu0
        %v1253 = vadd.f32 0.0, %v1252
        %v1254 = vpop.f32.mrb[0].mxu0
        %v1255 = vadd.f32 0.0, %v1254
        %v1256 = vpop.f32.mrb[0].mxu0
        %v1257 = vadd.f32 0.0, %v1256
        %v1258 = vpop.f32.mrb[0].mxu0
        %v1259 = vadd.f32 0.0, %v1258
        %1260 = vmatprep.mubr.bf16.mxu0 %v1210
        %1261 = vmatmul.mubr.bf16.gmra.mrb[0].mxu0 %v1076
        %v1262 = vpop.f32.mrb[0].mxu0
        %v1263 = vadd.f32 0.0, %v1262
        %v1264 = vpop.f32.mrb[0].mxu0
        %v1265 = vadd.f32 0.0, %v1264
        %v1266 = vpop.f32.mrb[0].mxu0
        %v1267 = vadd.f32 0.0, %v1266
        %v1268 = vpop.f32.mrb[0].mxu0
        %v1269 = vadd.f32 0.0, %v1268
        %1270 = vmatprep.mubr.bf16.mxu0 %v1213
        %1271 = vmatmul.mubr.bf16.gmra.mrb[0].mxu0 %v1078
        %v1272 = vpop.f32.mrb[0].mxu0
        %v1273 = vadd.f32 0.0, %v1272
        %v1274 = vpop.f32.mrb[0].mxu0
        %v1275 = vadd.f32 0.0, %v1274
        %v1276 = vpop.f32.mrb[0].mxu0
        %v1277 = vadd.f32 0.0, %v1276
        %v1278 = vpop.f32.mrb[0].mxu0
        %v1279 = vadd.f32 0.0, %v1278
        %1280 = vmatprep.mubr.bf16.mxu0 %v1216
        %1281 = vmatmul.mubr.bf16.gmra.mrb[0].mxu0 %v1080
        %v1282 = vpop.f32.mrb[0].mxu0
        %v1283 = vadd.f32 0.0, %v1282
        %v1284 = vpop.f32.mrb[0].mxu0
        %v1285 = vadd.f32 0.0, %v1284
        %v1286 = vpop.f32.mrb[0].mxu0
        %v1287 = vadd.f32 0.0, %v1286
        %v1288 = vpop.f32.mrb[0].mxu0
        %v1289 = vadd.f32 0.0, %v1288
        %1290 = vdwg.mxu0
        %v1291 = vld [vmem:[#allocation2] sm:$0xff]
        %v1292 = vld [vmem:[#allocation2 + $0x8] sm:$0xff]
        %v1293 = vld [vmem:[#allocation2 + $0x10] sm:$0xff]
        %v1294 = vld [vmem:[#allocation2 + $0x18] sm:$0xff]
        %v1295 = vld [vmem:[#allocation2 + $0x20] sm:$0xff]
        %v1296 = vld [vmem:[#allocation2 + $0x28] sm:$0xff]
        %v1297 = vld [vmem:[#allocation2 + $0x30] sm:$0xff]
        %v1298 = vld [vmem:[#allocation2 + $0x38] sm:$0xff]
        %v1299 = vld [vmem:[#allocation2 + $0x40] sm:$0xff]
        %v1300 = vld [vmem:[#allocation2 + $0x48] sm:$0xff]
        %v1301 = vld [vmem:[#allocation2 + $0x50] sm:$0xff]
        %v1302 = vld [vmem:[#allocation2 + $0x58] sm:$0xff]
        %v1303 = vld [vmem:[#allocation2 + $0x60] sm:$0xff]
        %v1304 = vld [vmem:[#allocation2 + $0x68] sm:$0xff]
        %v1305 = vld [vmem:[#allocation2 + $0x70] sm:$0xff]
        %v1306 = vld [vmem:[#allocation2 + $0x78] sm:$0xff]
        %v1307 = vadd.f32 %v1291, %v1253
        %v1308 = vadd.f32 %v1292, %v1255
        %v1309 = vadd.f32 %v1293, %v1257
        %v1310 = vadd.f32 %v1294, %v1259
        %v1311 = vadd.f32 %v1295, %v1263
        %v1312 = vadd.f32 %v1296, %v1265
        %v1313 = vadd.f32 %v1297, %v1267
        %v1314 = vadd.f32 %v1298, %v1269
        %v1315 = vadd.f32 %v1299, %v1273
        %v1316 = vadd.f32 %v1300, %v1275
        %v1317 = vadd.f32 %v1301, %v1277
        %v1318 = vadd.f32 %v1302, %v1279
        %v1319 = vadd.f32 %v1303, %v1283
        %v1320 = vadd.f32 %v1304, %v1285
        %v1321 = vadd.f32 %v1305, %v1287
        %v1322 = vadd.f32 %v1306, %v1289
        %1323 = vst [vmem:[#allocation2] sm:$0xff] %v1307
        %1324 = vst.msk [vmem:[#allocation2 + $0x8] sm:$0xff] %vm593, %v1308
        %1325 = vst [vmem:[#allocation2 + $0x10] sm:$0xff] %v1309
        %1326 = vst.msk [vmem:[#allocation2 + $0x18] sm:$0xff] %vm593, %v1310
        %1327 = vst [vmem:[#allocation2 + $0x20] sm:$0xff] %v1311
        %1328 = vst.msk [vmem:[#allocation2 + $0x28] sm:$0xff] %vm593, %v1312
        %1329 = vst [vmem:[#allocation2 + $0x30] sm:$0xff] %v1313
        %1330 = vst.msk [vmem:[#allocation2 + $0x38] sm:$0xff] %vm593, %v1314
        %1331 = vst [vmem:[#allocation2 + $0x40] sm:$0xff] %v1315
        %1332 = vst.msk [vmem:[#allocation2 + $0x48] sm:$0xff] %vm593, %v1316
        %1333 = vst [vmem:[#allocation2 + $0x50] sm:$0xff] %v1317
        %1334 = vst.msk [vmem:[#allocation2 + $0x58] sm:$0xff] %vm593, %v1318
        %1335 = vst [vmem:[#allocation2 + $0x60] sm:$0xff] %v1319
        %1336 = vst.msk [vmem:[#allocation2 + $0x68] sm:$0xff] %vm593, %v1320
        %1337 = vst [vmem:[#allocation2 + $0x70] sm:$0xff] %v1321
        %1338 = vst.msk [vmem:[#allocation2 + $0x78] sm:$0xff] %vm593, %v1322
        %v1339 = vld [vmem:[%s393] sm:$0xff]
        %v1340 = vld [vmem:[%s393 + $0x8] sm:$0xff]
        %v1341 = vld [vmem:[%s393 + $0x10] sm:$0xff]
        %v1342 = vld [vmem:[%s393 + $0x18] sm:$0xff]
        %v1343 = vld [vmem:[%s393 + $0x20] sm:$0xff]
        %v1344 = vld [vmem:[%s393 + $0x28] sm:$0xff]
        %v1345 = vld [vmem:[%s393 + $0x30] sm:$0xff]
        %v1346 = vld [vmem:[%s393 + $0x38] sm:$0xff]
        %s1347 = scalar_lea.vmem %s6, 576
        %v1348 = vld [vmem:[%s1347] sm:$0xff]
        %v1349 = vld [vmem:[%s1347 + $0x8] sm:$0xff]
        %v1350 = vld [vmem:[%s1347 + $0x10] sm:$0xff]
        %v1351 = vld [vmem:[%s1347 + $0x18] sm:$0xff]
        %v1352 = vld [vmem:[%s1347 + $0x20] sm:$0xff]
        %v1353 = vld [vmem:[%s1347 + $0x28] sm:$0xff]
        %v1354 = vld [vmem:[%s1347 + $0x30] sm:$0xff]
        %v1355 = vld [vmem:[%s1347 + $0x38] sm:$0xff]
        %v1356 = vld [vmem:[%s1347 + $0x40] sm:$0xff]
        %v1357 = vld [vmem:[%s1347 + $0x48] sm:$0xff]
        %v1358 = vld [vmem:[%s1347 + $0x50] sm:$0xff]
        %v1359 = vld [vmem:[%s1347 + $0x58] sm:$0xff]
        %v1360 = vld [vmem:[%s1347 + $0x60] sm:$0xff]
        %v1361 = vld [vmem:[%s1347 + $0x68] sm:$0xff]
        %v1362 = vld [vmem:[%s1347 + $0x70] sm:$0xff]
        %v1363 = vld [vmem:[%s1347 + $0x78] sm:$0xff]
        %v1364 = vld [vmem:[%s1347 + $0x80] sm:$0xff]
        %v1365 = vld [vmem:[%s1347 + $0x88] sm:$0xff]
        %v1366 = vld [vmem:[%s1347 + $0x90] sm:$0xff]
        %v1367 = vld [vmem:[%s1347 + $0x98] sm:$0xff]
        %v1368 = vld [vmem:[%s1347 + $0xa0] sm:$0xff]
        %v1369 = vld [vmem:[%s1347 + $0xa8] sm:$0xff]
        %v1370 = vld [vmem:[%s1347 + $0xb0] sm:$0xff]
        %v1371 = vld [vmem:[%s1347 + $0xb8] sm:$0xff]
        %v1380 = vunpack.c.l.b16 %v1339
        %v1381 = vunpack.c.h.b16 %v1339
        %v1382 = vunpack.c.l.b16 %v1340
        %v1383 = vunpack.c.h.b16 %v1340
        %v1384 = vunpack.c.l.b16 %v1341
        %v1385 = vunpack.c.h.b16 %v1341
        %v1386 = vunpack.c.l.b16 %v1342
        %v1387 = vunpack.c.h.b16 %v1342
        %v1388 = vunpack.c.l.b16 %v1343
        %v1389 = vunpack.c.h.b16 %v1343
        %v1390 = vunpack.c.l.b16 %v1344
        %v1391 = vunpack.c.h.b16 %v1344
        %v1392 = vunpack.c.l.b16 %v1345
        %v1393 = vunpack.c.h.b16 %v1345
        %v1394 = vunpack.c.l.b16 %v1346
        %v1395 = vunpack.c.h.b16 %v1346
        %v1396 = vpack.c.b16 %v1382, %v1380
        %v1397 = vpack.c.b16 %v1383, %v1381
        %v1398 = vpack.c.b16 %v1386, %v1384
        %v1399 = vpack.c.b16 %v1387, %v1385
        %v1400 = vpack.c.b16 %v1390, %v1388
        %v1401 = vpack.c.b16 %v1391, %v1389
        %v1402 = vpack.c.b16 %v1394, %v1392
        %v1403 = vpack.c.b16 %v1395, %v1393
        %v1432 = vunpack.c.l.b16 %v1348
        %v1433 = vunpack.c.h.b16 %v1348
        %v1434 = vunpack.c.l.b16 %v1349
        %v1435 = vunpack.c.h.b16 %v1349
        %v1436 = vunpack.c.l.b16 %v1350
        %v1437 = vunpack.c.h.b16 %v1350
        %v1438 = vunpack.c.l.b16 %v1351
        %v1439 = vunpack.c.h.b16 %v1351
        %v1440 = vunpack.c.l.b16 %v1352
        %v1441 = vunpack.c.h.b16 %v1352
        %v1442 = vunpack.c.l.b16 %v1353
        %v1443 = vunpack.c.h.b16 %v1353
        %v1444 = vunpack.c.l.b16 %v1354
        %v1445 = vunpack.c.h.b16 %v1354
        %v1446 = vunpack.c.l.b16 %v1355
        %v1447 = vunpack.c.h.b16 %v1355
        %v1448 = vunpack.c.l.b16 %v1356
        %v1449 = vunpack.c.h.b16 %v1356
        %v1450 = vunpack.c.l.b16 %v1357
        %v1451 = vunpack.c.h.b16 %v1357
        %v1452 = vunpack.c.l.b16 %v1358
        %v1453 = vunpack.c.h.b16 %v1358
        %v1454 = vunpack.c.l.b16 %v1359
        %v1455 = vunpack.c.h.b16 %v1359
        %v1456 = vunpack.c.l.b16 %v1360
        %v1457 = vunpack.c.h.b16 %v1360
        %v1458 = vunpack.c.l.b16 %v1361
        %v1459 = vunpack.c.h.b16 %v1361
        %v1460 = vunpack.c.l.b16 %v1362
        %v1461 = vunpack.c.h.b16 %v1362
        %v1462 = vunpack.c.l.b16 %v1363
        %v1463 = vunpack.c.h.b16 %v1363
        %v1464 = vunpack.c.l.b16 %v1364
        %v1465 = vunpack.c.h.b16 %v1364
        %v1466 = vunpack.c.l.b16 %v1365
        %v1467 = vunpack.c.h.b16 %v1365
        %v1468 = vunpack.c.l.b16 %v1366
        %v1469 = vunpack.c.h.b16 %v1366
        %v1470 = vunpack.c.l.b16 %v1367
        %v1471 = vunpack.c.h.b16 %v1367
        %v1472 = vunpack.c.l.b16 %v1368
        %v1473 = vunpack.c.h.b16 %v1368
        %v1474 = vunpack.c.l.b16 %v1369
        %v1475 = vunpack.c.h.b16 %v1369
        %v1476 = vunpack.c.l.b16 %v1370
        %v1477 = vunpack.c.h.b16 %v1370
        %v1478 = vunpack.c.l.b16 %v1371
        %v1479 = vunpack.c.h.b16 %v1371
        %v1480 = vpack.c.b16 %v1434, %v1432
        %v1481 = vpack.c.b16 %v1435, %v1433
        %v1482 = vpack.c.b16 %v1438, %v1436
        %v1483 = vpack.c.b16 %v1439, %v1437
        %v1484 = vpack.c.b16 %v1442, %v1440
        %v1485 = vpack.c.b16 %v1443, %v1441
        %v1486 = vpack.c.b16 %v1446, %v1444
        %v1487 = vpack.c.b16 %v1447, %v1445
        %v1488 = vpack.c.b16 %v1450, %v1448
        %v1489 = vpack.c.b16 %v1451, %v1449
        %v1490 = vpack.c.b16 %v1454, %v1452
        %v1491 = vpack.c.b16 %v1455, %v1453
        %v1492 = vpack.c.b16 %v1458, %v1456
        %v1493 = vpack.c.b16 %v1459, %v1457
        %v1494 = vpack.c.b16 %v1462, %v1460
        %v1495 = vpack.c.b16 %v1463, %v1461
        %v1496 = vpack.c.b16 %v1466, %v1464
        %v1497 = vpack.c.b16 %v1467, %v1465
        %v1498 = vpack.c.b16 %v1470, %v1468
        %v1499 = vpack.c.b16 %v1471, %v1469
        %v1500 = vpack.c.b16 %v1474, %v1472
        %v1501 = vpack.c.b16 %v1475, %v1473
        %v1502 = vpack.c.b16 %v1478, %v1476
        %v1503 = vpack.c.b16 %v1479, %v1477
        %v1529 = vsel %vm593, %v1397, 0
        %v1532 = vsel %vm593, %v1399, 0
        %v1535 = vsel %vm593, %v1401, 0
        %v1538 = vsel %vm593, %v1403, 0
        %1540 = vmatprep.subr.bf16.mxu0 %v1481
        %1541 = vmatpush1.bf16.msra.mxu0 %v1480
        %1542 = vmatprep.subr.bf16.mxu0 %v1483
        %1543 = vmatpush1.bf16.msra.mxu0 %v1482
        %1544 = vmatprep.subr.bf16.mxu0 %v1485
        %1545 = vmatpush1.bf16.msra.mxu0 %v1484
        %1546 = vmatprep.subr.bf16.mxu0 %v1487
        %1547 = vmatpush1.bf16.msra.mxu0 %v1486
        %1548 = vmatprep.subr.bf16.mxu0 %v1489
        %1549 = vmatpush1.bf16.msra.mxu0 %v1488
        %1550 = vmatprep.subr.bf16.mxu0 %v1491
        %1551 = vmatpush1.bf16.msra.mxu0 %v1490
        %1552 = vmatprep.subr.bf16.mxu0 %v1493
        %1553 = vmatpush1.bf16.msra.mxu0 %v1492
        %1554 = vmatprep.subr.bf16.mxu0 %v1495
        %1555 = vmatpush1.bf16.msra.mxu0 %v1494
        %1556 = vmatprep.subr.bf16.mxu0 %v1497
        %1557 = vmatpush1.bf16.msra.mxu0 %v1496
        %1558 = vmatprep.subr.bf16.mxu0 %v1499
        %1559 = vmatpush1.bf16.msra.mxu0 %v1498
        %1560 = vmatprep.subr.bf16.mxu0 %v1501
        %1561 = vmatpush1.bf16.msra.mxu0 %v1500
        %1562 = vmatprep.subr.bf16.mxu0 %v1503
        %1563 = vmatpush1.bf16.msra.mxu0 %v1502
        %1564 = vmatprep.subr.bf16.mxu0 0
        %1565 = vmatpush1.bf16.msra.mxu0 0
        %1566 = vmatprep.subr.bf16.mxu0 0
        %1567 = vmatpush1.bf16.msra.mxu0 0
        %1568 = vmatprep.subr.bf16.mxu0 0
        %1569 = vmatpush1.bf16.msra.mxu0 0
        %1570 = vmatprep.subr.bf16.mxu0 0
        %1571 = vmatpush1.bf16.msra.mxu0 0
        %1572 = vmatprep.mubr.bf16.mxu0 %v1529
        %1573 = vmatmul.mubr.bf16.gmra.mrb[0].mxu0 %v1396
        %v1574 = vpop.f32.mrb[0].mxu0
        %v1575 = vadd.f32 0.0, %v1574
        %v1576 = vpop.f32.mrb[0].mxu0
        %v1577 = vadd.f32 0.0, %v1576
        %v1578 = vpop.f32.mrb[0].mxu0
        %v1579 = vadd.f32 0.0, %v1578
        %v1580 = vpop.f32.mrb[0].mxu0
        %v1581 = vadd.f32 0.0, %v1580
        %1582 = vmatprep.mubr.bf16.mxu0 %v1532
        %1583 = vmatmul.mubr.bf16.gmra.mrb[0].mxu0 %v1398
        %v1584 = vpop.f32.mrb[0].mxu0
        %v1585 = vadd.f32 0.0, %v1584
        %v1586 = vpop.f32.mrb[0].mxu0
        %v1587 = vadd.f32 0.0, %v1586
        %v1588 = vpop.f32.mrb[0].mxu0
        %v1589 = vadd.f32 0.0, %v1588
        %v1590 = vpop.f32.mrb[0].mxu0
        %v1591 = vadd.f32 0.0, %v1590
        %1592 = vmatprep.mubr.bf16.mxu0 %v1535
        %1593 = vmatmul.mubr.bf16.gmra.mrb[0].mxu0 %v1400
        %v1594 = vpop.f32.mrb[0].mxu0
        %v1595 = vadd.f32 0.0, %v1594
        %v1596 = vpop.f32.mrb[0].mxu0
        %v1597 = vadd.f32 0.0, %v1596
        %v1598 = vpop.f32.mrb[0].mxu0
        %v1599 = vadd.f32 0.0, %v1598
        %v1600 = vpop.f32.mrb[0].mxu0
        %v1601 = vadd.f32 0.0, %v1600
        %1602 = vmatprep.mubr.bf16.mxu0 %v1538
        %1603 = vmatmul.mubr.bf16.gmra.mrb[0].mxu0 %v1402
        %v1604 = vpop.f32.mrb[0].mxu0
        %v1605 = vadd.f32 0.0, %v1604
        %v1606 = vpop.f32.mrb[0].mxu0
        %v1607 = vadd.f32 0.0, %v1606
        %v1608 = vpop.f32.mrb[0].mxu0
        %v1609 = vadd.f32 0.0, %v1608
        %v1610 = vpop.f32.mrb[0].mxu0
        %v1611 = vadd.f32 0.0, %v1610
        %1612 = vdwg.mxu0
        %v1613 = vld [vmem:[#allocation2] sm:$0xff]
        %v1614 = vld [vmem:[#allocation2 + $0x8] sm:$0xff]
        %v1615 = vld [vmem:[#allocation2 + $0x10] sm:$0xff]
        %v1616 = vld [vmem:[#allocation2 + $0x18] sm:$0xff]
        %v1617 = vld [vmem:[#allocation2 + $0x20] sm:$0xff]
        %v1618 = vld [vmem:[#allocation2 + $0x28] sm:$0xff]
        %v1619 = vld [vmem:[#allocation2 + $0x30] sm:$0xff]
        %v1620 = vld [vmem:[#allocation2 + $0x38] sm:$0xff]
        %v1621 = vld [vmem:[#allocation2 + $0x40] sm:$0xff]
        %v1622 = vld [vmem:[#allocation2 + $0x48] sm:$0xff]
        %v1623 = vld [vmem:[#allocation2 + $0x50] sm:$0xff]
        %v1624 = vld [vmem:[#allocation2 + $0x58] sm:$0xff]
        %v1625 = vld [vmem:[#allocation2 + $0x60] sm:$0xff]
        %v1626 = vld [vmem:[#allocation2 + $0x68] sm:$0xff]
        %v1627 = vld [vmem:[#allocation2 + $0x70] sm:$0xff]
        %v1628 = vld [vmem:[#allocation2 + $0x78] sm:$0xff]
        %v1629 = vadd.f32 %v1613, %v1575
        %v1630 = vadd.f32 %v1614, %v1577
        %v1631 = vadd.f32 %v1615, %v1579
        %v1632 = vadd.f32 %v1616, %v1581
        %v1633 = vadd.f32 %v1617, %v1585
        %v1634 = vadd.f32 %v1618, %v1587
        %v1635 = vadd.f32 %v1619, %v1589
        %v1636 = vadd.f32 %v1620, %v1591
        %v1637 = vadd.f32 %v1621, %v1595
        %v1638 = vadd.f32 %v1622, %v1597
        %v1639 = vadd.f32 %v1623, %v1599
        %v1640 = vadd.f32 %v1624, %v1601
        %v1641 = vadd.f32 %v1625, %v1605
        %v1642 = vadd.f32 %v1626, %v1607
        %v1643 = vadd.f32 %v1627, %v1609
        %v1644 = vadd.f32 %v1628, %v1611
        %1645 = vst [vmem:[#allocation2] sm:$0xff] %v1629
        %1646 = vst.msk [vmem:[#allocation2 + $0x8] sm:$0xff] %vm593, %v1630
        %1647 = vst [vmem:[#allocation2 + $0x10] sm:$0xff] %v1631
        %1648 = vst.msk [vmem:[#allocation2 + $0x18] sm:$0xff] %vm593, %v1632
        %1649 = vst [vmem:[#allocation2 + $0x20] sm:$0xff] %v1633
        %1650 = vst.msk [vmem:[#allocation2 + $0x28] sm:$0xff] %vm593, %v1634
        %1651 = vst [vmem:[#allocation2 + $0x30] sm:$0xff] %v1635
        %1652 = vst.msk [vmem:[#allocation2 + $0x38] sm:$0xff] %vm593, %v1636
        %1653 = vst [vmem:[#allocation2 + $0x40] sm:$0xff] %v1637
        %1654 = vst.msk [vmem:[#allocation2 + $0x48] sm:$0xff] %vm593, %v1638
        %1655 = vst [vmem:[#allocation2 + $0x50] sm:$0xff] %v1639
        %1656 = vst.msk [vmem:[#allocation2 + $0x58] sm:$0xff] %vm593, %v1640
        %1657 = vst [vmem:[#allocation2 + $0x60] sm:$0xff] %v1641
        %1658 = vst.msk [vmem:[#allocation2 + $0x68] sm:$0xff] %vm593, %v1642
        %1659 = vst [vmem:[#allocation2 + $0x70] sm:$0xff] %v1643
        %1660 = vst.msk [vmem:[#allocation2 + $0x78] sm:$0xff] %vm593, %v1644
        %v1661 = vld [vmem:[%s398] sm:$0xff]
        %v1662 = vld [vmem:[%s398 + $0x8] sm:$0xff]
        %v1663 = vld [vmem:[%s398 + $0x10] sm:$0xff]
        %v1664 = vld [vmem:[%s398 + $0x18] sm:$0xff]
        %v1665 = vld [vmem:[%s398 + $0x20] sm:$0xff]
        %v1666 = vld [vmem:[%s398 + $0x28] sm:$0xff]
        %v1667 = vld [vmem:[%s398 + $0x30] sm:$0xff]
        %v1668 = vld [vmem:[%s398 + $0x38] sm:$0xff]
        %s1669 = scalar_lea.vmem %s6, 768
        %v1670 = vld [vmem:[%s1669] sm:$0xff]
        %v1671 = vld [vmem:[%s1669 + $0x8] sm:$0xff]
        %v1672 = vld [vmem:[%s1669 + $0x10] sm:$0xff]
        %v1673 = vld [vmem:[%s1669 + $0x18] sm:$0xff]
        %v1674 = vld [vmem:[%s1669 + $0x20] sm:$0xff]
        %v1675 = vld [vmem:[%s1669 + $0x28] sm:$0xff]
        %v1676 = vld [vmem:[%s1669 + $0x30] sm:$0xff]
        %v1677 = vld [vmem:[%s1669 + $0x38] sm:$0xff]
        %v1678 = vld [vmem:[%s1669 + $0x40] sm:$0xff]
        %v1679 = vld [vmem:[%s1669 + $0x48] sm:$0xff]
        %v1680 = vld [vmem:[%s1669 + $0x50] sm:$0xff]
        %v1681 = vld [vmem:[%s1669 + $0x58] sm:$0xff]
        %v1682 = vld [vmem:[%s1669 + $0x60] sm:$0xff]
        %v1683 = vld [vmem:[%s1669 + $0x68] sm:$0xff]
        %v1684 = vld [vmem:[%s1669 + $0x70] sm:$0xff]
        %v1685 = vld [vmem:[%s1669 + $0x78] sm:$0xff]
        %v1686 = vld [vmem:[%s1669 + $0x80] sm:$0xff]
        %v1687 = vld [vmem:[%s1669 + $0x88] sm:$0xff]
        %v1688 = vld [vmem:[%s1669 + $0x90] sm:$0xff]
        %v1689 = vld [vmem:[%s1669 + $0x98] sm:$0xff]
        %v1690 = vld [vmem:[%s1669 + $0xa0] sm:$0xff]
        %v1691 = vld [vmem:[%s1669 + $0xa8] sm:$0xff]
        %v1692 = vld [vmem:[%s1669 + $0xb0] sm:$0xff]
        %v1693 = vld [vmem:[%s1669 + $0xb8] sm:$0xff]
        %v1702 = vunpack.c.l.b16 %v1661
        %v1703 = vunpack.c.h.b16 %v1661
        %v1704 = vunpack.c.l.b16 %v1662
        %v1705 = vunpack.c.h.b16 %v1662
        %v1706 = vunpack.c.l.b16 %v1663
        %v1707 = vunpack.c.h.b16 %v1663
        %v1708 = vunpack.c.l.b16 %v1664
        %v1709 = vunpack.c.h.b16 %v1664
        %v1710 = vunpack.c.l.b16 %v1665
        %v1711 = vunpack.c.h.b16 %v1665
        %v1712 = vunpack.c.l.b16 %v1666
        %v1713 = vunpack.c.h.b16 %v1666
        %v1714 = vunpack.c.l.b16 %v1667
        %v1715 = vunpack.c.h.b16 %v1667
        %v1716 = vunpack.c.l.b16 %v1668
        %v1717 = vunpack.c.h.b16 %v1668
        %v1718 = vpack.c.b16 %v1704, %v1702
        %v1719 = vpack.c.b16 %v1705, %v1703
        %v1720 = vpack.c.b16 %v1708, %v1706
        %v1721 = vpack.c.b16 %v1709, %v1707
        %v1722 = vpack.c.b16 %v1712, %v1710
        %v1723 = vpack.c.b16 %v1713, %v1711
        %v1724 = vpack.c.b16 %v1716, %v1714
        %v1725 = vpack.c.b16 %v1717, %v1715
        %v1754 = vunpack.c.l.b16 %v1670
        %v1755 = vunpack.c.h.b16 %v1670
        %v1756 = vunpack.c.l.b16 %v1671
        %v1757 = vunpack.c.h.b16 %v1671
        %v1758 = vunpack.c.l.b16 %v1672
        %v1759 = vunpack.c.h.b16 %v1672
        %v1760 = vunpack.c.l.b16 %v1673
        %v1761 = vunpack.c.h.b16 %v1673
        %v1762 = vunpack.c.l.b16 %v1674
        %v1763 = vunpack.c.h.b16 %v1674
        %v1764 = vunpack.c.l.b16 %v1675
        %v1765 = vunpack.c.h.b16 %v1675
        %v1766 = vunpack.c.l.b16 %v1676
        %v1767 = vunpack.c.h.b16 %v1676
        %v1768 = vunpack.c.l.b16 %v1677
        %v1769 = vunpack.c.h.b16 %v1677
        %v1770 = vunpack.c.l.b16 %v1678
        %v1771 = vunpack.c.h.b16 %v1678
        %v1772 = vunpack.c.l.b16 %v1679
        %v1773 = vunpack.c.h.b16 %v1679
        %v1774 = vunpack.c.l.b16 %v1680
        %v1775 = vunpack.c.h.b16 %v1680
        %v1776 = vunpack.c.l.b16 %v1681
        %v1777 = vunpack.c.h.b16 %v1681
        %v1778 = vunpack.c.l.b16 %v1682
        %v1779 = vunpack.c.h.b16 %v1682
        %v1780 = vunpack.c.l.b16 %v1683
        %v1781 = vunpack.c.h.b16 %v1683
        %v1782 = vunpack.c.l.b16 %v1684
        %v1783 = vunpack.c.h.b16 %v1684
        %v1784 = vunpack.c.l.b16 %v1685
        %v1785 = vunpack.c.h.b16 %v1685
        %v1786 = vunpack.c.l.b16 %v1686
        %v1787 = vunpack.c.h.b16 %v1686
        %v1788 = vunpack.c.l.b16 %v1687
        %v1789 = vunpack.c.h.b16 %v1687
        %v1790 = vunpack.c.l.b16 %v1688
        %v1791 = vunpack.c.h.b16 %v1688
        %v1792 = vunpack.c.l.b16 %v1689
        %v1793 = vunpack.c.h.b16 %v1689
        %v1794 = vunpack.c.l.b16 %v1690
        %v1795 = vunpack.c.h.b16 %v1690
        %v1796 = vunpack.c.l.b16 %v1691
        %v1797 = vunpack.c.h.b16 %v1691
        %v1798 = vunpack.c.l.b16 %v1692
        %v1799 = vunpack.c.h.b16 %v1692
        %v1800 = vunpack.c.l.b16 %v1693
        %v1801 = vunpack.c.h.b16 %v1693
        %v1802 = vpack.c.b16 %v1756, %v1754
        %v1803 = vpack.c.b16 %v1757, %v1755
        %v1804 = vpack.c.b16 %v1760, %v1758
        %v1805 = vpack.c.b16 %v1761, %v1759
        %v1806 = vpack.c.b16 %v1764, %v1762
        %v1807 = vpack.c.b16 %v1765, %v1763
        %v1808 = vpack.c.b16 %v1768, %v1766
        %v1809 = vpack.c.b16 %v1769, %v1767
        %v1810 = vpack.c.b16 %v1772, %v1770
        %v1811 = vpack.c.b16 %v1773, %v1771
        %v1812 = vpack.c.b16 %v1776, %v1774
        %v1813 = vpack.c.b16 %v1777, %v1775
        %v1814 = vpack.c.b16 %v1780, %v1778
        %v1815 = vpack.c.b16 %v1781, %v1779
        %v1816 = vpack.c.b16 %v1784, %v1782
        %v1817 = vpack.c.b16 %v1785, %v1783
        %v1818 = vpack.c.b16 %v1788, %v1786
        %v1819 = vpack.c.b16 %v1789, %v1787
        %v1820 = vpack.c.b16 %v1792, %v1790
        %v1821 = vpack.c.b16 %v1793, %v1791
        %v1822 = vpack.c.b16 %v1796, %v1794
        %v1823 = vpack.c.b16 %v1797, %v1795
        %v1824 = vpack.c.b16 %v1800, %v1798
        %v1825 = vpack.c.b16 %v1801, %v1799
        %v1851 = vsel %vm593, %v1719, 0
        %v1854 = vsel %vm593, %v1721, 0
        %v1857 = vsel %vm593, %v1723, 0
        %v1860 = vsel %vm593, %v1725, 0
        %1862 = vmatprep.subr.bf16.mxu0 %v1803
        %1863 = vmatpush1.bf16.msra.mxu0 %v1802
        %1864 = vmatprep.subr.bf16.mxu0 %v1805
        %1865 = vmatpush1.bf16.msra.mxu0 %v1804
        %1866 = vmatprep.subr.bf16.mxu0 %v1807
        %1867 = vmatpush1.bf16.msra.mxu0 %v1806
        %1868 = vmatprep.subr.bf16.mxu0 %v1809
        %1869 = vmatpush1.bf16.msra.mxu0 %v1808
        %1870 = vmatprep.subr.bf16.mxu0 %v1811
        %1871 = vmatpush1.bf16.msra.mxu0 %v1810
        %1872 = vmatprep.subr.bf16.mxu0 %v1813
        %1873 = vmatpush1.bf16.msra.mxu0 %v1812
        %1874 = vmatprep.subr.bf16.mxu0 %v1815
        %1875 = vmatpush1.bf16.msra.mxu0 %v1814
        %1876 = vmatprep.subr.bf16.mxu0 %v1817
        %1877 = vmatpush1.bf16.msra.mxu0 %v1816
        %1878 = vmatprep.subr.bf16.mxu0 %v1819
        %1879 = vmatpush1.bf16.msra.mxu0 %v1818
        %1880 = vmatprep.subr.bf16.mxu0 %v1821
        %1881 = vmatpush1.bf16.msra.mxu0 %v1820
        %1882 = vmatprep.subr.bf16.mxu0 %v1823
        %1883 = vmatpush1.bf16.msra.mxu0 %v1822
        %1884 = vmatprep.subr.bf16.mxu0 %v1825
        %1885 = vmatpush1.bf16.msra.mxu0 %v1824
        %1886 = vmatprep.subr.bf16.mxu0 0
        %1887 = vmatpush1.bf16.msra.mxu0 0
        %1888 = vmatprep.subr.bf16.mxu0 0
        %1889 = vmatpush1.bf16.msra.mxu0 0
        %1890 = vmatprep.subr.bf16.mxu0 0
        %1891 = vmatpush1.bf16.msra.mxu0 0
        %1892 = vmatprep.subr.bf16.mxu0 0
        %1893 = vmatpush1.bf16.msra.mxu0 0
        %1894 = vmatprep.mubr.bf16.mxu0 %v1851
        %1895 = vmatmul.mubr.bf16.gmra.mrb[0].mxu0 %v1718
        %v1896 = vpop.f32.mrb[0].mxu0
        %v1897 = vadd.f32 0.0, %v1896
        %v1898 = vpop.f32.mrb[0].mxu0
        %v1899 = vadd.f32 0.0, %v1898
        %v1900 = vpop.f32.mrb[0].mxu0
        %v1901 = vadd.f32 0.0, %v1900
        %v1902 = vpop.f32.mrb[0].mxu0
        %v1903 = vadd.f32 0.0, %v1902
        %1904 = vmatprep.mubr.bf16.mxu0 %v1854
        %1905 = vmatmul.mubr.bf16.gmra.mrb[0].mxu0 %v1720
        %v1906 = vpop.f32.mrb[0].mxu0
        %v1907 = vadd.f32 0.0, %v1906
        %v1908 = vpop.f32.mrb[0].mxu0
        %v1909 = vadd.f32 0.0, %v1908
        %v1910 = vpop.f32.mrb[0].mxu0
        %v1911 = vadd.f32 0.0, %v1910
        %v1912 = vpop.f32.mrb[0].mxu0
        %v1913 = vadd.f32 0.0, %v1912
        %1914 = vmatprep.mubr.bf16.mxu0 %v1857
        %1915 = vmatmul.mubr.bf16.gmra.mrb[0].mxu0 %v1722
        %v1916 = vpop.f32.mrb[0].mxu0
        %v1917 = vadd.f32 0.0, %v1916
        %v1918 = vpop.f32.mrb[0].mxu0
        %v1919 = vadd.f32 0.0, %v1918
        %v1920 = vpop.f32.mrb[0].mxu0
        %v1921 = vadd.f32 0.0, %v1920
        %v1922 = vpop.f32.mrb[0].mxu0
        %v1923 = vadd.f32 0.0, %v1922
        %1924 = vmatprep.mubr.bf16.mxu0 %v1860
        %1925 = vmatmul.mubr.bf16.gmra.mrb[0].mxu0 %v1724
        %v1926 = vpop.f32.mrb[0].mxu0
        %v1927 = vadd.f32 0.0, %v1926
        %v1928 = vpop.f32.mrb[0].mxu0
        %v1929 = vadd.f32 0.0, %v1928
        %v1930 = vpop.f32.mrb[0].mxu0
        %v1931 = vadd.f32 0.0, %v1930
        %v1932 = vpop.f32.mrb[0].mxu0
        %v1933 = vadd.f32 0.0, %v1932
        %1934 = vdwg.mxu0
        %v1935 = vld [vmem:[#allocation2] sm:$0xff]
        %v1936 = vld [vmem:[#allocation2 + $0x8] sm:$0xff]
        %v1937 = vld [vmem:[#allocation2 + $0x10] sm:$0xff]
        %v1938 = vld [vmem:[#allocation2 + $0x18] sm:$0xff]
        %v1939 = vld [vmem:[#allocation2 + $0x20] sm:$0xff]
        %v1940 = vld [vmem:[#allocation2 + $0x28] sm:$0xff]
        %v1941 = vld [vmem:[#allocation2 + $0x30] sm:$0xff]
        %v1942 = vld [vmem:[#allocation2 + $0x38] sm:$0xff]
        %v1943 = vld [vmem:[#allocation2 + $0x40] sm:$0xff]
        %v1944 = vld [vmem:[#allocation2 + $0x48] sm:$0xff]
        %v1945 = vld [vmem:[#allocation2 + $0x50] sm:$0xff]
        %v1946 = vld [vmem:[#allocation2 + $0x58] sm:$0xff]
        %v1947 = vld [vmem:[#allocation2 + $0x60] sm:$0xff]
        %v1948 = vld [vmem:[#allocation2 + $0x68] sm:$0xff]
        %v1949 = vld [vmem:[#allocation2 + $0x70] sm:$0xff]
        %v1950 = vld [vmem:[#allocation2 + $0x78] sm:$0xff]
        %v1951 = vadd.f32 %v1935, %v1897
        %v1952 = vadd.f32 %v1936, %v1899
        %v1953 = vadd.f32 %v1937, %v1901
        %v1954 = vadd.f32 %v1938, %v1903
        %v1955 = vadd.f32 %v1939, %v1907
        %v1956 = vadd.f32 %v1940, %v1909
        %v1957 = vadd.f32 %v1941, %v1911
        %v1958 = vadd.f32 %v1942, %v1913
        %v1959 = vadd.f32 %v1943, %v1917
        %v1960 = vadd.f32 %v1944, %v1919
        %v1961 = vadd.f32 %v1945, %v1921
        %v1962 = vadd.f32 %v1946, %v1923
        %v1963 = vadd.f32 %v1947, %v1927
        %v1964 = vadd.f32 %v1948, %v1929
        %v1965 = vadd.f32 %v1949, %v1931
        %v1966 = vadd.f32 %v1950, %v1933
        %1967 = vst [vmem:[#allocation2] sm:$0xff] %v1951
        %1968 = vst.msk [vmem:[#allocation2 + $0x8] sm:$0xff] %vm593, %v1952
        %1969 = vst [vmem:[#allocation2 + $0x10] sm:$0xff] %v1953
        %1970 = vst.msk [vmem:[#allocation2 + $0x18] sm:$0xff] %vm593, %v1954
        %1971 = vst [vmem:[#allocation2 + $0x20] sm:$0xff] %v1955
        %1972 = vst.msk [vmem:[#allocation2 + $0x28] sm:$0xff] %vm593, %v1956
        %1973 = vst [vmem:[#allocation2 + $0x30] sm:$0xff] %v1957
        %1974 = vst.msk [vmem:[#allocation2 + $0x38] sm:$0xff] %vm593, %v1958
        %1975 = vst [vmem:[#allocation2 + $0x40] sm:$0xff] %v1959
        %1976 = vst.msk [vmem:[#allocation2 + $0x48] sm:$0xff] %vm593, %v1960
        %1977 = vst [vmem:[#allocation2 + $0x50] sm:$0xff] %v1961
        %1978 = vst.msk [vmem:[#allocation2 + $0x58] sm:$0xff] %vm593, %v1962
        %1979 = vst [vmem:[#allocation2 + $0x60] sm:$0xff] %v1963
        %1980 = vst.msk [vmem:[#allocation2 + $0x68] sm:$0xff] %vm593, %v1964
        %1981 = vst [vmem:[#allocation2 + $0x70] sm:$0xff] %v1965
        %1982 = vst.msk [vmem:[#allocation2 + $0x78] sm:$0xff] %vm593, %v1966
        %v1983 = vld [vmem:[%s403] sm:$0xff]
        %v1984 = vld [vmem:[%s403 + $0x8] sm:$0xff]
        %v1985 = vld [vmem:[%s403 + $0x10] sm:$0xff]
        %v1986 = vld [vmem:[%s403 + $0x18] sm:$0xff]
        %v1987 = vld [vmem:[%s403 + $0x20] sm:$0xff]
        %v1988 = vld [vmem:[%s403 + $0x28] sm:$0xff]
        %v1989 = vld [vmem:[%s403 + $0x30] sm:$0xff]
        %v1990 = vld [vmem:[%s403 + $0x38] sm:$0xff]
        %s1991 = scalar_lea.vmem %s6, 960
        %v1992 = vld [vmem:[%s1991] sm:$0xff]
        %v1993 = vld [vmem:[%s1991 + $0x8] sm:$0xff]
        %v1994 = vld [vmem:[%s1991 + $0x10] sm:$0xff]
        %v1995 = vld [vmem:[%s1991 + $0x18] sm:$0xff]
        %v1996 = vld [vmem:[%s1991 + $0x20] sm:$0xff]
        %v1997 = vld [vmem:[%s1991 + $0x28] sm:$0xff]
        %v1998 = vld [vmem:[%s1991 + $0x30] sm:$0xff]
        %v1999 = vld [vmem:[%s1991 + $0x38] sm:$0xff]
        %v2000 = vld [vmem:[%s1991 + $0x40] sm:$0xff]
        %v2001 = vld [vmem:[%s1991 + $0x48] sm:$0xff]
        %v2002 = vld [vmem:[%s1991 + $0x50] sm:$0xff]
        %v2003 = vld [vmem:[%s1991 + $0x58] sm:$0xff]
        %v2004 = vld [vmem:[%s1991 + $0x60] sm:$0xff]
        %v2005 = vld [vmem:[%s1991 + $0x68] sm:$0xff]
        %v2006 = vld [vmem:[%s1991 + $0x70] sm:$0xff]
        %v2007 = vld [vmem:[%s1991 + $0x78] sm:$0xff]
        %v2008 = vld [vmem:[%s1991 + $0x80] sm:$0xff]
        %v2009 = vld [vmem:[%s1991 + $0x88] sm:$0xff]
        %v2010 = vld [vmem:[%s1991 + $0x90] sm:$0xff]
        %v2011 = vld [vmem:[%s1991 + $0x98] sm:$0xff]
        %v2012 = vld [vmem:[%s1991 + $0xa0] sm:$0xff]
        %v2013 = vld [vmem:[%s1991 + $0xa8] sm:$0xff]
        %v2014 = vld [vmem:[%s1991 + $0xb0] sm:$0xff]
        %v2015 = vld [vmem:[%s1991 + $0xb8] sm:$0xff]
        %v2024 = vunpack.c.l.b16 %v1983
        %v2025 = vunpack.c.h.b16 %v1983
        %v2026 = vunpack.c.l.b16 %v1984
        %v2027 = vunpack.c.h.b16 %v1984
        %v2028 = vunpack.c.l.b16 %v1985
        %v2029 = vunpack.c.h.b16 %v1985
        %v2030 = vunpack.c.l.b16 %v1986
        %v2031 = vunpack.c.h.b16 %v1986
        %v2032 = vunpack.c.l.b16 %v1987
        %v2033 = vunpack.c.h.b16 %v1987
        %v2034 = vunpack.c.l.b16 %v1988
        %v2035 = vunpack.c.h.b16 %v1988
        %v2036 = vunpack.c.l.b16 %v1989
        %v2037 = vunpack.c.h.b16 %v1989
        %v2038 = vunpack.c.l.b16 %v1990
        %v2039 = vunpack.c.h.b16 %v1990
        %v2040 = vpack.c.b16 %v2026, %v2024
        %v2041 = vpack.c.b16 %v2027, %v2025
        %v2042 = vpack.c.b16 %v2030, %v2028
        %v2043 = vpack.c.b16 %v2031, %v2029
        %v2044 = vpack.c.b16 %v2034, %v2032
        %v2045 = vpack.c.b16 %v2035, %v2033
        %v2046 = vpack.c.b16 %v2038, %v2036
        %v2047 = vpack.c.b16 %v2039, %v2037
        %v2076 = vunpack.c.l.b16 %v1992
        %v2077 = vunpack.c.h.b16 %v1992
        %v2078 = vunpack.c.l.b16 %v1993
        %v2079 = vunpack.c.h.b16 %v1993
        %v2080 = vunpack.c.l.b16 %v1994
        %v2081 = vunpack.c.h.b16 %v1994
        %v2082 = vunpack.c.l.b16 %v1995
        %v2083 = vunpack.c.h.b16 %v1995
        %v2084 = vunpack.c.l.b16 %v1996
        %v2085 = vunpack.c.h.b16 %v1996
        %v2086 = vunpack.c.l.b16 %v1997
        %v2087 = vunpack.c.h.b16 %v1997
        %v2088 = vunpack.c.l.b16 %v1998
        %v2089 = vunpack.c.h.b16 %v1998
        %v2090 = vunpack.c.l.b16 %v1999
        %v2091 = vunpack.c.h.b16 %v1999
        %v2092 = vunpack.c.l.b16 %v2000
        %v2093 = vunpack.c.h.b16 %v2000
        %v2094 = vunpack.c.l.b16 %v2001
        %v2095 = vunpack.c.h.b16 %v2001
        %v2096 = vunpack.c.l.b16 %v2002
        %v2097 = vunpack.c.h.b16 %v2002
        %v2098 = vunpack.c.l.b16 %v2003
        %v2099 = vunpack.c.h.b16 %v2003
        %v2100 = vunpack.c.l.b16 %v2004
        %v2101 = vunpack.c.h.b16 %v2004
        %v2102 = vunpack.c.l.b16 %v2005
        %v2103 = vunpack.c.h.b16 %v2005
        %v2104 = vunpack.c.l.b16 %v2006
        %v2105 = vunpack.c.h.b16 %v2006
        %v2106 = vunpack.c.l.b16 %v2007
        %v2107 = vunpack.c.h.b16 %v2007
        %v2108 = vunpack.c.l.b16 %v2008
        %v2109 = vunpack.c.h.b16 %v2008
        %v2110 = vunpack.c.l.b16 %v2009
        %v2111 = vunpack.c.h.b16 %v2009
        %v2112 = vunpack.c.l.b16 %v2010
        %v2113 = vunpack.c.h.b16 %v2010
        %v2114 = vunpack.c.l.b16 %v2011
        %v2115 = vunpack.c.h.b16 %v2011
        %v2116 = vunpack.c.l.b16 %v2012
        %v2117 = vunpack.c.h.b16 %v2012
        %v2118 = vunpack.c.l.b16 %v2013
        %v2119 = vunpack.c.h.b16 %v2013
        %v2120 = vunpack.c.l.b16 %v2014
        %v2121 = vunpack.c.h.b16 %v2014
        %v2122 = vunpack.c.l.b16 %v2015
        %v2123 = vunpack.c.h.b16 %v2015
        %v2124 = vpack.c.b16 %v2078, %v2076
        %v2125 = vpack.c.b16 %v2079, %v2077
        %v2126 = vpack.c.b16 %v2082, %v2080
        %v2127 = vpack.c.b16 %v2083, %v2081
        %v2128 = vpack.c.b16 %v2086, %v2084
        %v2129 = vpack.c.b16 %v2087, %v2085
        %v2130 = vpack.c.b16 %v2090, %v2088
        %v2131 = vpack.c.b16 %v2091, %v2089
        %v2132 = vpack.c.b16 %v2094, %v2092
        %v2133 = vpack.c.b16 %v2095, %v2093
        %v2134 = vpack.c.b16 %v2098, %v2096
        %v2135 = vpack.c.b16 %v2099, %v2097
        %v2136 = vpack.c.b16 %v2102, %v2100
        %v2137 = vpack.c.b16 %v2103, %v2101
        %v2138 = vpack.c.b16 %v2106, %v2104
        %v2139 = vpack.c.b16 %v2107, %v2105
        %v2140 = vpack.c.b16 %v2110, %v2108
        %v2141 = vpack.c.b16 %v2111, %v2109
        %v2142 = vpack.c.b16 %v2114, %v2112
        %v2143 = vpack.c.b16 %v2115, %v2113
        %v2144 = vpack.c.b16 %v2118, %v2116
        %v2145 = vpack.c.b16 %v2119, %v2117
        %v2146 = vpack.c.b16 %v2122, %v2120
        %v2147 = vpack.c.b16 %v2123, %v2121
        %v2173 = vsel %vm593, %v2041, 0
        %v2176 = vsel %vm593, %v2043, 0
        %v2179 = vsel %vm593, %v2045, 0
        %v2182 = vsel %vm593, %v2047, 0
        %2184 = vmatprep.subr.bf16.mxu0 %v2125
        %2185 = vmatpush1.bf16.msra.mxu0 %v2124
        %2186 = vmatprep.subr.bf16.mxu0 %v2127
        %2187 = vmatpush1.bf16.msra.mxu0 %v2126
        %2188 = vmatprep.subr.bf16.mxu0 %v2129
        %2189 = vmatpush1.bf16.msra.mxu0 %v2128
        %2190 = vmatprep.subr.bf16.mxu0 %v2131
        %2191 = vmatpush1.bf16.msra.mxu0 %v2130
        %2192 = vmatprep.subr.bf16.mxu0 %v2133
        %2193 = vmatpush1.bf16.msra.mxu0 %v2132
        %2194 = vmatprep.subr.bf16.mxu0 %v2135
        %2195 = vmatpush1.bf16.msra.mxu0 %v2134
        %2196 = vmatprep.subr.bf16.mxu0 %v2137
        %2197 = vmatpush1.bf16.msra.mxu0 %v2136
        %2198 = vmatprep.subr.bf16.mxu0 %v2139
        %2199 = vmatpush1.bf16.msra.mxu0 %v2138
        %2200 = vmatprep.subr.bf16.mxu0 %v2141
        %2201 = vmatpush1.bf16.msra.mxu0 %v2140
        %2202 = vmatprep.subr.bf16.mxu0 %v2143
        %2203 = vmatpush1.bf16.msra.mxu0 %v2142
        %2204 = vmatprep.subr.bf16.mxu0 %v2145
        %2205 = vmatpush1.bf16.msra.mxu0 %v2144
        %2206 = vmatprep.subr.bf16.mxu0 %v2147
        %2207 = vmatpush1.bf16.msra.mxu0 %v2146
        %2208 = vmatprep.subr.bf16.mxu0 0
        %2209 = vmatpush1.bf16.msra.mxu0 0
        %2210 = vmatprep.subr.bf16.mxu0 0
        %2211 = vmatpush1.bf16.msra.mxu0 0
        %2212 = vmatprep.subr.bf16.mxu0 0
        %2213 = vmatpush1.bf16.msra.mxu0 0
        %2214 = vmatprep.subr.bf16.mxu0 0
        %2215 = vmatpush1.bf16.msra.mxu0 0
        %2216 = vmatprep.mubr.bf16.mxu0 %v2173
        %2217 = vmatmul.mubr.bf16.gmra.mrb[0].mxu0 %v2040
        %v2218 = vpop.f32.mrb[0].mxu0
        %v2219 = vadd.f32 0.0, %v2218
        %v2220 = vpop.f32.mrb[0].mxu0
        %v2221 = vadd.f32 0.0, %v2220
        %v2222 = vpop.f32.mrb[0].mxu0
        %v2223 = vadd.f32 0.0, %v2222
        %v2224 = vpop.f32.mrb[0].mxu0
        %v2225 = vadd.f32 0.0, %v2224
        %2226 = vmatprep.mubr.bf16.mxu0 %v2176
        %2227 = vmatmul.mubr.bf16.gmra.mrb[0].mxu0 %v2042
        %v2228 = vpop.f32.mrb[0].mxu0
        %v2229 = vadd.f32 0.0, %v2228
        %v2230 = vpop.f32.mrb[0].mxu0
        %v2231 = vadd.f32 0.0, %v2230
        %v2232 = vpop.f32.mrb[0].mxu0
        %v2233 = vadd.f32 0.0, %v2232
        %v2234 = vpop.f32.mrb[0].mxu0
        %v2235 = vadd.f32 0.0, %v2234
        %2236 = vmatprep.mubr.bf16.mxu0 %v2179
        %2237 = vmatmul.mubr.bf16.gmra.mrb[0].mxu0 %v2044
        %v2238 = vpop.f32.mrb[0].mxu0
        %v2239 = vadd.f32 0.0, %v2238
        %v2240 = vpop.f32.mrb[0].mxu0
        %v2241 = vadd.f32 0.0, %v2240
        %v2242 = vpop.f32.mrb[0].mxu0
        %v2243 = vadd.f32 0.0, %v2242
        %v2244 = vpop.f32.mrb[0].mxu0
        %v2245 = vadd.f32 0.0, %v2244
        %2246 = vmatprep.mubr.bf16.mxu0 %v2182
        %2247 = vmatmul.mubr.bf16.gmra.mrb[0].mxu0 %v2046
        %v2248 = vpop.f32.mrb[0].mxu0
        %v2249 = vadd.f32 0.0, %v2248
        %v2250 = vpop.f32.mrb[0].mxu0
        %v2251 = vadd.f32 0.0, %v2250
        %v2252 = vpop.f32.mrb[0].mxu0
        %v2253 = vadd.f32 0.0, %v2252
        %v2254 = vpop.f32.mrb[0].mxu0
        %v2255 = vadd.f32 0.0, %v2254
        %2256 = vdwg.mxu0
        %v2257 = vld [vmem:[#allocation2] sm:$0xff]
        %v2258 = vld [vmem:[#allocation2 + $0x8] sm:$0xff]
        %v2259 = vld [vmem:[#allocation2 + $0x10] sm:$0xff]
        %v2260 = vld [vmem:[#allocation2 + $0x18] sm:$0xff]
        %v2261 = vld [vmem:[#allocation2 + $0x20] sm:$0xff]
        %v2262 = vld [vmem:[#allocation2 + $0x28] sm:$0xff]
        %v2263 = vld [vmem:[#allocation2 + $0x30] sm:$0xff]
        %v2264 = vld [vmem:[#allocation2 + $0x38] sm:$0xff]
        %v2265 = vld [vmem:[#allocation2 + $0x40] sm:$0xff]
        %v2266 = vld [vmem:[#allocation2 + $0x48] sm:$0xff]
        %v2267 = vld [vmem:[#allocation2 + $0x50] sm:$0xff]
        %v2268 = vld [vmem:[#allocation2 + $0x58] sm:$0xff]
        %v2269 = vld [vmem:[#allocation2 + $0x60] sm:$0xff]
        %v2270 = vld [vmem:[#allocation2 + $0x68] sm:$0xff]
        %v2271 = vld [vmem:[#allocation2 + $0x70] sm:$0xff]
        %v2272 = vld [vmem:[#allocation2 + $0x78] sm:$0xff]
        %v2273 = vadd.f32 %v2257, %v2219
        %v2274 = vadd.f32 %v2258, %v2221
        %v2275 = vadd.f32 %v2259, %v2223
        %v2276 = vadd.f32 %v2260, %v2225
        %v2277 = vadd.f32 %v2261, %v2229
        %v2278 = vadd.f32 %v2262, %v2231
        %v2279 = vadd.f32 %v2263, %v2233
        %v2280 = vadd.f32 %v2264, %v2235
        %v2281 = vadd.f32 %v2265, %v2239
        %v2282 = vadd.f32 %v2266, %v2241
        %v2283 = vadd.f32 %v2267, %v2243
        %v2284 = vadd.f32 %v2268, %v2245
        %v2285 = vadd.f32 %v2269, %v2249
        %v2286 = vadd.f32 %v2270, %v2251
        %v2287 = vadd.f32 %v2271, %v2253
        %v2288 = vadd.f32 %v2272, %v2255
        %2289 = vst [vmem:[#allocation2] sm:$0xff] %v2273
        %2290 = vst.msk [vmem:[#allocation2 + $0x8] sm:$0xff] %vm593, %v2274
        %2291 = vst [vmem:[#allocation2 + $0x10] sm:$0xff] %v2275
        %2292 = vst.msk [vmem:[#allocation2 + $0x18] sm:$0xff] %vm593, %v2276
        %2293 = vst [vmem:[#allocation2 + $0x20] sm:$0xff] %v2277
        %2294 = vst.msk [vmem:[#allocation2 + $0x28] sm:$0xff] %vm593, %v2278
        %2295 = vst [vmem:[#allocation2 + $0x30] sm:$0xff] %v2279
        %2296 = vst.msk [vmem:[#allocation2 + $0x38] sm:$0xff] %vm593, %v2280
        %2297 = vst [vmem:[#allocation2 + $0x40] sm:$0xff] %v2281
        %2298 = vst.msk [vmem:[#allocation2 + $0x48] sm:$0xff] %vm593, %v2282
        %2299 = vst [vmem:[#allocation2 + $0x50] sm:$0xff] %v2283
        %2300 = vst.msk [vmem:[#allocation2 + $0x58] sm:$0xff] %vm593, %v2284
        %2301 = vst [vmem:[#allocation2 + $0x60] sm:$0xff] %v2285
        %2302 = vst.msk [vmem:[#allocation2 + $0x68] sm:$0xff] %vm593, %v2286
        %2303 = vst [vmem:[#allocation2 + $0x70] sm:$0xff] %v2287
        %2304 = vst.msk [vmem:[#allocation2 + $0x78] sm:$0xff] %vm593, %v2288
        %v2305 = vld [vmem:[%s378 + $0x8] sm:$0xff]
        %v2306 = vld [vmem:[%s378 + $0x10] sm:$0xff]
        %v2307 = vld [vmem:[%s378 + $0x18] sm:$0xff]
        %v2308 = vld [vmem:[%s378 + $0x20] sm:$0xff]
        %v2309 = vld [vmem:[%s378 + $0x28] sm:$0xff]
        %v2310 = vld [vmem:[%s378 + $0x30] sm:$0xff]
        %v2311 = vld [vmem:[%s378 + $0x38] sm:$0xff]
        %v2312 = vld [vmem:[%s378 + $0x40] sm:$0xff]
        %s2313 = scalar_lea.vmem %s6, 1152
        %v2314 = vld [vmem:[%s2313] sm:$0xff]
        %v2315 = vld [vmem:[%s2313 + $0x8] sm:$0xff]
        %v2316 = vld [vmem:[%s2313 + $0x10] sm:$0xff]
        %v2317 = vld [vmem:[%s2313 + $0x18] sm:$0xff]
        %v2318 = vld [vmem:[%s2313 + $0x20] sm:$0xff]
        %v2319 = vld [vmem:[%s2313 + $0x28] sm:$0xff]
        %v2320 = vld [vmem:[%s2313 + $0x30] sm:$0xff]
        %v2321 = vld [vmem:[%s2313 + $0x38] sm:$0xff]
        %v2322 = vld [vmem:[%s2313 + $0x40] sm:$0xff]
        %v2323 = vld [vmem:[%s2313 + $0x48] sm:$0xff]
        %v2324 = vld [vmem:[%s2313 + $0x50] sm:$0xff]
        %v2325 = vld [vmem:[%s2313 + $0x58] sm:$0xff]
        %v2326 = vld [vmem:[%s2313 + $0x60] sm:$0xff]
        %v2327 = vld [vmem:[%s2313 + $0x68] sm:$0xff]
        %v2328 = vld [vmem:[%s2313 + $0x70] sm:$0xff]
        %v2329 = vld [vmem:[%s2313 + $0x78] sm:$0xff]
        %v2330 = vld [vmem:[%s2313 + $0x80] sm:$0xff]
        %v2331 = vld [vmem:[%s2313 + $0x88] sm:$0xff]
        %v2332 = vld [vmem:[%s2313 + $0x90] sm:$0xff]
        %v2333 = vld [vmem:[%s2313 + $0x98] sm:$0xff]
        %v2334 = vld [vmem:[%s2313 + $0xa0] sm:$0xff]
        %v2335 = vld [vmem:[%s2313 + $0xa8] sm:$0xff]
        %v2336 = vld [vmem:[%s2313 + $0xb0] sm:$0xff]
        %v2337 = vld [vmem:[%s2313 + $0xb8] sm:$0xff]
        %v2346 = vunpack.c.l.b16 %v2305
        %v2347 = vunpack.c.h.b16 %v2305
        %v2348 = vunpack.c.l.b16 %v2306
        %v2349 = vunpack.c.h.b16 %v2306
        %v2350 = vunpack.c.l.b16 %v2307
        %v2351 = vunpack.c.h.b16 %v2307
        %v2352 = vunpack.c.l.b16 %v2308
        %v2353 = vunpack.c.h.b16 %v2308
        %v2354 = vunpack.c.l.b16 %v2309
        %v2355 = vunpack.c.h.b16 %v2309
        %v2356 = vunpack.c.l.b16 %v2310
        %v2357 = vunpack.c.h.b16 %v2310
        %v2358 = vunpack.c.l.b16 %v2311
        %v2359 = vunpack.c.h.b16 %v2311
        %v2360 = vunpack.c.l.b16 %v2312
        %v2361 = vunpack.c.h.b16 %v2312
        %v2362 = vpack.c.b16 %v2348, %v2346
        %v2363 = vpack.c.b16 %v2349, %v2347
        %v2364 = vpack.c.b16 %v2352, %v2350
        %v2365 = vpack.c.b16 %v2353, %v2351
        %v2366 = vpack.c.b16 %v2356, %v2354
        %v2367 = vpack.c.b16 %v2357, %v2355
        %v2368 = vpack.c.b16 %v2360, %v2358
        %v2369 = vpack.c.b16 %v2361, %v2359
        %v2398 = vunpack.c.l.b16 %v2314
        %v2399 = vunpack.c.h.b16 %v2314
        %v2400 = vunpack.c.l.b16 %v2315
        %v2401 = vunpack.c.h.b16 %v2315
        %v2402 = vunpack.c.l.b16 %v2316
        %v2403 = vunpack.c.h.b16 %v2316
        %v2404 = vunpack.c.l.b16 %v2317
        %v2405 = vunpack.c.h.b16 %v2317
        %v2406 = vunpack.c.l.b16 %v2318
        %v2407 = vunpack.c.h.b16 %v2318
        %v2408 = vunpack.c.l.b16 %v2319
        %v2409 = vunpack.c.h.b16 %v2319
        %v2410 = vunpack.c.l.b16 %v2320
        %v2411 = vunpack.c.h.b16 %v2320
        %v2412 = vunpack.c.l.b16 %v2321
        %v2413 = vunpack.c.h.b16 %v2321
        %v2414 = vunpack.c.l.b16 %v2322
        %v2415 = vunpack.c.h.b16 %v2322
        %v2416 = vunpack.c.l.b16 %v2323
        %v2417 = vunpack.c.h.b16 %v2323
        %v2418 = vunpack.c.l.b16 %v2324
        %v2419 = vunpack.c.h.b16 %v2324
        %v2420 = vunpack.c.l.b16 %v2325
        %v2421 = vunpack.c.h.b16 %v2325
        %v2422 = vunpack.c.l.b16 %v2326
        %v2423 = vunpack.c.h.b16 %v2326
        %v2424 = vunpack.c.l.b16 %v2327
        %v2425 = vunpack.c.h.b16 %v2327
        %v2426 = vunpack.c.l.b16 %v2328
        %v2427 = vunpack.c.h.b16 %v2328
        %v2428 = vunpack.c.l.b16 %v2329
        %v2429 = vunpack.c.h.b16 %v2329
        %v2430 = vunpack.c.l.b16 %v2330
        %v2431 = vunpack.c.h.b16 %v2330
        %v2432 = vunpack.c.l.b16 %v2331
        %v2433 = vunpack.c.h.b16 %v2331
        %v2434 = vunpack.c.l.b16 %v2332
        %v2435 = vunpack.c.h.b16 %v2332
        %v2436 = vunpack.c.l.b16 %v2333
        %v2437 = vunpack.c.h.b16 %v2333
        %v2438 = vunpack.c.l.b16 %v2334
        %v2439 = vunpack.c.h.b16 %v2334
        %v2440 = vunpack.c.l.b16 %v2335
        %v2441 = vunpack.c.h.b16 %v2335
        %v2442 = vunpack.c.l.b16 %v2336
        %v2443 = vunpack.c.h.b16 %v2336
        %v2444 = vunpack.c.l.b16 %v2337
        %v2445 = vunpack.c.h.b16 %v2337
        %v2446 = vpack.c.b16 %v2400, %v2398
        %v2447 = vpack.c.b16 %v2401, %v2399
        %v2448 = vpack.c.b16 %v2404, %v2402
        %v2449 = vpack.c.b16 %v2405, %v2403
        %v2450 = vpack.c.b16 %v2408, %v2406
        %v2451 = vpack.c.b16 %v2409, %v2407
        %v2452 = vpack.c.b16 %v2412, %v2410
        %v2453 = vpack.c.b16 %v2413, %v2411
        %v2454 = vpack.c.b16 %v2416, %v2414
        %v2455 = vpack.c.b16 %v2417, %v2415
        %v2456 = vpack.c.b16 %v2420, %v2418
        %v2457 = vpack.c.b16 %v2421, %v2419
        %v2458 = vpack.c.b16 %v2424, %v2422
        %v2459 = vpack.c.b16 %v2425, %v2423
        %v2460 = vpack.c.b16 %v2428, %v2426
        %v2461 = vpack.c.b16 %v2429, %v2427
        %v2462 = vpack.c.b16 %v2432, %v2430
        %v2463 = vpack.c.b16 %v2433, %v2431
        %v2464 = vpack.c.b16 %v2436, %v2434
        %v2465 = vpack.c.b16 %v2437, %v2435
        %v2466 = vpack.c.b16 %v2440, %v2438
        %v2467 = vpack.c.b16 %v2441, %v2439
        %v2468 = vpack.c.b16 %v2444, %v2442
        %v2469 = vpack.c.b16 %v2445, %v2443
        %v2495 = vsel %vm593, %v2363, 0
        %v2498 = vsel %vm593, %v2365, 0
        %v2501 = vsel %vm593, %v2367, 0
        %v2504 = vsel %vm593, %v2369, 0
        %2506 = vmatprep.subr.bf16.mxu0 %v2447
        %2507 = vmatpush1.bf16.msra.mxu0 %v2446
        %2508 = vmatprep.subr.bf16.mxu0 %v2449
        %2509 = vmatpush1.bf16.msra.mxu0 %v2448
        %2510 = vmatprep.subr.bf16.mxu0 %v2451
        %2511 = vmatpush1.bf16.msra.mxu0 %v2450
        %2512 = vmatprep.subr.bf16.mxu0 %v2453
        %2513 = vmatpush1.bf16.msra.mxu0 %v2452
        %2514 = vmatprep.subr.bf16.mxu0 %v2455
        %2515 = vmatpush1.bf16.msra.mxu0 %v2454
        %2516 = vmatprep.subr.bf16.mxu0 %v2457
        %2517 = vmatpush1.bf16.msra.mxu0 %v2456
        %2518 = vmatprep.subr.bf16.mxu0 %v2459
        %2519 = vmatpush1.bf16.msra.mxu0 %v2458
        %2520 = vmatprep.subr.bf16.mxu0 %v2461
        %2521 = vmatpush1.bf16.msra.mxu0 %v2460
        %2522 = vmatprep.subr.bf16.mxu0 %v2463
        %2523 = vmatpush1.bf16.msra.mxu0 %v2462
        %2524 = vmatprep.subr.bf16.mxu0 %v2465
        %2525 = vmatpush1.bf16.msra.mxu0 %v2464
        %2526 = vmatprep.subr.bf16.mxu0 %v2467
        %2527 = vmatpush1.bf16.msra.mxu0 %v2466
        %2528 = vmatprep.subr.bf16.mxu0 %v2469
        %2529 = vmatpush1.bf16.msra.mxu0 %v2468
        %2530 = vmatprep.subr.bf16.mxu0 0
        %2531 = vmatpush1.bf16.msra.mxu0 0
        %2532 = vmatprep.subr.bf16.mxu0 0
        %2533 = vmatpush1.bf16.msra.mxu0 0
        %2534 = vmatprep.subr.bf16.mxu0 0
        %2535 = vmatpush1.bf16.msra.mxu0 0
        %2536 = vmatprep.subr.bf16.mxu0 0
        %2537 = vmatpush1.bf16.msra.mxu0 0
        %2538 = vmatprep.mubr.bf16.mxu0 %v2495
        %2539 = vmatmul.mubr.bf16.gmra.mrb[0].mxu0 %v2362
        %v2540 = vpop.f32.mrb[0].mxu0
        %v2541 = vadd.f32 0.0, %v2540
        %v2542 = vpop.f32.mrb[0].mxu0
        %v2543 = vadd.f32 0.0, %v2542
        %v2544 = vpop.f32.mrb[0].mxu0
        %v2545 = vadd.f32 0.0, %v2544
        %v2546 = vpop.f32.mrb[0].mxu0
        %v2547 = vadd.f32 0.0, %v2546
        %2548 = vmatprep.mubr.bf16.mxu0 %v2498
        %2549 = vmatmul.mubr.bf16.gmra.mrb[0].mxu0 %v2364
        %v2550 = vpop.f32.mrb[0].mxu0
        %v2551 = vadd.f32 0.0, %v2550
        %v2552 = vpop.f32.mrb[0].mxu0
        %v2553 = vadd.f32 0.0, %v2552
        %v2554 = vpop.f32.mrb[0].mxu0
        %v2555 = vadd.f32 0.0, %v2554
        %v2556 = vpop.f32.mrb[0].mxu0
        %v2557 = vadd.f32 0.0, %v2556
        %2558 = vmatprep.mubr.bf16.mxu0 %v2501
        %2559 = vmatmul.mubr.bf16.gmra.mrb[0].mxu0 %v2366
        %v2560 = vpop.f32.mrb[0].mxu0
        %v2561 = vadd.f32 0.0, %v2560
        %v2562 = vpop.f32.mrb[0].mxu0
        %v2563 = vadd.f32 0.0, %v2562
        %v2564 = vpop.f32.mrb[0].mxu0
        %v2565 = vadd.f32 0.0, %v2564
        %v2566 = vpop.f32.mrb[0].mxu0
        %v2567 = vadd.f32 0.0, %v2566
        %2568 = vmatprep.mubr.bf16.mxu0 %v2504
        %2569 = vmatmul.mubr.bf16.gmra.mrb[0].mxu0 %v2368
        %v2570 = vpop.f32.mrb[0].mxu0
        %v2571 = vadd.f32 0.0, %v2570
        %v2572 = vpop.f32.mrb[0].mxu0
        %v2573 = vadd.f32 0.0, %v2572
        %v2574 = vpop.f32.mrb[0].mxu0
        %v2575 = vadd.f32 0.0, %v2574
        %v2576 = vpop.f32.mrb[0].mxu0
        %v2577 = vadd.f32 0.0, %v2576
        %2578 = vdwg.mxu0
        %v2579 = vld [vmem:[#allocation2] sm:$0xff]
        %v2580 = vld [vmem:[#allocation2 + $0x8] sm:$0xff]
        %v2581 = vld [vmem:[#allocation2 + $0x10] sm:$0xff]
        %v2582 = vld [vmem:[#allocation2 + $0x18] sm:$0xff]
        %v2583 = vld [vmem:[#allocation2 + $0x20] sm:$0xff]
        %v2584 = vld [vmem:[#allocation2 + $0x28] sm:$0xff]
        %v2585 = vld [vmem:[#allocation2 + $0x30] sm:$0xff]
        %v2586 = vld [vmem:[#allocation2 + $0x38] sm:$0xff]
        %v2587 = vld [vmem:[#allocation2 + $0x40] sm:$0xff]
        %v2588 = vld [vmem:[#allocation2 + $0x48] sm:$0xff]
        %v2589 = vld [vmem:[#allocation2 + $0x50] sm:$0xff]
        %v2590 = vld [vmem:[#allocation2 + $0x58] sm:$0xff]
        %v2591 = vld [vmem:[#allocation2 + $0x60] sm:$0xff]
        %v2592 = vld [vmem:[#allocation2 + $0x68] sm:$0xff]
        %v2593 = vld [vmem:[#allocation2 + $0x70] sm:$0xff]
        %v2594 = vld [vmem:[#allocation2 + $0x78] sm:$0xff]
        %v2595 = vadd.f32 %v2579, %v2541
        %v2596 = vadd.f32 %v2580, %v2543
        %v2597 = vadd.f32 %v2581, %v2545
        %v2598 = vadd.f32 %v2582, %v2547
        %v2599 = vadd.f32 %v2583, %v2551
        %v2600 = vadd.f32 %v2584, %v2553
        %v2601 = vadd.f32 %v2585, %v2555
        %v2602 = vadd.f32 %v2586, %v2557
        %v2603 = vadd.f32 %v2587, %v2561
        %v2604 = vadd.f32 %v2588, %v2563
        %v2605 = vadd.f32 %v2589, %v2565
        %v2606 = vadd.f32 %v2590, %v2567
        %v2607 = vadd.f32 %v2591, %v2571
        %v2608 = vadd.f32 %v2592, %v2573
        %v2609 = vadd.f32 %v2593, %v2575
        %v2610 = vadd.f32 %v2594, %v2577
        %2611 = vst [vmem:[#allocation2] sm:$0xff] %v2595
        %2612 = vst.msk [vmem:[#allocation2 + $0x8] sm:$0xff] %vm593, %v2596
        %2613 = vst [vmem:[#allocation2 + $0x10] sm:$0xff] %v2597
        %2614 = vst.msk [vmem:[#allocation2 + $0x18] sm:$0xff] %vm593, %v2598
        %2615 = vst [vmem:[#allocation2 + $0x20] sm:$0xff] %v2599
        %2616 = vst.msk [vmem:[#allocation2 + $0x28] sm:$0xff] %vm593, %v2600
        %2617 = vst [vmem:[#allocation2 + $0x30] sm:$0xff] %v2601
        %2618 = vst.msk [vmem:[#allocation2 + $0x38] sm:$0xff] %vm593, %v2602
        %2619 = vst [vmem:[#allocation2 + $0x40] sm:$0xff] %v2603
        %2620 = vst.msk [vmem:[#allocation2 + $0x48] sm:$0xff] %vm593, %v2604
        %2621 = vst [vmem:[#allocation2 + $0x50] sm:$0xff] %v2605
        %2622 = vst.msk [vmem:[#allocation2 + $0x58] sm:$0xff] %vm593, %v2606
        %2623 = vst [vmem:[#allocation2 + $0x60] sm:$0xff] %v2607
        %2624 = vst.msk [vmem:[#allocation2 + $0x68] sm:$0xff] %vm593, %v2608
        %2625 = vst [vmem:[#allocation2 + $0x70] sm:$0xff] %v2609
        %2626 = vst.msk [vmem:[#allocation2 + $0x78] sm:$0xff] %vm593, %v2610
        %v2627 = vld [vmem:[%s383 + $0x8] sm:$0xff]
        %v2628 = vld [vmem:[%s383 + $0x10] sm:$0xff]
        %v2629 = vld [vmem:[%s383 + $0x18] sm:$0xff]
        %v2630 = vld [vmem:[%s383 + $0x20] sm:$0xff]
        %v2631 = vld [vmem:[%s383 + $0x28] sm:$0xff]
        %v2632 = vld [vmem:[%s383 + $0x30] sm:$0xff]
        %v2633 = vld [vmem:[%s383 + $0x38] sm:$0xff]
        %v2634 = vld [vmem:[%s383 + $0x40] sm:$0xff]
        %s2635 = scalar_lea.vmem %s6, 1344
        %v2636 = vld [vmem:[%s2635] sm:$0xff]
        %v2637 = vld [vmem:[%s2635 + $0x8] sm:$0xff]
        %v2638 = vld [vmem:[%s2635 + $0x10] sm:$0xff]
        %v2639 = vld [vmem:[%s2635 + $0x18] sm:$0xff]
        %v2640 = vld [vmem:[%s2635 + $0x20] sm:$0xff]
        %v2641 = vld [vmem:[%s2635 + $0x28] sm:$0xff]
        %v2642 = vld [vmem:[%s2635 + $0x30] sm:$0xff]
        %v2643 = vld [vmem:[%s2635 + $0x38] sm:$0xff]
        %v2644 = vld [vmem:[%s2635 + $0x40] sm:$0xff]
        %v2645 = vld [vmem:[%s2635 + $0x48] sm:$0xff]
        %v2646 = vld [vmem:[%s2635 + $0x50] sm:$0xff]
        %v2647 = vld [vmem:[%s2635 + $0x58] sm:$0xff]
        %v2648 = vld [vmem:[%s2635 + $0x60] sm:$0xff]
        %v2649 = vld [vmem:[%s2635 + $0x68] sm:$0xff]
        %v2650 = vld [vmem:[%s2635 + $0x70] sm:$0xff]
        %v2651 = vld [vmem:[%s2635 + $0x78] sm:$0xff]
        %v2652 = vld [vmem:[%s2635 + $0x80] sm:$0xff]
        %v2653 = vld [vmem:[%s2635 + $0x88] sm:$0xff]
        %v2654 = vld [vmem:[%s2635 + $0x90] sm:$0xff]
        %v2655 = vld [vmem:[%s2635 + $0x98] sm:$0xff]
        %v2656 = vld [vmem:[%s2635 + $0xa0] sm:$0xff]
        %v2657 = vld [vmem:[%s2635 + $0xa8] sm:$0xff]
        %v2658 = vld [vmem:[%s2635 + $0xb0] sm:$0xff]
        %v2659 = vld [vmem:[%s2635 + $0xb8] sm:$0xff]
        %v2668 = vunpack.c.l.b16 %v2627
        %v2669 = vunpack.c.h.b16 %v2627
        %v2670 = vunpack.c.l.b16 %v2628
        %v2671 = vunpack.c.h.b16 %v2628
        %v2672 = vunpack.c.l.b16 %v2629
        %v2673 = vunpack.c.h.b16 %v2629
        %v2674 = vunpack.c.l.b16 %v2630
        %v2675 = vunpack.c.h.b16 %v2630
        %v2676 = vunpack.c.l.b16 %v2631
        %v2677 = vunpack.c.h.b16 %v2631
        %v2678 = vunpack.c.l.b16 %v2632
        %v2679 = vunpack.c.h.b16 %v2632
        %v2680 = vunpack.c.l.b16 %v2633
        %v2681 = vunpack.c.h.b16 %v2633
        %v2682 = vunpack.c.l.b16 %v2634
        %v2683 = vunpack.c.h.b16 %v2634
        %v2684 = vpack.c.b16 %v2670, %v2668
        %v2685 = vpack.c.b16 %v2671, %v2669
        %v2686 = vpack.c.b16 %v2674, %v2672
        %v2687 = vpack.c.b16 %v2675, %v2673
        %v2688 = vpack.c.b16 %v2678, %v2676
        %v2689 = vpack.c.b16 %v2679, %v2677
        %v2690 = vpack.c.b16 %v2682, %v2680
        %v2691 = vpack.c.b16 %v2683, %v2681
        %v2720 = vunpack.c.l.b16 %v2636
        %v2721 = vunpack.c.h.b16 %v2636
        %v2722 = vunpack.c.l.b16 %v2637
        %v2723 = vunpack.c.h.b16 %v2637
        %v2724 = vunpack.c.l.b16 %v2638
        %v2725 = vunpack.c.h.b16 %v2638
        %v2726 = vunpack.c.l.b16 %v2639
        %v2727 = vunpack.c.h.b16 %v2639
        %v2728 = vunpack.c.l.b16 %v2640
        %v2729 = vunpack.c.h.b16 %v2640
        %v2730 = vunpack.c.l.b16 %v2641
        %v2731 = vunpack.c.h.b16 %v2641
        %v2732 = vunpack.c.l.b16 %v2642
        %v2733 = vunpack.c.h.b16 %v2642
        %v2734 = vunpack.c.l.b16 %v2643
        %v2735 = vunpack.c.h.b16 %v2643
        %v2736 = vunpack.c.l.b16 %v2644
        %v2737 = vunpack.c.h.b16 %v2644
        %v2738 = vunpack.c.l.b16 %v2645
        %v2739 = vunpack.c.h.b16 %v2645
        %v2740 = vunpack.c.l.b16 %v2646
        %v2741 = vunpack.c.h.b16 %v2646
        %v2742 = vunpack.c.l.b16 %v2647
        %v2743 = vunpack.c.h.b16 %v2647
        %v2744 = vunpack.c.l.b16 %v2648
        %v2745 = vunpack.c.h.b16 %v2648
        %v2746 = vunpack.c.l.b16 %v2649
        %v2747 = vunpack.c.h.b16 %v2649
        %v2748 = vunpack.c.l.b16 %v2650
        %v2749 = vunpack.c.h.b16 %v2650
        %v2750 = vunpack.c.l.b16 %v2651
        %v2751 = vunpack.c.h.b16 %v2651
        %v2752 = vunpack.c.l.b16 %v2652
        %v2753 = vunpack.c.h.b16 %v2652
        %v2754 = vunpack.c.l.b16 %v2653
        %v2755 = vunpack.c.h.b16 %v2653
        %v2756 = vunpack.c.l.b16 %v2654
        %v2757 = vunpack.c.h.b16 %v2654
        %v2758 = vunpack.c.l.b16 %v2655
        %v2759 = vunpack.c.h.b16 %v2655
        %v2760 = vunpack.c.l.b16 %v2656
        %v2761 = vunpack.c.h.b16 %v2656
        %v2762 = vunpack.c.l.b16 %v2657
        %v2763 = vunpack.c.h.b16 %v2657
        %v2764 = vunpack.c.l.b16 %v2658
        %v2765 = vunpack.c.h.b16 %v2658
        %v2766 = vunpack.c.l.b16 %v2659
        %v2767 = vunpack.c.h.b16 %v2659
        %v2768 = vpack.c.b16 %v2722, %v2720
        %v2769 = vpack.c.b16 %v2723, %v2721
        %v2770 = vpack.c.b16 %v2726, %v2724
        %v2771 = vpack.c.b16 %v2727, %v2725
        %v2772 = vpack.c.b16 %v2730, %v2728
        %v2773 = vpack.c.b16 %v2731, %v2729
        %v2774 = vpack.c.b16 %v2734, %v2732
        %v2775 = vpack.c.b16 %v2735, %v2733
        %v2776 = vpack.c.b16 %v2738, %v2736
        %v2777 = vpack.c.b16 %v2739, %v2737
        %v2778 = vpack.c.b16 %v2742, %v2740
        %v2779 = vpack.c.b16 %v2743, %v2741
        %v2780 = vpack.c.b16 %v2746, %v2744
        %v2781 = vpack.c.b16 %v2747, %v2745
        %v2782 = vpack.c.b16 %v2750, %v2748
        %v2783 = vpack.c.b16 %v2751, %v2749
        %v2784 = vpack.c.b16 %v2754, %v2752
        %v2785 = vpack.c.b16 %v2755, %v2753
        %v2786 = vpack.c.b16 %v2758, %v2756
        %v2787 = vpack.c.b16 %v2759, %v2757
        %v2788 = vpack.c.b16 %v2762, %v2760
        %v2789 = vpack.c.b16 %v2763, %v2761
        %v2790 = vpack.c.b16 %v2766, %v2764
        %v2791 = vpack.c.b16 %v2767, %v2765
        %v2817 = vsel %vm593, %v2685, 0
        %v2820 = vsel %vm593, %v2687, 0
        %v2823 = vsel %vm593, %v2689, 0
        %v2826 = vsel %vm593, %v2691, 0
        %2828 = vmatprep.subr.bf16.mxu0 %v2769
        %2829 = vmatpush1.bf16.msra.mxu0 %v2768
        %2830 = vmatprep.subr.bf16.mxu0 %v2771
        %2831 = vmatpush1.bf16.msra.mxu0 %v2770
        %2832 = vmatprep.subr.bf16.mxu0 %v2773
        %2833 = vmatpush1.bf16.msra.mxu0 %v2772
        %2834 = vmatprep.subr.bf16.mxu0 %v2775
        %2835 = vmatpush1.bf16.msra.mxu0 %v2774
        %2836 = vmatprep.subr.bf16.mxu0 %v2777
        %2837 = vmatpush1.bf16.msra.mxu0 %v2776
        %2838 = vmatprep.subr.bf16.mxu0 %v2779
        %2839 = vmatpush1.bf16.msra.mxu0 %v2778
        %2840 = vmatprep.subr.bf16.mxu0 %v2781
        %2841 = vmatpush1.bf16.msra.mxu0 %v2780
        %2842 = vmatprep.subr.bf16.mxu0 %v2783
        %2843 = vmatpush1.bf16.msra.mxu0 %v2782
        %2844 = vmatprep.subr.bf16.mxu0 %v2785
        %2845 = vmatpush1.bf16.msra.mxu0 %v2784
        %2846 = vmatprep.subr.bf16.mxu0 %v2787
        %2847 = vmatpush1.bf16.msra.mxu0 %v2786
        %2848 = vmatprep.subr.bf16.mxu0 %v2789
        %2849 = vmatpush1.bf16.msra.mxu0 %v2788
        %2850 = vmatprep.subr.bf16.mxu0 %v2791
        %2851 = vmatpush1.bf16.msra.mxu0 %v2790
        %2852 = vmatprep.subr.bf16.mxu0 0
        %2853 = vmatpush1.bf16.msra.mxu0 0
        %2854 = vmatprep.subr.bf16.mxu0 0
        %2855 = vmatpush1.bf16.msra.mxu0 0
        %2856 = vmatprep.subr.bf16.mxu0 0
        %2857 = vmatpush1.bf16.msra.mxu0 0
        %2858 = vmatprep.subr.bf16.mxu0 0
        %2859 = vmatpush1.bf16.msra.mxu0 0
        %2860 = vmatprep.mubr.bf16.mxu0 %v2817
        %2861 = vmatmul.mubr.bf16.gmra.mrb[0].mxu0 %v2684
        %v2862 = vpop.f32.mrb[0].mxu0
        %v2863 = vadd.f32 0.0, %v2862
        %v2864 = vpop.f32.mrb[0].mxu0
        %v2865 = vadd.f32 0.0, %v2864
        %v2866 = vpop.f32.mrb[0].mxu0
        %v2867 = vadd.f32 0.0, %v2866
        %v2868 = vpop.f32.mrb[0].mxu0
        %v2869 = vadd.f32 0.0, %v2868
        %2870 = vmatprep.mubr.bf16.mxu0 %v2820
        %2871 = vmatmul.mubr.bf16.gmra.mrb[0].mxu0 %v2686
        %v2872 = vpop.f32.mrb[0].mxu0
        %v2873 = vadd.f32 0.0, %v2872
        %v2874 = vpop.f32.mrb[0].mxu0
        %v2875 = vadd.f32 0.0, %v2874
        %v2876 = vpop.f32.mrb[0].mxu0
        %v2877 = vadd.f32 0.0, %v2876
        %v2878 = vpop.f32.mrb[0].mxu0
        %v2879 = vadd.f32 0.0, %v2878
        %2880 = vmatprep.mubr.bf16.mxu0 %v2823
        %2881 = vmatmul.mubr.bf16.gmra.mrb[0].mxu0 %v2688
        %v2882 = vpop.f32.mrb[0].mxu0
        %v2883 = vadd.f32 0.0, %v2882
        %v2884 = vpop.f32.mrb[0].mxu0
        %v2885 = vadd.f32 0.0, %v2884
        %v2886 = vpop.f32.mrb[0].mxu0
        %v2887 = vadd.f32 0.0, %v2886
        %v2888 = vpop.f32.mrb[0].mxu0
        %v2889 = vadd.f32 0.0, %v2888
        %2890 = vmatprep.mubr.bf16.mxu0 %v2826
        %2891 = vmatmul.mubr.bf16.gmra.mrb[0].mxu0 %v2690
        %v2892 = vpop.f32.mrb[0].mxu0
        %v2893 = vadd.f32 0.0, %v2892
        %v2894 = vpop.f32.mrb[0].mxu0
        %v2895 = vadd.f32 0.0, %v2894
        %v2896 = vpop.f32.mrb[0].mxu0
        %v2897 = vadd.f32 0.0, %v2896
        %v2898 = vpop.f32.mrb[0].mxu0
        %v2899 = vadd.f32 0.0, %v2898
        %2900 = vdwg.mxu0
        %v2901 = vld [vmem:[#allocation2] sm:$0xff]
        %v2902 = vld [vmem:[#allocation2 + $0x8] sm:$0xff]
        %v2903 = vld [vmem:[#allocation2 + $0x10] sm:$0xff]
        %v2904 = vld [vmem:[#allocation2 + $0x18] sm:$0xff]
        %v2905 = vld [vmem:[#allocation2 + $0x20] sm:$0xff]
        %v2906 = vld [vmem:[#allocation2 + $0x28] sm:$0xff]
        %v2907 = vld [vmem:[#allocation2 + $0x30] sm:$0xff]
        %v2908 = vld [vmem:[#allocation2 + $0x38] sm:$0xff]
        %v2909 = vld [vmem:[#allocation2 + $0x40] sm:$0xff]
        %v2910 = vld [vmem:[#allocation2 + $0x48] sm:$0xff]
        %v2911 = vld [vmem:[#allocation2 + $0x50] sm:$0xff]
        %v2912 = vld [vmem:[#allocation2 + $0x58] sm:$0xff]
        %v2913 = vld [vmem:[#allocation2 + $0x60] sm:$0xff]
        %v2914 = vld [vmem:[#allocation2 + $0x68] sm:$0xff]
        %v2915 = vld [vmem:[#allocation2 + $0x70] sm:$0xff]
        %v2916 = vld [vmem:[#allocation2 + $0x78] sm:$0xff]
        %v2917 = vadd.f32 %v2901, %v2863
        %v2918 = vadd.f32 %v2902, %v2865
        %v2919 = vadd.f32 %v2903, %v2867
        %v2920 = vadd.f32 %v2904, %v2869
        %v2921 = vadd.f32 %v2905, %v2873
        %v2922 = vadd.f32 %v2906, %v2875
        %v2923 = vadd.f32 %v2907, %v2877
        %v2924 = vadd.f32 %v2908, %v2879
        %v2925 = vadd.f32 %v2909, %v2883
        %v2926 = vadd.f32 %v2910, %v2885
        %v2927 = vadd.f32 %v2911, %v2887
        %v2928 = vadd.f32 %v2912, %v2889
        %v2929 = vadd.f32 %v2913, %v2893
        %v2930 = vadd.f32 %v2914, %v2895
        %v2931 = vadd.f32 %v2915, %v2897
        %v2932 = vadd.f32 %v2916, %v2899
        %2933 = vst [vmem:[#allocation2] sm:$0xff] %v2917
        %2934 = vst.msk [vmem:[#allocation2 + $0x8] sm:$0xff] %vm593, %v2918
        %2935 = vst [vmem:[#allocation2 + $0x10] sm:$0xff] %v2919
        %2936 = vst.msk [vmem:[#allocation2 + $0x18] sm:$0xff] %vm593, %v2920
        %2937 = vst [vmem:[#allocation2 + $0x20] sm:$0xff] %v2921
        %2938 = vst.msk [vmem:[#allocation2 + $0x28] sm:$0xff] %vm593, %v2922
        %2939 = vst [vmem:[#allocation2 + $0x30] sm:$0xff] %v2923
        %2940 = vst.msk [vmem:[#allocation2 + $0x38] sm:$0xff] %vm593, %v2924
        %2941 = vst [vmem:[#allocation2 + $0x40] sm:$0xff] %v2925
        %2942 = vst.msk [vmem:[#allocation2 + $0x48] sm:$0xff] %vm593, %v2926
        %2943 = vst [vmem:[#allocation2 + $0x50] sm:$0xff] %v2927
        %2944 = vst.msk [vmem:[#allocation2 + $0x58] sm:$0xff] %vm593, %v2928
        %2945 = vst [vmem:[#allocation2 + $0x60] sm:$0xff] %v2929
        %2946 = vst.msk [vmem:[#allocation2 + $0x68] sm:$0xff] %vm593, %v2930
        %2947 = vst [vmem:[#allocation2 + $0x70] sm:$0xff] %v2931
        %2948 = vst.msk [vmem:[#allocation2 + $0x78] sm:$0xff] %vm593, %v2932
        %v2949 = vld [vmem:[%s388 + $0x8] sm:$0xff]
        %v2950 = vld [vmem:[%s388 + $0x10] sm:$0xff]
        %v2951 = vld [vmem:[%s388 + $0x18] sm:$0xff]
        %v2952 = vld [vmem:[%s388 + $0x20] sm:$0xff]
        %v2953 = vld [vmem:[%s388 + $0x28] sm:$0xff]
        %v2954 = vld [vmem:[%s388 + $0x30] sm:$0xff]
        %v2955 = vld [vmem:[%s388 + $0x38] sm:$0xff]
        %v2956 = vld [vmem:[%s388 + $0x40] sm:$0xff]
        %s2957 = scalar_lea.vmem %s6, 1536
        %v2958 = vld [vmem:[%s2957] sm:$0xff]
        %v2959 = vld [vmem:[%s2957 + $0x8] sm:$0xff]
        %v2960 = vld [vmem:[%s2957 + $0x10] sm:$0xff]
        %v2961 = vld [vmem:[%s2957 + $0x18] sm:$0xff]
        %v2962 = vld [vmem:[%s2957 + $0x20] sm:$0xff]
        %v2963 = vld [vmem:[%s2957 + $0x28] sm:$0xff]
        %v2964 = vld [vmem:[%s2957 + $0x30] sm:$0xff]
        %v2965 = vld [vmem:[%s2957 + $0x38] sm:$0xff]
        %v2966 = vld [vmem:[%s2957 + $0x40] sm:$0xff]
        %v2967 = vld [vmem:[%s2957 + $0x48] sm:$0xff]
        %v2968 = vld [vmem:[%s2957 + $0x50] sm:$0xff]
        %v2969 = vld [vmem:[%s2957 + $0x58] sm:$0xff]
        %v2970 = vld [vmem:[%s2957 + $0x60] sm:$0xff]
        %v2971 = vld [vmem:[%s2957 + $0x68] sm:$0xff]
        %v2972 = vld [vmem:[%s2957 + $0x70] sm:$0xff]
        %v2973 = vld [vmem:[%s2957 + $0x78] sm:$0xff]
        %v2974 = vld [vmem:[%s2957 + $0x80] sm:$0xff]
        %v2975 = vld [vmem:[%s2957 + $0x88] sm:$0xff]
        %v2976 = vld [vmem:[%s2957 + $0x90] sm:$0xff]
        %v2977 = vld [vmem:[%s2957 + $0x98] sm:$0xff]
        %v2978 = vld [vmem:[%s2957 + $0xa0] sm:$0xff]
        %v2979 = vld [vmem:[%s2957 + $0xa8] sm:$0xff]
        %v2980 = vld [vmem:[%s2957 + $0xb0] sm:$0xff]
        %v2981 = vld [vmem:[%s2957 + $0xb8] sm:$0xff]
        %v2990 = vunpack.c.l.b16 %v2949
        %v2991 = vunpack.c.h.b16 %v2949
        %v2992 = vunpack.c.l.b16 %v2950
        %v2993 = vunpack.c.h.b16 %v2950
        %v2994 = vunpack.c.l.b16 %v2951
        %v2995 = vunpack.c.h.b16 %v2951
        %v2996 = vunpack.c.l.b16 %v2952
        %v2997 = vunpack.c.h.b16 %v2952
        %v2998 = vunpack.c.l.b16 %v2953
        %v2999 = vunpack.c.h.b16 %v2953
        %v3000 = vunpack.c.l.b16 %v2954
        %v3001 = vunpack.c.h.b16 %v2954
        %v3002 = vunpack.c.l.b16 %v2955
        %v3003 = vunpack.c.h.b16 %v2955
        %v3004 = vunpack.c.l.b16 %v2956
        %v3005 = vunpack.c.h.b16 %v2956
        %v3006 = vpack.c.b16 %v2992, %v2990
        %v3007 = vpack.c.b16 %v2993, %v2991
        %v3008 = vpack.c.b16 %v2996, %v2994
        %v3009 = vpack.c.b16 %v2997, %v2995
        %v3010 = vpack.c.b16 %v3000, %v2998
        %v3011 = vpack.c.b16 %v3001, %v2999
        %v3012 = vpack.c.b16 %v3004, %v3002
        %v3013 = vpack.c.b16 %v3005, %v3003
        %v3042 = vunpack.c.l.b16 %v2958
        %v3043 = vunpack.c.h.b16 %v2958
        %v3044 = vunpack.c.l.b16 %v2959
        %v3045 = vunpack.c.h.b16 %v2959
        %v3046 = vunpack.c.l.b16 %v2960
        %v3047 = vunpack.c.h.b16 %v2960
        %v3048 = vunpack.c.l.b16 %v2961
        %v3049 = vunpack.c.h.b16 %v2961
        %v3050 = vunpack.c.l.b16 %v2962
        %v3051 = vunpack.c.h.b16 %v2962
        %v3052 = vunpack.c.l.b16 %v2963
        %v3053 = vunpack.c.h.b16 %v2963
        %v3054 = vunpack.c.l.b16 %v2964
        %v3055 = vunpack.c.h.b16 %v2964
        %v3056 = vunpack.c.l.b16 %v2965
        %v3057 = vunpack.c.h.b16 %v2965
        %v3058 = vunpack.c.l.b16 %v2966
        %v3059 = vunpack.c.h.b16 %v2966
        %v3060 = vunpack.c.l.b16 %v2967
        %v3061 = vunpack.c.h.b16 %v2967
        %v3062 = vunpack.c.l.b16 %v2968
        %v3063 = vunpack.c.h.b16 %v2968
        %v3064 = vunpack.c.l.b16 %v2969
        %v3065 = vunpack.c.h.b16 %v2969
        %v3066 = vunpack.c.l.b16 %v2970
        %v3067 = vunpack.c.h.b16 %v2970
        %v3068 = vunpack.c.l.b16 %v2971
        %v3069 = vunpack.c.h.b16 %v2971
        %v3070 = vunpack.c.l.b16 %v2972
        %v3071 = vunpack.c.h.b16 %v2972
        %v3072 = vunpack.c.l.b16 %v2973
        %v3073 = vunpack.c.h.b16 %v2973
        %v3074 = vunpack.c.l.b16 %v2974
        %v3075 = vunpack.c.h.b16 %v2974
        %v3076 = vunpack.c.l.b16 %v2975
        %v3077 = vunpack.c.h.b16 %v2975
        %v3078 = vunpack.c.l.b16 %v2976
        %v3079 = vunpack.c.h.b16 %v2976
        %v3080 = vunpack.c.l.b16 %v2977
        %v3081 = vunpack.c.h.b16 %v2977
        %v3082 = vunpack.c.l.b16 %v2978
        %v3083 = vunpack.c.h.b16 %v2978
        %v3084 = vunpack.c.l.b16 %v2979
        %v3085 = vunpack.c.h.b16 %v2979
        %v3086 = vunpack.c.l.b16 %v2980
        %v3087 = vunpack.c.h.b16 %v2980
        %v3088 = vunpack.c.l.b16 %v2981
        %v3089 = vunpack.c.h.b16 %v2981
        %v3090 = vpack.c.b16 %v3044, %v3042
        %v3091 = vpack.c.b16 %v3045, %v3043
        %v3092 = vpack.c.b16 %v3048, %v3046
        %v3093 = vpack.c.b16 %v3049, %v3047
        %v3094 = vpack.c.b16 %v3052, %v3050
        %v3095 = vpack.c.b16 %v3053, %v3051
        %v3096 = vpack.c.b16 %v3056, %v3054
        %v3097 = vpack.c.b16 %v3057, %v3055
        %v3098 = vpack.c.b16 %v3060, %v3058
        %v3099 = vpack.c.b16 %v3061, %v3059
        %v3100 = vpack.c.b16 %v3064, %v3062
        %v3101 = vpack.c.b16 %v3065, %v3063
        %v3102 = vpack.c.b16 %v3068, %v3066
        %v3103 = vpack.c.b16 %v3069, %v3067
        %v3104 = vpack.c.b16 %v3072, %v3070
        %v3105 = vpack.c.b16 %v3073, %v3071
        %v3106 = vpack.c.b16 %v3076, %v3074
        %v3107 = vpack.c.b16 %v3077, %v3075
        %v3108 = vpack.c.b16 %v3080, %v3078
        %v3109 = vpack.c.b16 %v3081, %v3079
        %v3110 = vpack.c.b16 %v3084, %v3082
        %v3111 = vpack.c.b16 %v3085, %v3083
        %v3112 = vpack.c.b16 %v3088, %v3086
        %v3113 = vpack.c.b16 %v3089, %v3087
        %v3139 = vsel %vm593, %v3007, 0
        %v3142 = vsel %vm593, %v3009, 0
        %v3145 = vsel %vm593, %v3011, 0
        %v3148 = vsel %vm593, %v3013, 0
        %3150 = vmatprep.subr.bf16.mxu0 %v3091
        %3151 = vmatpush1.bf16.msra.mxu0 %v3090
        %3152 = vmatprep.subr.bf16.mxu0 %v3093
        %3153 = vmatpush1.bf16.msra.mxu0 %v3092
        %3154 = vmatprep.subr.bf16.mxu0 %v3095
        %3155 = vmatpush1.bf16.msra.mxu0 %v3094
        %3156 = vmatprep.subr.bf16.mxu0 %v3097
        %3157 = vmatpush1.bf16.msra.mxu0 %v3096
        %3158 = vmatprep.subr.bf16.mxu0 %v3099
        %3159 = vmatpush1.bf16.msra.mxu0 %v3098
        %3160 = vmatprep.subr.bf16.mxu0 %v3101
        %3161 = vmatpush1.bf16.msra.mxu0 %v3100
        %3162 = vmatprep.subr.bf16.mxu0 %v3103
        %3163 = vmatpush1.bf16.msra.mxu0 %v3102
        %3164 = vmatprep.subr.bf16.mxu0 %v3105
        %3165 = vmatpush1.bf16.msra.mxu0 %v3104
        %3166 = vmatprep.subr.bf16.mxu0 %v3107
        %3167 = vmatpush1.bf16.msra.mxu0 %v3106
        %3168 = vmatprep.subr.bf16.mxu0 %v3109
        %3169 = vmatpush1.bf16.msra.mxu0 %v3108
        %3170 = vmatprep.subr.bf16.mxu0 %v3111
        %3171 = vmatpush1.bf16.msra.mxu0 %v3110
        %3172 = vmatprep.subr.bf16.mxu0 %v3113
        %3173 = vmatpush1.bf16.msra.mxu0 %v3112
        %3174 = vmatprep.subr.bf16.mxu0 0
        %3175 = vmatpush1.bf16.msra.mxu0 0
        %3176 = vmatprep.subr.bf16.mxu0 0
        %3177 = vmatpush1.bf16.msra.mxu0 0
        %3178 = vmatprep.subr.bf16.mxu0 0
        %3179 = vmatpush1.bf16.msra.mxu0 0
        %3180 = vmatprep.subr.bf16.mxu0 0
        %3181 = vmatpush1.bf16.msra.mxu0 0
        %3182 = vmatprep.mubr.bf16.mxu0 %v3139
        %3183 = vmatmul.mubr.bf16.gmra.mrb[0].mxu0 %v3006
        %v3184 = vpop.f32.mrb[0].mxu0
        %v3185 = vadd.f32 0.0, %v3184
        %v3186 = vpop.f32.mrb[0].mxu0
        %v3187 = vadd.f32 0.0, %v3186
        %v3188 = vpop.f32.mrb[0].mxu0
        %v3189 = vadd.f32 0.0, %v3188
        %v3190 = vpop.f32.mrb[0].mxu0
        %v3191 = vadd.f32 0.0, %v3190
        %3192 = vmatprep.mubr.bf16.mxu0 %v3142
        %3193 = vmatmul.mubr.bf16.gmra.mrb[0].mxu0 %v3008
        %v3194 = vpop.f32.mrb[0].mxu0
        %v3195 = vadd.f32 0.0, %v3194
        %v3196 = vpop.f32.mrb[0].mxu0
        %v3197 = vadd.f32 0.0, %v3196
        %v3198 = vpop.f32.mrb[0].mxu0
        %v3199 = vadd.f32 0.0, %v3198
        %v3200 = vpop.f32.mrb[0].mxu0
        %v3201 = vadd.f32 0.0, %v3200
        %3202 = vmatprep.mubr.bf16.mxu0 %v3145
        %3203 = vmatmul.mubr.bf16.gmra.mrb[0].mxu0 %v3010
        %v3204 = vpop.f32.mrb[0].mxu0
        %v3205 = vadd.f32 0.0, %v3204
        %v3206 = vpop.f32.mrb[0].mxu0
        %v3207 = vadd.f32 0.0, %v3206
        %v3208 = vpop.f32.mrb[0].mxu0
        %v3209 = vadd.f32 0.0, %v3208
        %v3210 = vpop.f32.mrb[0].mxu0
        %v3211 = vadd.f32 0.0, %v3210
        %3212 = vmatprep.mubr.bf16.mxu0 %v3148
        %3213 = vmatmul.mubr.bf16.gmra.mrb[0].mxu0 %v3012
        %v3214 = vpop.f32.mrb[0].mxu0
        %v3215 = vadd.f32 0.0, %v3214
        %v3216 = vpop.f32.mrb[0].mxu0
        %v3217 = vadd.f32 0.0, %v3216
        %v3218 = vpop.f32.mrb[0].mxu0
        %v3219 = vadd.f32 0.0, %v3218
        %v3220 = vpop.f32.mrb[0].mxu0
        %v3221 = vadd.f32 0.0, %v3220
        %3222 = vdwg.mxu0
        %v3223 = vld [vmem:[#allocation2] sm:$0xff]
        %v3224 = vld [vmem:[#allocation2 + $0x8] sm:$0xff]
        %v3225 = vld [vmem:[#allocation2 + $0x10] sm:$0xff]
        %v3226 = vld [vmem:[#allocation2 + $0x18] sm:$0xff]
        %v3227 = vld [vmem:[#allocation2 + $0x20] sm:$0xff]
        %v3228 = vld [vmem:[#allocation2 + $0x28] sm:$0xff]
        %v3229 = vld [vmem:[#allocation2 + $0x30] sm:$0xff]
        %v3230 = vld [vmem:[#allocation2 + $0x38] sm:$0xff]
        %v3231 = vld [vmem:[#allocation2 + $0x40] sm:$0xff]
        %v3232 = vld [vmem:[#allocation2 + $0x48] sm:$0xff]
        %v3233 = vld [vmem:[#allocation2 + $0x50] sm:$0xff]
        %v3234 = vld [vmem:[#allocation2 + $0x58] sm:$0xff]
        %v3235 = vld [vmem:[#allocation2 + $0x60] sm:$0xff]
        %v3236 = vld [vmem:[#allocation2 + $0x68] sm:$0xff]
        %v3237 = vld [vmem:[#allocation2 + $0x70] sm:$0xff]
        %v3238 = vld [vmem:[#allocation2 + $0x78] sm:$0xff]
        %v3239 = vadd.f32 %v3223, %v3185
        %v3240 = vadd.f32 %v3224, %v3187
        %v3241 = vadd.f32 %v3225, %v3189
        %v3242 = vadd.f32 %v3226, %v3191
        %v3243 = vadd.f32 %v3227, %v3195
        %v3244 = vadd.f32 %v3228, %v3197
        %v3245 = vadd.f32 %v3229, %v3199
        %v3246 = vadd.f32 %v3230, %v3201
        %v3247 = vadd.f32 %v3231, %v3205
        %v3248 = vadd.f32 %v3232, %v3207
        %v3249 = vadd.f32 %v3233, %v3209
        %v3250 = vadd.f32 %v3234, %v3211
        %v3251 = vadd.f32 %v3235, %v3215
        %v3252 = vadd.f32 %v3236, %v3217
        %v3253 = vadd.f32 %v3237, %v3219
        %v3254 = vadd.f32 %v3238, %v3221
        %3255 = vst [vmem:[#allocation2] sm:$0xff] %v3239
        %3256 = vst.msk [vmem:[#allocation2 + $0x8] sm:$0xff] %vm593, %v3240
        %3257 = vst [vmem:[#allocation2 + $0x10] sm:$0xff] %v3241
        %3258 = vst.msk [vmem:[#allocation2 + $0x18] sm:$0xff] %vm593, %v3242
        %3259 = vst [vmem:[#allocation2 + $0x20] sm:$0xff] %v3243
        %3260 = vst.msk [vmem:[#allocation2 + $0x28] sm:$0xff] %vm593, %v3244
        %3261 = vst [vmem:[#allocation2 + $0x30] sm:$0xff] %v3245
        %3262 = vst.msk [vmem:[#allocation2 + $0x38] sm:$0xff] %vm593, %v3246
        %3263 = vst [vmem:[#allocation2 + $0x40] sm:$0xff] %v3247
        %3264 = vst.msk [vmem:[#allocation2 + $0x48] sm:$0xff] %vm593, %v3248
        %3265 = vst [vmem:[#allocation2 + $0x50] sm:$0xff] %v3249
        %3266 = vst.msk [vmem:[#allocation2 + $0x58] sm:$0xff] %vm593, %v3250
        %3267 = vst [vmem:[#allocation2 + $0x60] sm:$0xff] %v3251
        %3268 = vst.msk [vmem:[#allocation2 + $0x68] sm:$0xff] %vm593, %v3252
        %3269 = vst [vmem:[#allocation2 + $0x70] sm:$0xff] %v3253
        %3270 = vst.msk [vmem:[#allocation2 + $0x78] sm:$0xff] %vm593, %v3254
        %v3271 = vld [vmem:[#allocation2] sm:$0xff]
        %v3272 = vld [vmem:[#allocation2 + $0x8] sm:$0xff]
        %v3273 = vld [vmem:[#allocation2 + $0x10] sm:$0xff]
        %v3274 = vld [vmem:[#allocation2 + $0x18] sm:$0xff]
        %v3275 = vld [vmem:[#allocation2 + $0x20] sm:$0xff]
        %v3276 = vld [vmem:[#allocation2 + $0x28] sm:$0xff]
        %v3277 = vld [vmem:[#allocation2 + $0x30] sm:$0xff]
        %v3278 = vld [vmem:[#allocation2 + $0x38] sm:$0xff]
        %v3279 = vld [vmem:[#allocation2 + $0x40] sm:$0xff]
        %v3280 = vld [vmem:[#allocation2 + $0x48] sm:$0xff]
        %v3281 = vld [vmem:[#allocation2 + $0x50] sm:$0xff]
        %v3282 = vld [vmem:[#allocation2 + $0x58] sm:$0xff]
        %v3283 = vld [vmem:[#allocation2 + $0x60] sm:$0xff]
        %v3284 = vld [vmem:[#allocation2 + $0x68] sm:$0xff]
        %v3285 = vld [vmem:[#allocation2 + $0x70] sm:$0xff]
        %v3286 = vld [vmem:[#allocation2 + $0x78] sm:$0xff]
        %v3287 = vld [vmem:[%s7] sm:$0x3]
        %v3289 = vlaneseq
        %v3290 = vshrl.u32 %v3289, 7
        %v3291 = vsub.s32 0, %v3290
        %v3292 = vrot.slane %v3287, %v3291
        %v3293 = vlaneseq
        %v3294 = vshrl.u32 %v3293, 7
        %v3295 = vsub.s32 1, %v3294
        %v3296 = vrot.slane %v3287, %v3295
        %v3299 = vadd.f32 %v3271, %v3292
        %v3300 = vadd.f32 %v3272, %v3296
        %v3301 = vadd.f32 %v3273, %v3292
        %v3302 = vadd.f32 %v3274, %v3296
        %v3303 = vadd.f32 %v3275, %v3292
        %v3304 = vadd.f32 %v3276, %v3296
        %v3305 = vadd.f32 %v3277, %v3292
        %v3306 = vadd.f32 %v3278, %v3296
        %v3307 = vadd.f32 %v3279, %v3292
        %v3308 = vadd.f32 %v3280, %v3296
        %v3309 = vadd.f32 %v3281, %v3292
        %v3310 = vadd.f32 %v3282, %v3296
        %v3311 = vadd.f32 %v3283, %v3292
        %v3312 = vadd.f32 %v3284, %v3296
        %v3313 = vadd.f32 %v3285, %v3292
        %v3314 = vadd.f32 %v3286, %v3296
        %v3315 = vmax.f32 %v3299, 0.0
        %v3316 = vmax.f32 %v3300, 0.0
        %v3317 = vmax.f32 %v3301, 0.0
        %v3318 = vmax.f32 %v3302, 0.0
        %v3319 = vmax.f32 %v3303, 0.0
        %v3320 = vmax.f32 %v3304, 0.0
        %v3321 = vmax.f32 %v3305, 0.0
        %v3322 = vmax.f32 %v3306, 0.0
        %v3323 = vmax.f32 %v3307, 0.0
        %v3324 = vmax.f32 %v3308, 0.0
        %v3325 = vmax.f32 %v3309, 0.0
        %v3326 = vmax.f32 %v3310, 0.0
        %v3327 = vmax.f32 %v3311, 0.0
        %v3328 = vmax.f32 %v3312, 0.0
        %v3329 = vmax.f32 %v3313, 0.0
        %v3330 = vmax.f32 %v3314, 0.0
        %3331 = vst [vmem:[%s373] sm:$0xff] %v3315
        %3332 = vst.msk [vmem:[%s373 + $0x8] sm:$0xff] %vm593, %v3316
        %3333 = vst [vmem:[%s373 + $0x10] sm:$0xff] %v3317
        %3334 = vst.msk [vmem:[%s373 + $0x18] sm:$0xff] %vm593, %v3318
        %3335 = vst [vmem:[%s373 + $0x20] sm:$0xff] %v3319
        %3336 = vst.msk [vmem:[%s373 + $0x28] sm:$0xff] %vm593, %v3320
        %3337 = vst [vmem:[%s373 + $0x30] sm:$0xff] %v3321
        %3338 = vst.msk [vmem:[%s373 + $0x38] sm:$0xff] %vm593, %v3322
        %3339 = vst [vmem:[%s373 + $0x40] sm:$0xff] %v3323
        %3340 = vst.msk [vmem:[%s373 + $0x48] sm:$0xff] %vm593, %v3324
        %3341 = vst [vmem:[%s373 + $0x50] sm:$0xff] %v3325
        %3342 = vst.msk [vmem:[%s373 + $0x58] sm:$0xff] %vm593, %v3326
        %3343 = vst [vmem:[%s373 + $0x60] sm:$0xff] %v3327
        %3344 = vst.msk [vmem:[%s373 + $0x68] sm:$0xff] %vm593, %v3328
        %3345 = vst [vmem:[%s373 + $0x70] sm:$0xff] %v3329
        %3346 = vst.msk [vmem:[%s373 + $0x78] sm:$0xff] %vm593, %v3330
        %s3347 = sand.u32 %s228, 1
        %s3348 = scalar_lea.sflag [#allocation4], %s3347
        %s3349 = sand.u32 %s228, 1
        %s3350 = smul.addr %s3349, 128
        %s3351 = scalar_lea.vmem [#allocation3], %s3350
        // Predicated region
        $region53: #{incept_conv.1} parent=51 // pred_check
          %p3352 = pneg %p238
        $region54: #{incept_conv.1} parent=51 // pred_check_branch
          %3354 = sbr.rel (%p3352) target = $region56
        $region55: #{incept_conv.1} parent=51 // pred_region
          %s3356 = ssub.s32 2048, 2048
          %3357 = vsyncadd %s3348, %s3356
          %s3358 = smul.addr %s22, 16
          %s3359 = smul.addr %s3358, 128
          %s3360 = scalar_lea.hbm %s8, %s3359
          %s3361 = sshll.u32 %s3351, 4
          %s3362 = int_to_ptr.vmem [resolvable:$true] %s3361
          %3367 = dma.vmem_to_hbm [thread:$0]  %s3362, 2048, %s3360, %s3348, 256, 256, 16
        $region56: #{incept_conv.1} parent=51 // pred_fallthru
          _
      $region52: #{incept_conv.1} parent=5 // pred_fallthru
        _
      %p3368 = scmp.le.s32.totalorder 2, %s17
      // Predicated region
      $region57: #{incept_conv.1} parent=5 // pred_check
        %p3369 = pneg %p3368
      $region58: #{incept_conv.1} parent=5 // pred_check_branch
        %3371 = sbr.rel (%p3369) target = $region60
      $region59: #{incept_conv.1} parent=5 // pred_region
        %s3372 = ssub.s32 %s17, 2
        // Predicated region
        $region61: #{incept_conv.1} parent=59 // pred_check
          %p3373 = pneg %p244
        $region62: #{incept_conv.1} parent=59 // pred_check_branch
          %3375 = sbr.rel (%p3373) target = $region64
        $region63: #{incept_conv.1} parent=59 // pred_region
          %s3376 = sand.u32 %s229, 1
          %s3377 = scalar_lea.sflag [#allocation4], %s3376
          %s3378 = sand.u32 %s229, 1
          %s3379 = smul.addr %s3378, 128
          %s3380 = scalar_lea.vmem [#allocation3], %s3379
          %3381 = dma.done %s3377, 2048
        $region64: #{incept_conv.1} parent=59 // pred_fallthru
          _
      $region60: #{incept_conv.1} parent=5 // pred_fallthru
        _
    $region6: #{incept_conv.1} parent=1 // loop_footer
      %s21 = sadd.s32 1, %s17
    $region7: #{incept_conv.1} parent=1 // loop_footer_branch
      %16 = sbr.rel target = $region3
    $region8: #{incept_conv.1} parent=1 // loop_exit
      _
    %3382 = vsyncpa [#allocation4], 1
    %s3383 = scalar_lea.sflag [#allocation4], 1
    %3384 = vsyncpa %s3383, 1

</llo_original>
